<compile_context>
chip_gen: v5e
topology: v5e:2x2
jax: 0.10.0
libtpu: 0.0.40
codegen_flags: <defaults>
</compile_context>

<pallas_src>
import jax
import jax.numpy as jnp
from jax import lax
from jax.experimental import pallas as pl
from jax.experimental.pallas import tpu as pltpu


def _round_up(x, m):
    return ((x + m - 1) // m) * m


def _pick_chunk(s):
    """Largest chunk of timesteps per grid step that divides S."""
    for t in (32, 16, 8, 4, 2):
        if s % t == 0:
            return t
    return 1


# ---------------------------------------------------------------------------
# Parallel matmul + bias kernel:  (M, K) @ (K, N) + (1, N) -> (M, N) f32
# Used for the batched input projection and the fc / vocab projection.
# ---------------------------------------------------------------------------
def _matmul_bias_kernel(x_ref, w_ref, b_ref, o_ref, acc_ref):
    @pl.when(pl.program_id(2) == 0)
    def _():
        acc_ref[...] = jnp.zeros_like(acc_ref)

    acc_ref[...] += jnp.dot(
        x_ref[...], w_ref[...], preferred_element_type=jnp.float32
    )

    @pl.when(pl.program_id(2) == pl.num_programs(2) - 1)
    def _():
        o_ref[...] = (acc_ref[...] + b_ref[...].astype(jnp.float32)).astype(o_ref.dtype)


def matmul_bias(x, w, b, *, tk=128, tn=128):
    """x: (M, K), w: (K, N), b: (1, N). K and N must be multiples of 128."""
    M, K = x.shape
    N = w.shape[1]
    Mp = _round_up(M, 8)
    if Mp != M:
        x = jnp.pad(x, ((0, Mp - M), (0, 0)))
    tm = 128 if Mp % 128 == 0 else Mp  # small problems: take full M as one block

    out = pl.pallas_call(
        _matmul_bias_kernel,
        out_shape=jax.ShapeDtypeStruct((Mp, N), jnp.float32),
        grid_spec=pltpu.PrefetchScalarGridSpec(
            num_scalar_prefetch=0,
            grid=(Mp // tm, N // tn, K // tk),
            in_specs=[
                pl.BlockSpec((tm, tk), lambda i, j, k: (i, k)),
                pl.BlockSpec((tk, tn), lambda i, j, k: (k, j)),
                pl.BlockSpec((1, tn), lambda i, j, k: (0, j)),
            ],
            out_specs=pl.BlockSpec((tm, tn), lambda i, j, k: (i, j)),
            scratch_shapes=[pltpu.VMEM((tm, tn), jnp.float32)],
        ),
        compiler_params=pltpu.CompilerParams(
            dimension_semantics=("parallel", "parallel", "arbitrary")
        ),
    )(x, w, b)
    return out[:M] if Mp != M else out


# ---------------------------------------------------------------------------
# Sequential GRU recurrence kernel.
#   gi_ref   : (T, Bp, 3Hp)  precomputed input gates (r|z|n), biases folded in
#   h0_ref   : (Bp, Hp)      initial hidden
#   whh_ref  : (Hp, 3Hp)     fused hidden weights [Whr|Whz|Whn] (bf16)
#   bhn_ref  : (1, Hp)       hidden bias of the n gate (must stay separate)
#   hseq_ref : (T, Bp, Hp)   per-step hidden outputs (consumed by the fc matmul)
#   hlast_ref: (Bp, Hp)      resident across grid steps -> carries the state
# ---------------------------------------------------------------------------
def _gru_chunk_kernel(gi_ref, h0_ref, whh_ref, bhn_ref, hseq_ref, hlast_ref):
    c = pl.program_id(0)
    T = gi_ref.shape[0]
    Hp = h0_ref.shape[1]

    @pl.when(c == 0)
    def _():
        hlast_ref[...] = h0_ref[...]

    bhn = bhn_ref[...].astype(jnp.float32)  # (1, Hp)

    def step(t, h):
        gi = gi_ref[t].astype(jnp.float32)  # (Bp, 3Hp)
        gh = jnp.dot(
            h.astype(jnp.bfloat16), whh_ref[...], preferred_element_type=jnp.float32
        )  # (Bp, 3Hp)
        # One wide sigmoid over the fused r|z slab (single EUP push).
        rz = jax.nn.sigmoid(gi[:, : 2 * Hp] + gh[:, : 2 * Hp])
        r = rz[:, :Hp]
        z = rz[:, Hp:]
        n = jnp.tanh(gi[:, 2 * Hp:] + r * (gh[:, 2 * Hp:] + bhn))
        h_new = (1.0 - z) * n + z * h
        hseq_ref[t] = h_new
        return h_new

    h = lax.fori_loop(0, T, step, hlast_ref[...].astype(jnp.float32), unroll=True)
    hlast_ref[...] = h


# ---------------------------------------------------------------------------
# Decoder forward
# ---------------------------------------------------------------------------
def decoder_forward(dec_data, hidden, params):
    """dec_data: (B, S) int32 tokens; hidden: (1, B, H) f32."""
    emb = params["embedding"]  # (vocab, E)
    B, S = dec_data.shape
    E = emb.shape[1]
    H = params["whr"].shape[0]
    V = params["wfc"].shape[1]

    Bp = _round_up(B, 8)
    Ep = _round_up(E, 128)
    Hp = _round_up(H, 128)
    Vp = _round_up(V, 128)

    # ---- Embedding lookup (glue gather), time-major, padded to (8,128) tiles ----
    # TODO(synk): data-dependent embedding gather kept in plain JAX (jnp.take).
    x = jnp.take(emb, dec_data, axis=0)        # (B, S, E)
    x = jnp.transpose(x, (1, 0, 2))            # (S, B, E)
    x = jnp.pad(x, ((0, 0), (0, Bp - B), (0, Ep - E)))

    # ---- Fuse + pad weights (torch gate order r, z, n) ----
    def padw(w, r, c):
        return jnp.pad(w, ((0, r - w.shape[0]), (0, c - w.shape[1])))

    def padb(b, c):
        return jnp.pad(b, ((0, 0), (0, c - b.shape[1])))

    w_ih = jnp.concatenate(
        [padw(params["wir"], Ep, Hp), padw(params["wiz"], Ep, Hp), padw(params["win"], Ep, Hp)],
        axis=1,
    )  # (Ep, 3Hp)
    w_hh = jnp.concatenate(
        [padw(params["whr"], Hp, Hp), padw(params["whz"], Hp, Hp), padw(params["whn"], Hp, Hp)],
        axis=1,
    )  # (Hp, 3Hp)
    # r/z hidden biases folded into the precomputed input gates; bhn stays separate
    # because it is multiplied by r inside the recurrence.
    b_i = jnp.concatenate(
        [
            padb(params["bir"], Hp) + padb(params["bhr"], Hp),
            padb(params["biz"], Hp) + padb(params["bhz"], Hp),
            padb(params["bin"], Hp),
        ],
        axis=1,
    )  # (1, 3Hp)
    b_hn = padb(params["bhn"], Hp)               # (1, Hp)
    w_fc = padw(params["wfc"], Hp, Vp)           # (Hp, Vp)
    b_fc = padb(params["bfc"], Vp)               # (1, Vp)

    h0 = jnp.pad(hidden[0], ((0, Bp - B), (0, Hp - H)))  # (Bp, Hp)

    # ---- (1) One big input projection for ALL timesteps (parallel matmul) ----
    gi = matmul_bias(
        x.reshape(S * Bp, Ep).astype(jnp.bfloat16), w_ih.astype(jnp.bfloat16), b_i
    )  # (S*Bp, 3Hp) f32
    gi = gi.reshape(S, Bp, 3 * Hp)

    # ---- (2) Sequential recurrence, T timesteps per grid iteration ----
    T = _pick_chunk(S)
    h_seq, h_last = pl.pallas_call(
        _gru_chunk_kernel,
        out_shape=(
            jax.ShapeDtypeStruct((S, Bp, Hp), jnp.float32),
            jax.ShapeDtypeStruct((Bp, Hp), jnp.float32),
        ),
        grid_spec=pltpu.PrefetchScalarGridSpec(
            num_scalar_prefetch=0,
            grid=(S // T,),
            in_specs=[
                pl.BlockSpec((T, Bp, 3 * Hp), lambda c: (c, 0, 0)),  # gi chunk
                pl.BlockSpec((Bp, Hp), lambda c: (0, 0)),            # h0
                pl.BlockSpec((Hp, 3 * Hp), lambda c: (0, 0)),        # fused Whh (bf16)
                pl.BlockSpec((1, Hp), lambda c: (0, 0)),             # bhn
            ],
            out_specs=[
                pl.BlockSpec((T, Bp, Hp), lambda c: (c, 0, 0)),
                pl.BlockSpec((Bp, Hp), lambda c: (0, 0)),            # resident carry
            ],
        ),
        compiler_params=pltpu.CompilerParams(dimension_semantics=("arbitrary",)),
    )(gi, h0, w_hh.astype(jnp.bfloat16), b_hn)

    # ---- (3) One big fc / vocab projection for ALL timesteps (parallel matmul) ----
    pred = matmul_bias(
        h_seq.reshape(S * Bp, Hp).astype(jnp.bfloat16), w_fc.astype(jnp.bfloat16), b_fc
    )  # (S*Bp, Vp) f32
    pred = pred.reshape(S, Bp, Vp)

    prediction = jnp.transpose(pred, (1, 0, 2))[:B, :, :V]  # (B, S, V)
    hidden_out = h_last[:B, :H][None]                       # (1, B, H)
    return prediction, hidden_out


def init_params(key, vocab_dim, emb_dim, hid_dim):
    ks = jax.random.split(key, 16)
    u = lambda k, shape, s: jax.random.uniform(k, shape, jnp.float32, -s, s)
    s = 1.0 / jnp.sqrt(hid_dim)
    return {
        "embedding": jax.random.normal(ks[0], (vocab_dim, emb_dim), jnp.float32) * 0.1,
        # input-to-hidden weights, stored transposed: (E, H)
        "wir": u(ks[1], (emb_dim, hid_dim), s),
        "wiz": u(ks[2], (emb_dim, hid_dim), s),
        "win": u(ks[3], (emb_dim, hid_dim), s),
        # hidden-to-hidden weights: (H, H)
        "whr": u(ks[4], (hid_dim, hid_dim), s),
        "whz": u(ks[5], (hid_dim, hid_dim), s),
        "whn": u(ks[6], (hid_dim, hid_dim), s),
        # biases kept 2D (1, H) for TPU-friendly broadcasting
        "bir": u(ks[7], (1, hid_dim), s),
        "biz": u(ks[8], (1, hid_dim), s),
        "bin": u(ks[9], (1, hid_dim), s),
        "bhr": u(ks[10], (1, hid_dim), s),
        "bhz": u(ks[11], (1, hid_dim), s),
        "bhn": u(ks[12], (1, hid_dim), s),
        # fc: Linear(hid_dim, vocab_dim), stored transposed (H, V)
        "wfc": u(ks[13], (hid_dim, vocab_dim), s),
        "bfc": u(ks[14], (1, vocab_dim), s),
    }


if __name__ == "__main__":
    vocab_dim, emb_dim, hid_dim = 64, 32, 32
    batch, seq = 2, 8

    key = jax.random.PRNGKey(0)
    kp, kt, kh = jax.random.split(key, 3)
    params = init_params(kp, vocab_dim, emb_dim, hid_dim)

    dec_data = jax.random.randint(kt, (batch, seq), 0, vocab_dim, dtype=jnp.int32)
    hidden0 = jax.random.normal(kh, (1, batch, hid_dim), jnp.float32)

    prediction, hidden = jax.jit(decoder_forward)(dec_data, hidden0, params)
    jax.block_until_ready((prediction, hidden))

    assert prediction.shape == (batch, seq, vocab_dim)
    assert hidden.shape == (1, batch, hid_dim)
    assert bool(jnp.all(jnp.isfinite(prediction)))
    assert bool(jnp.all(jnp.isfinite(hidden)))
    print("KERNEL_OK")
</pallas_src>

<mosaic_0001>
module attributes {stable_mosaic.version = 11 : i64} {
  func.func @_matmul_bias_kernel(%arg0: i32, %arg1: i32, %arg2: i32, %arg3: memref<64x128xbf16, #tpu.memory_space<vmem>>, %arg4: memref<128x128xbf16, #tpu.memory_space<vmem>>, %arg5: memref<1x128xf32, #tpu.memory_space<vmem>>, %arg6: memref<64x128xf32, #tpu.memory_space<vmem>>, %arg7: memref<64x128xf32, #tpu.memory_space<vmem>>) attributes {dimension_semantics = [#tpu.dimension_semantics<parallel>, #tpu.dimension_semantics<parallel>, #tpu.dimension_semantics<arbitrary>], iteration_bounds = array<i64: 1, 3, 1>, scalar_prefetch = 0 : i64, scratch_operands = 1 : i64, tpu.core_type = #tpu.core_type<tc>, window_params = [{transform_indices = @transform_0, window_bounds = array<i64: 64, 128>}, {transform_indices = @transform_1, window_bounds = array<i64: 128, 128>}, {transform_indices = @transform_2, window_bounds = array<i64: 1, 128>}, {transform_indices = @transform_3, window_bounds = array<i64: 64, 128>}]} {
    %c0_i32 = arith.constant 0 : i32
    %0 = arith.cmpi eq, %arg2, %c0_i32 : i32
    %1 = arith.extui %0 : i1 to i32
    %c0_i32_0 = arith.constant 0 : i32
    %2 = arith.cmpi ne, %1, %c0_i32_0 : i32
    scf.if %2 {
      %cst_10 = arith.constant 0.000000e+00 : f32
      %12 = vector.broadcast %cst_10 : f32 to vector<64x128xf32>
      %c0_11 = arith.constant 0 : index
      %c0_12 = arith.constant 0 : index
      %13 = vector.load %arg7[%c0_11, %c0_12] : memref<64x128xf32, #tpu.memory_space<vmem>>, vector<64x128xf32>
      tpu.vector_store %arg7[%c0_11, %c0_12], %12 {strides = array<i32>} : memref<64x128xf32, #tpu.memory_space<vmem>>, vector<64x128xf32>,
    } else {
    }
    %c0 = arith.constant 0 : index
    %c0_1 = arith.constant 0 : index
    %3 = vector.load %arg7[%c0, %c0_1] : memref<64x128xf32, #tpu.memory_space<vmem>>, vector<64x128xf32>
    %c0_2 = arith.constant 0 : index
    %c0_3 = arith.constant 0 : index
    %4 = vector.load %arg3[%c0_2, %c0_3] : memref<64x128xbf16, #tpu.memory_space<vmem>>, vector<64x128xbf16>
    %c0_4 = arith.constant 0 : index
    %c0_5 = arith.constant 0 : index
    %5 = vector.load %arg4[%c0_4, %c0_5] : memref<128x128xbf16, #tpu.memory_space<vmem>>, vector<128x128xbf16>
    %cst = arith.constant dense<0.000000e+00> : vector<64x128xf32>
    %6 = tpu.matmul %4, %5, %cst {dimension_numbers = #tpu.dot_dimension_numbers<[1], [0], [0], [1], [0, 0, 1, 1], [], []>} : vector<64x128xbf16>, vector<128x128xbf16>, vector<64x128xf32> -> vector<64x128xf32>
    %7 = arith.addf %3, %6 : vector<64x128xf32>
    %c0_6 = arith.constant 0 : index
    %c0_7 = arith.constant 0 : index
    %8 = vector.load %arg7[%c0_6, %c0_7] : memref<64x128xf32, #tpu.memory_space<vmem>>, vector<64x128xf32>
    tpu.vector_store %arg7[%c0_6, %c0_7], %7 {strides = array<i32>} : memref<64x128xf32, #tpu.memory_space<vmem>>, vector<64x128xf32>,
    %c0_i32_8 = arith.constant 0 : i32
    %9 = arith.cmpi eq, %arg2, %c0_i32_8 : i32
    %10 = arith.extui %9 : i1 to i32
    %c0_i32_9 = arith.constant 0 : i32
    %11 = arith.cmpi ne, %10, %c0_i32_9 : i32
    scf.if %11 {
      %c0_10 = arith.constant 0 : index
      %c0_11 = arith.constant 0 : index
      %12 = vector.load %arg7[%c0_10, %c0_11] : memref<64x128xf32, #tpu.memory_space<vmem>>, vector<64x128xf32>
      %c0_12 = arith.constant 0 : index
      %c0_13 = arith.constant 0 : index
      %13 = vector.load %arg5[%c0_12, %c0_13] : memref<1x128xf32, #tpu.memory_space<vmem>>, vector<1x128xf32>
      %14 = vector.broadcast %13 : vector<1x128xf32> to vector<64x128xf32>
      %15 = arith.addf %12, %14 : vector<64x128xf32>
      %c0_14 = arith.constant 0 : index
      %c0_15 = arith.constant 0 : index
      %16 = vector.load %arg6[%c0_14, %c0_15] : memref<64x128xf32, #tpu.memory_space<vmem>>, vector<64x128xf32>
      tpu.vector_store %arg6[%c0_14, %c0_15], %15 {strides = array<i32>} : memref<64x128xf32, #tpu.memory_space<vmem>>, vector<64x128xf32>,
    } else {
    }
    return
  }
  func.func @transform_0(%arg0: i32, %arg1: i32, %arg2: i32) -> (i32, i32) {
    %c0_i32 = arith.constant 0 : i32
    return %arg0, %arg2 : i32, i32
  }
  func.func @transform_1(%arg0: i32, %arg1: i32, %arg2: i32) -> (i32, i32) {
    %c0_i32 = arith.constant 0 : i32
    return %arg2, %arg1 : i32, i32
  }
  func.func @transform_2(%arg0: i32, %arg1: i32, %arg2: i32) -> (i32, i32) {
    %c0_i32 = arith.constant 0 : i32
    %c0_i32_0 = arith.constant 0 : i32
    return %c0_i32, %arg1 : i32, i32
  }
  func.func @transform_3(%arg0: i32, %arg1: i32, %arg2: i32) -> (i32, i32) {
    %c0_i32 = arith.constant 0 : i32
    return %arg0, %arg1 : i32, i32
  }
}

module attributes {stable_mosaic.version = 11 : i64} {
  func.func @_gru_chunk_kernel(%arg0: i32, %arg1: memref<8x8x384xf32, #tpu.memory_space<vmem>>, %arg2: memref<8x128xf32, #tpu.memory_space<vmem>>, %arg3: memref<128x384xbf16, #tpu.memory_space<vmem>>, %arg4: memref<1x128xf32, #tpu.memory_space<vmem>>, %arg5: memref<8x8x128xf32, #tpu.memory_space<vmem>>, %arg6: memref<8x128xf32, #tpu.memory_space<vmem>>) attributes {dimension_semantics = [#tpu.dimension_semantics<arbitrary>], iteration_bounds = array<i64: 1>, scalar_prefetch = 0 : i64, scratch_operands = 0 : i64, tpu.core_type = #tpu.core_type<tc>, window_params = [{transform_indices = @transform_0, window_bounds = array<i64: 8, 8, 384>}, {pipeline_mode = #tpu.pipeline_mode<synchronous>, transform_indices = @transform_1, window_bounds = array<i64: 8, 128>}, {pipeline_mode = #tpu.pipeline_mode<synchronous>, transform_indices = @transform_2, window_bounds = array<i64: 128, 384>}, {pipeline_mode = #tpu.pipeline_mode<synchronous>, transform_indices = @transform_3, window_bounds = array<i64: 1, 128>}, {transform_indices = @transform_4, window_bounds = array<i64: 8, 8, 128>}, {pipeline_mode = #tpu.pipeline_mode<synchronous>, transform_indices = @transform_5, window_bounds = array<i64: 8, 128>}]} {
    %c0_i32 = arith.constant 0 : i32
    %0 = arith.cmpi eq, %arg0, %c0_i32 : i32
    %1 = arith.extui %0 : i1 to i32
    %c0_i32_0 = arith.constant 0 : i32
    %2 = arith.cmpi ne, %1, %c0_i32_0 : i32
    scf.if %2 {
      %c0_78 = arith.constant 0 : index
      %c0_79 = arith.constant 0 : index
      %262 = vector.load %arg2[%c0_78, %c0_79] : memref<8x128xf32, #tpu.memory_space<vmem>>, vector<8x128xf32>
      %c0_80 = arith.constant 0 : index
      %c0_81 = arith.constant 0 : index
      %263 = vector.load %arg6[%c0_80, %c0_81] : memref<8x128xf32, #tpu.memory_space<vmem>>, vector<8x128xf32>
      tpu.vector_store %arg6[%c0_80, %c0_81], %262 {strides = array<i32>} : memref<8x128xf32, #tpu.memory_space<vmem>>, vector<8x128xf32>,
    } else {
    }
    %c0 = arith.constant 0 : index
    %c0_1 = arith.constant 0 : index
    %3 = vector.load %arg4[%c0, %c0_1] : memref<1x128xf32, #tpu.memory_space<vmem>>, vector<1x128xf32>
    %c0_2 = arith.constant 0 : index
    %c0_3 = arith.constant 0 : index
    %4 = vector.load %arg6[%c0_2, %c0_3] : memref<8x128xf32, #tpu.memory_space<vmem>>, vector<8x128xf32>
    %c0_i32_4 = arith.constant 0 : i32
    %5 = arith.index_cast %c0_i32_4 : i32 to index
    %c0_5 = arith.constant 0 : index
    %c0_6 = arith.constant 0 : index
    %6 = vector.load %arg1[%5, %c0_5, %c0_6] : memref<8x8x384xf32, #tpu.memory_space<vmem>>, vector<1x8x384xf32>
    %7 = vector.shape_cast %6 : vector<1x8x384xf32> to vector<8x384xf32>
    %8 = arith.truncf %4 : vector<8x128xf32> to vector<8x128xbf16>
    %c0_7 = arith.constant 0 : index
    %c0_8 = arith.constant 0 : index
    %9 = vector.load %arg3[%c0_7, %c0_8] : memref<128x384xbf16, #tpu.memory_space<vmem>>, vector<128x384xbf16>
    %cst = arith.constant dense<0.000000e+00> : vector<8x384xf32>
    %10 = tpu.matmul %8, %9, %cst {dimension_numbers = #tpu.dot_dimension_numbers<[1], [0], [0], [1], [0, 0, 1, 1], [], []>} : vector<8x128xbf16>, vector<128x384xbf16>, vector<8x384xf32> -> vector<8x384xf32>
    %11 = vector.extract_strided_slice %7 {offsets = [0, 0], sizes = [8, 256], strides = [1, 1]} : vector<8x384xf32> to vector<8x256xf32>
    %12 = vector.extract_strided_slice %10 {offsets = [0, 0], sizes = [8, 256], strides = [1, 1]} : vector<8x384xf32> to vector<8x256xf32>
    %13 = arith.addf %11, %12 : vector<8x256xf32>
    %14 = arith.negf %13 : vector<8x256xf32>
    %15 = math.exp %14 : vector<8x256xf32>
    %cst_9 = arith.constant 1.000000e+00 : f32
    %16 = vector.broadcast %cst_9 : f32 to vector<8x256xf32>
    %17 = arith.addf %16, %15 : vector<8x256xf32>
    %18 = arith.divf %16, %17 : vector<8x256xf32>
    %19 = vector.extract_strided_slice %18 {offsets = [0, 0], sizes = [8, 128], strides = [1, 1]} : vector<8x256xf32> to vector<8x128xf32>
    %20 = vector.extract_strided_slice %18 {offsets = [0, 128], sizes = [8, 128], strides = [1, 1]} : vector<8x256xf32> to vector<8x128xf32>
    %21 = vector.extract_strided_slice %7 {offsets = [0, 256], sizes = [8, 128], strides = [1, 1]} : vector<8x384xf32> to vector<8x128xf32>
    %22 = vector.extract_strided_slice %10 {offsets = [0, 256], sizes = [8, 128], strides = [1, 1]} : vector<8x384xf32> to vector<8x128xf32>
    %23 = vector.broadcast %3 : vector<1x128xf32> to vector<8x128xf32>
    %24 = arith.addf %22, %23 : vector<8x128xf32>
    %25 = arith.mulf %19, %24 : vector<8x128xf32>
    %26 = arith.addf %21, %25 : vector<8x128xf32>
    %27 = math.tanh %26 : vector<8x128xf32>
    %cst_10 = arith.constant 1.000000e+00 : f32
    %28 = vector.broadcast %cst_10 : f32 to vector<8x128xf32>
    %29 = arith.subf %28, %20 : vector<8x128xf32>
    %30 = arith.mulf %29, %27 : vector<8x128xf32>
    %31 = arith.mulf %20, %4 : vector<8x128xf32>
    %32 = arith.addf %30, %31 : vector<8x128xf32>
    %33 = arith.index_cast %c0_i32_4 : i32 to index
    %c0_11 = arith.constant 0 : index
    %c0_12 = arith.constant 0 : index
    %34 = vector.load %arg5[%33, %c0_11, %c0_12] : memref<8x8x128xf32, #tpu.memory_space<vmem>>, vector<1x8x128xf32>
    %35 = vector.shape_cast %34 : vector<1x8x128xf32> to vector<8x128xf32>
    %36 = vector.shape_cast %32 : vector<8x128xf32> to vector<1x8x128xf32>
    tpu.vector_store %arg5[%33, %c0_11, %c0_12], %36 {strides = array<i32>} : memref<8x8x128xf32, #tpu.memory_space<vmem>>, vector<1x8x128xf32>,
    %c1_i32 = arith.constant 1 : i32
    %37 = arith.index_cast %c1_i32 : i32 to index
    %c0_13 = arith.constant 0 : index
    %c0_14 = arith.constant 0 : index
    %38 = vector.load %arg1[%37, %c0_13, %c0_14] : memref<8x8x384xf32, #tpu.memory_space<vmem>>, vector<1x8x384xf32>
    %39 = vector.shape_cast %38 : vector<1x8x384xf32> to vector<8x384xf32>
    %40 = arith.truncf %32 : vector<8x128xf32> to vector<8x128xbf16>
    %c0_15 = arith.constant 0 : index
    %c0_16 = arith.constant 0 : index
    %41 = vector.load %arg3[%c0_15, %c0_16] : memref<128x384xbf16, #tpu.memory_space<vmem>>, vector<128x384xbf16>
    %cst_17 = arith.constant dense<0.000000e+00> : vector<8x384xf32>
    %42 = tpu.matmul %40, %41, %cst_17 {dimension_numbers = #tpu.dot_dimension_numbers<[1], [0], [0], [1], [0, 0, 1, 1], [], []>} : vector<8x128xbf16>, vector<128x384xbf16>, vector<8x384xf32> -> vector<8x384xf32>
    %43 = vector.extract_strided_slice %39 {offsets = [0, 0], sizes = [8, 256], strides = [1, 1]} : vector<8x384xf32> to vector<8x256xf32>
    %44 = vector.extract_strided_slice %42 {offsets = [0, 0], sizes = [8, 256], strides = [1, 1]} : vector<8x384xf32> to vector<8x256xf32>
    %45 = arith.addf %43, %44 : vector<8x256xf32>
    %46 = arith.negf %45 : vector<8x256xf32>
    %47 = math.exp %46 : vector<8x256xf32>
    %cst_18 = arith.constant 1.000000e+00 : f32
    %48 = vector.broadcast %cst_18 : f32 to vector<8x256xf32>
    %49 = arith.addf %48, %47 : vector<8x256xf32>
    %50 = arith.divf %48, %49 : vector<8x256xf32>
    %51 = vector.extract_strided_slice %50 {offsets = [0, 0], sizes = [8, 128], strides = [1, 1]} : vector<8x256xf32> to vector<8x128xf32>
    %52 = vector.extract_strided_slice %50 {offsets = [0, 128], sizes = [8, 128], strides = [1, 1]} : vector<8x256xf32> to vector<8x128xf32>
    %53 = vector.extract_strided_slice %39 {offsets = [0, 256], sizes = [8, 128], strides = [1, 1]} : vector<8x384xf32> to vector<8x128xf32>
    %54 = vector.extract_strided_slice %42 {offsets = [0, 256], sizes = [8, 128], strides = [1, 1]} : vector<8x384xf32> to vector<8x128xf32>
    %55 = vector.broadcast %3 : vector<1x128xf32> to vector<8x128xf32>
    %56 = arith.addf %54, %55 : vector<8x128xf32>
    %57 = arith.mulf %51, %56 : vector<8x128xf32>
    %58 = arith.addf %53, %57 : vector<8x128xf32>
    %59 = math.tanh %58 : vector<8x128xf32>
    %cst_19 = arith.constant 1.000000e+00 : f32
    %60 = vector.broadcast %cst_19 : f32 to vector<8x128xf32>
    %61 = arith.subf %60, %52 : vector<8x128xf32>
    %62 = arith.mulf %61, %59 : vector<8x128xf32>
    %63 = arith.mulf %52, %32 : vector<8x128xf32>
    %64 = arith.addf %62, %63 : vector<8x128xf32>
    %65 = arith.index_cast %c1_i32 : i32 to index
    %c0_20 = arith.constant 0 : index
    %c0_21 = arith.constant 0 : index
    %66 = vector.load %arg5[%65, %c0_20, %c0_21] : memref<8x8x128xf32, #tpu.memory_space<vmem>>, vector<1x8x128xf32>
    %67 = vector.shape_cast %66 : vector<1x8x128xf32> to vector<8x128xf32>
    %68 = vector.shape_cast %64 : vector<8x128xf32> to vector<1x8x128xf32>
    tpu.vector_store %arg5[%65, %c0_20, %c0_21], %68 {strides = array<i32>} : memref<8x8x128xf32, #tpu.memory_space<vmem>>, vector<1x8x128xf32>,
    %c2_i32 = arith.constant 2 : i32
    %69 = arith.index_cast %c2_i32 : i32 to index
    %c0_22 = arith.constant 0 : index
    %c0_23 = arith.constant 0 : index
    %70 = vector.load %arg1[%69, %c0_22, %c0_23] : memref<8x8x384xf32, #tpu.memory_space<vmem>>, vector<1x8x384xf32>
    %71 = vector.shape_cast %70 : vector<1x8x384xf32> to vector<8x384xf32>
    %72 = arith.truncf %64 : vector<8x128xf32> to vector<8x128xbf16>
    %c0_24 = arith.constant 0 : index
    %c0_25 = arith.constant 0 : index
    %73 = vector.load %arg3[%c0_24, %c0_25] : memref<128x384xbf16, #tpu.memory_space<vmem>>, vector<128x384xbf16>
    %cst_26 = arith.constant dense<0.000000e+00> : vector<8x384xf32>
    %74 = tpu.matmul %72, %73, %cst_26 {dimension_numbers = #tpu.dot_dimension_numbers<[1], [0], [0], [1], [0, 0, 1, 1], [], []>} : vector<8x128xbf16>, vector<128x384xbf16>, vector<8x384xf32> -> vector<8x384xf32>
    %75 = vector.extract_strided_slice %71 {offsets = [0, 0], sizes = [8, 256], strides = [1, 1]} : vector<8x384xf32> to vector<8x256xf32>
    %76 = vector.extract_strided_slice %74 {offsets = [0, 0], sizes = [8, 256], strides = [1, 1]} : vector<8x384xf32> to vector<8x256xf32>
    %77 = arith.addf %75, %76 : vector<8x256xf32>
    %78 = arith.negf %77 : vector<8x256xf32>
    %79 = math.exp %78 : vector<8x256xf32>
    %cst_27 = arith.constant 1.000000e+00 : f32
    %80 = vector.broadcast %cst_27 : f32 to vector<8x256xf32>
    %81 = arith.addf %80, %79 : vector<8x256xf32>
    %82 = arith.divf %80, %81 : vector<8x256xf32>
    %83 = vector.extract_strided_slice %82 {offsets = [0, 0], sizes = [8, 128], strides = [1, 1]} : vector<8x256xf32> to vector<8x128xf32>
    %84 = vector.extract_strided_slice %82 {offsets = [0, 128], sizes = [8, 128], strides = [1, 1]} : vector<8x256xf32> to vector<8x128xf32>
    %85 = vector.extract_strided_slice %71 {offsets = [0, 256], sizes = [8, 128], strides = [1, 1]} : vector<8x384xf32> to vector<8x128xf32>
    %86 = vector.extract_strided_slice %74 {offsets = [0, 256], sizes = [8, 128], strides = [1, 1]} : vector<8x384xf32> to vector<8x128xf32>
    %87 = vector.broadcast %3 : vector<1x128xf32> to vector<8x128xf32>
    %88 = arith.addf %86, %87 : vector<8x128xf32>
    %89 = arith.mulf %83, %88 : vector<8x128xf32>
    %90 = arith.addf %85, %89 : vector<8x128xf32>
    %91 = math.tanh %90 : vector<8x128xf32>
    %cst_28 = arith.constant 1.000000e+00 : f32
    %92 = vector.broadcast %cst_28 : f32 to vector<8x128xf32>
    %93 = arith.subf %92, %84 : vector<8x128xf32>
    %94 = arith.mulf %93, %91 : vector<8x128xf32>
    %95 = arith.mulf %84, %64 : vector<8x128xf32>
    %96 = arith.addf %94, %95 : vector<8x128xf32>
    %97 = arith.index_cast %c2_i32 : i32 to index
    %c0_29 = arith.constant 0 : index
    %c0_30 = arith.constant 0 : index
    %98 = vector.load %arg5[%97, %c0_29, %c0_30] : memref<8x8x128xf32, #tpu.memory_space<vmem>>, vector<1x8x128xf32>
    %99 = vector.shape_cast %98 : vector<1x8x128xf32> to vector<8x128xf32>
    %100 = vector.shape_cast %96 : vector<8x128xf32> to vector<1x8x128xf32>
    tpu.vector_store %arg5[%97, %c0_29, %c0_30], %100 {strides = array<i32>} : memref<8x8x128xf32, #tpu.memory_space<vmem>>, vector<1x8x128xf32>,
    %c3_i32 = arith.constant 3 : i32
    %101 = arith.index_cast %c3_i32 : i32 to index
    %c0_31 = arith.constant 0 : index
    %c0_32 = arith.constant 0 : index
    %102 = vector.load %arg1[%101, %c0_31, %c0_32] : memref<8x8x384xf32, #tpu.memory_space<vmem>>, vector<1x8x384xf32>
    %103 = vector.shape_cast %102 : vector<1x8x384xf32> to vector<8x384xf32>
    %104 = arith.truncf %96 : vector<8x128xf32> to vector<8x128xbf16>
    %c0_33 = arith.constant 0 : index
    %c0_34 = arith.constant 0 : index
    %105 = vector.load %arg3[%c0_33, %c0_34] : memref<128x384xbf16, #tpu.memory_space<vmem>>, vector<128x384xbf16>
    %cst_35 = arith.constant dense<0.000000e+00> : vector<8x384xf32>
    %106 = tpu.matmul %104, %105, %cst_35 {dimension_numbers = #tpu.dot_dimension_numbers<[1], [0], [0], [1], [0, 0, 1, 1], [], []>} : vector<8x128xbf16>, vector<128x384xbf16>, vector<8x384xf32> -> vector<8x384xf32>
    %107 = vector.extract_strided_slice %103 {offsets = [0, 0], sizes = [8, 256], strides = [1, 1]} : vector<8x384xf32> to vector<8x256xf32>
    %108 = vector.extract_strided_slice %106 {offsets = [0, 0], sizes = [8, 256], strides = [1, 1]} : vector<8x384xf32> to vector<8x256xf32>
    %109 = arith.addf %107, %108 : vector<8x256xf32>
    %110 = arith.negf %109 : vector<8x256xf32>
    %111 = math.exp %110 : vector<8x256xf32>
    %cst_36 = arith.constant 1.000000e+00 : f32
    %112 = vector.broadcast %cst_36 : f32 to vector<8x256xf32>
    %113 = arith.addf %112, %111 : vector<8x256xf32>
    %114 = arith.divf %112, %113 : vector<8x256xf32>
    %115 = vector.extract_strided_slice %114 {offsets = [0, 0], sizes = [8, 128], strides = [1, 1]} : vector<8x256xf32> to vector<8x128xf32>
    %116 = vector.extract_strided_slice %114 {offsets = [0, 128], sizes = [8, 128], strides = [1, 1]} : vector<8x256xf32> to vector<8x128xf32>
    %117 = vector.extract_strided_slice %103 {offsets = [0, 256], sizes = [8, 128], strides = [1, 1]} : vector<8x384xf32> to vector<8x128xf32>
    %118 = vector.extract_strided_slice %106 {offsets = [0, 256], sizes = [8, 128], strides = [1, 1]} : vector<8x384xf32> to vector<8x128xf32>
    %119 = vector.broadcast %3 : vector<1x128xf32> to vector<8x128xf32>
    %120 = arith.addf %118, %119 : vector<8x128xf32>
    %121 = arith.mulf %115, %120 : vector<8x128xf32>
    %122 = arith.addf %117, %121 : vector<8x128xf32>
    %123 = math.tanh %122 : vector<8x128xf32>
    %cst_37 = arith.constant 1.000000e+00 : f32
    %124 = vector.broadcast %cst_37 : f32 to vector<8x128xf32>
    %125 = arith.subf %124, %116 : vector<8x128xf32>
    %126 = arith.mulf %125, %123 : vector<8x128xf32>
    %127 = arith.mulf %116, %96 : vector<8x128xf32>
    %128 = arith.addf %126, %127 : vector<8x128xf32>
    %129 = arith.index_cast %c3_i32 : i32 to index
    %c0_38 = arith.constant 0 : index
    %c0_39 = arith.constant 0 : index
    %130 = vector.load %arg5[%129, %c0_38, %c0_39] : memref<8x8x128xf32, #tpu.memory_space<vmem>>, vector<1x8x128xf32>
    %131 = vector.shape_cast %130 : vector<1x8x128xf32> to vector<8x128xf32>
    %132 = vector.shape_cast %128 : vector<8x128xf32> to vector<1x8x128xf32>
    tpu.vector_store %arg5[%129, %c0_38, %c0_39], %132 {strides = array<i32>} : memref<8x8x128xf32, #tpu.memory_space<vmem>>, vector<1x8x128xf32>,
    %c4_i32 = arith.constant 4 : i32
    %133 = arith.index_cast %c4_i32 : i32 to index
    %c0_40 = arith.constant 0 : index
    %c0_41 = arith.constant 0 : index
    %134 = vector.load %arg1[%133, %c0_40, %c0_41] : memref<8x8x384xf32, #tpu.memory_space<vmem>>, vector<1x8x384xf32>
    %135 = vector.shape_cast %134 : vector<1x8x384xf32> to vector<8x384xf32>
    %136 = arith.truncf %128 : vector<8x128xf32> to vector<8x128xbf16>
    %c0_42 = arith.constant 0 : index
    %c0_43 = arith.constant 0 : index
    %137 = vector.load %arg3[%c0_42, %c0_43] : memref<128x384xbf16, #tpu.memory_space<vmem>>, vector<128x384xbf16>
    %cst_44 = arith.constant dense<0.000000e+00> : vector<8x384xf32>
    %138 = tpu.matmul %136, %137, %cst_44 {dimension_numbers = #tpu.dot_dimension_numbers<[1], [0], [0], [1], [0, 0, 1, 1], [], []>} : vector<8x128xbf16>, vector<128x384xbf16>, vector<8x384xf32> -> vector<8x384xf32>
    %139 = vector.extract_strided_slice %135 {offsets = [0, 0], sizes = [8, 256], strides = [1, 1]} : vector<8x384xf32> to vector<8x256xf32>
    %140 = vector.extract_strided_slice %138 {offsets = [0, 0], sizes = [8, 256], strides = [1, 1]} : vector<8x384xf32> to vector<8x256xf32>
    %141 = arith.addf %139, %140 : vector<8x256xf32>
    %142 = arith.negf %141 : vector<8x256xf32>
    %143 = math.exp %142 : vector<8x256xf32>
    %cst_45 = arith.constant 1.000000e+00 : f32
    %144 = vector.broadcast %cst_45 : f32 to vector<8x256xf32>
    %145 = arith.addf %144, %143 : vector<8x256xf32>
    %146 = arith.divf %144, %145 : vector<8x256xf32>
    %147 = vector.extract_strided_slice %146 {offsets = [0, 0], sizes = [8, 128], strides = [1, 1]} : vector<8x256xf32> to vector<8x128xf32>
    %148 = vector.extract_strided_slice %146 {offsets = [0, 128], sizes = [8, 128], strides = [1, 1]} : vector<8x256xf32> to vector<8x128xf32>
    %149 = vector.extract_strided_slice %135 {offsets = [0, 256], sizes = [8, 128], strides = [1, 1]} : vector<8x384xf32> to vector<8x128xf32>
    %150 = vector.extract_strided_slice %138 {offsets = [0, 256], sizes = [8, 128], strides = [1, 1]} : vector<8x384xf32> to vector<8x128xf32>
    %151 = vector.broadcast %3 : vector<1x128xf32> to vector<8x128xf32>
    %152 = arith.addf %150, %151 : vector<8x128xf32>
    %153 = arith.mulf %147, %152 : vector<8x128xf32>
    %154 = arith.addf %149, %153 : vector<8x128xf32>
    %155 = math.tanh %154 : vector<8x128xf32>
    %cst_46 = arith.constant 1.000000e+00 : f32
    %156 = vector.broadcast %cst_46 : f32 to vector<8x128xf32>
    %157 = arith.subf %156, %148 : vector<8x128xf32>
    %158 = arith.mulf %157, %155 : vector<8x128xf32>
    %159 = arith.mulf %148, %128 : vector<8x128xf32>
    %160 = arith.addf %158, %159 : vector<8x128xf32>
    %161 = arith.index_cast %c4_i32 : i32 to index
    %c0_47 = arith.constant 0 : index
    %c0_48 = arith.constant 0 : index
    %162 = vector.load %arg5[%161, %c0_47, %c0_48] : memref<8x8x128xf32, #tpu.memory_space<vmem>>, vector<1x8x128xf32>
    %163 = vector.shape_cast %162 : vector<1x8x128xf32> to vector<8x128xf32>
    %164 = vector.shape_cast %160 : vector<8x128xf32> to vector<1x8x128xf32>
    tpu.vector_store %arg5[%161, %c0_47, %c0_48], %164 {strides = array<i32>} : memref<8x8x128xf32, #tpu.memory_space<vmem>>, vector<1x8x128xf32>,
    %c5_i32 = arith.constant 5 : i32
    %165 = arith.index_cast %c5_i32 : i32 to index
    %c0_49 = arith.constant 0 : index
    %c0_50 = arith.constant 0 : index
    %166 = vector.load %arg1[%165, %c0_49, %c0_50] : memref<8x8x384xf32, #tpu.memory_space<vmem>>, vector<1x8x384xf32>
    %167 = vector.shape_cast %166 : vector<1x8x384xf32> to vector<8x384xf32>
    %168 = arith.truncf %160 : vector<8x128xf32> to vector<8x128xbf16>
    %c0_51 = arith.constant 0 : index
    %c0_52 = arith.constant 0 : index
    %169 = vector.load %arg3[%c0_51, %c0_52] : memref<128x384xbf16, #tpu.memory_space<vmem>>, vector<128x384xbf16>
    %cst_53 = arith.constant dense<0.000000e+00> : vector<8x384xf32>
    %170 = tpu.matmul %168, %169, %cst_53 {dimension_numbers = #tpu.dot_dimension_numbers<[1], [0], [0], [1], [0, 0, 1, 1], [], []>} : vector<8x128xbf16>, vector<128x384xbf16>, vector<8x384xf32> -> vector<8x384xf32>
    %171 = vector.extract_strided_slice %167 {offsets = [0, 0], sizes = [8, 256], strides = [1, 1]} : vector<8x384xf32> to vector<8x256xf32>
    %172 = vector.extract_strided_slice %170 {offsets = [0, 0], sizes = [8, 256], strides = [1, 1]} : vector<8x384xf32> to vector<8x256xf32>
    %173 = arith.addf %171, %172 : vector<8x256xf32>
    %174 = arith.negf %173 : vector<8x256xf32>
    %175 = math.exp %174 : vector<8x256xf32>
    %cst_54 = arith.constant 1.000000e+00 : f32
    %176 = vector.broadcast %cst_54 : f32 to vector<8x256xf32>
    %177 = arith.addf %176, %175 : vector<8x256xf32>
    %178 = arith.divf %176, %177 : vector<8x256xf32>
    %179 = vector.extract_strided_slice %178 {offsets = [0, 0], sizes = [8, 128], strides = [1, 1]} : vector<8x256xf32> to vector<8x128xf32>
    %180 = vector.extract_strided_slice %178 {offsets = [0, 128], sizes = [8, 128], strides = [1, 1]} : vector<8x256xf32> to vector<8x128xf32>
    %181 = vector.extract_strided_slice %167 {offsets = [0, 256], sizes = [8, 128], strides = [1, 1]} : vector<8x384xf32> to vector<8x128xf32>
    %182 = vector.extract_strided_slice %170 {offsets = [0, 256], sizes = [8, 128], strides = [1, 1]} : vector<8x384xf32> to vector<8x128xf32>
    %183 = vector.broadcast %3 : vector<1x128xf32> to vector<8x128xf32>
    %184 = arith.addf %182, %183 : vector<8x128xf32>
    %185 = arith.mulf %179, %184 : vector<8x128xf32>
    %186 = arith.addf %181, %185 : vector<8x128xf32>
    %187 = math.tanh %186 : vector<8x128xf32>
    %cst_55 = arith.constant 1.000000e+00 : f32
    %188 = vector.broadcast %cst_55 : f32 to vector<8x128xf32>
    %189 = arith.subf %188, %180 : vector<8x128xf32>
    %190 = arith.mulf %189, %187 : vector<8x128xf32>
    %191 = arith.mulf %180, %160 : vector<8x128xf32>
    %192 = arith.addf %190, %191 : vector<8x128xf32>
    %193 = arith.index_cast %c5_i32 : i32 to index
    %c0_56 = arith.constant 0 : index
    %c0_57 = arith.constant 0 : index
    %194 = vector.load %arg5[%193, %c0_56, %c0_57] : memref<8x8x128xf32, #tpu.memory_space<vmem>>, vector<1x8x128xf32>
    %195 = vector.shape_cast %194 : vector<1x8x128xf32> to vector<8x128xf32>
    %196 = vector.shape_cast %192 : vector<8x128xf32> to vector<1x8x128xf32>
    tpu.vector_store %arg5[%193, %c0_56, %c0_57], %196 {strides = array<i32>} : memref<8x8x128xf32, #tpu.memory_space<vmem>>, vector<1x8x128xf32>,
    %c6_i32 = arith.constant 6 : i32
    %197 = arith.index_cast %c6_i32 : i32 to index
    %c0_58 = arith.constant 0 : index
    %c0_59 = arith.constant 0 : index
    %198 = vector.load %arg1[%197, %c0_58, %c0_59] : memref<8x8x384xf32, #tpu.memory_space<vmem>>, vector<1x8x384xf32>
    %199 = vector.shape_cast %198 : vector<1x8x384xf32> to vector<8x384xf32>
    %200 = arith.truncf %192 : vector<8x128xf32> to vector<8x128xbf16>
    %c0_60 = arith.constant 0 : index
    %c0_61 = arith.constant 0 : index
    %201 = vector.load %arg3[%c0_60, %c0_61] : memref<128x384xbf16, #tpu.memory_space<vmem>>, vector<128x384xbf16>
    %cst_62 = arith.constant dense<0.000000e+00> : vector<8x384xf32>
    %202 = tpu.matmul %200, %201, %cst_62 {dimension_numbers = #tpu.dot_dimension_numbers<[1], [0], [0], [1], [0, 0, 1, 1], [], []>} : vector<8x128xbf16>, vector<128x384xbf16>, vector<8x384xf32> -> vector<8x384xf32>
    %203 = vector.extract_strided_slice %199 {offsets = [0, 0], sizes = [8, 256], strides = [1, 1]} : vector<8x384xf32> to vector<8x256xf32>
    %204 = vector.extract_strided_slice %202 {offsets = [0, 0], sizes = [8, 256], strides = [1, 1]} : vector<8x384xf32> to vector<8x256xf32>
    %205 = arith.addf %203, %204 : vector<8x256xf32>
    %206 = arith.negf %205 : vector<8x256xf32>
    %207 = math.exp %206 : vector<8x256xf32>
    %cst_63 = arith.constant 1.000000e+00 : f32
    %208 = vector.broadcast %cst_63 : f32 to vector<8x256xf32>
    %209 = arith.addf %208, %207 : vector<8x256xf32>
    %210 = arith.divf %208, %209 : vector<8x256xf32>
    %211 = vector.extract_strided_slice %210 {offsets = [0, 0], sizes = [8, 128], strides = [1, 1]} : vector<8x256xf32> to vector<8x128xf32>
    %212 = vector.extract_strided_slice %210 {offsets = [0, 128], sizes = [8, 128], strides = [1, 1]} : vector<8x256xf32> to vector<8x128xf32>
    %213 = vector.extract_strided_slice %199 {offsets = [0, 256], sizes = [8, 128], strides = [1, 1]} : vector<8x384xf32> to vector<8x128xf32>
    %214 = vector.extract_strided_slice %202 {offsets = [0, 256], sizes = [8, 128], strides = [1, 1]} : vector<8x384xf32> to vector<8x128xf32>
    %215 = vector.broadcast %3 : vector<1x128xf32> to vector<8x128xf32>
    %216 = arith.addf %214, %215 : vector<8x128xf32>
    %217 = arith.mulf %211, %216 : vector<8x128xf32>
    %218 = arith.addf %213, %217 : vector<8x128xf32>
    %219 = math.tanh %218 : vector<8x128xf32>
    %cst_64 = arith.constant 1.000000e+00 : f32
    %220 = vector.broadcast %cst_64 : f32 to vector<8x128xf32>
    %221 = arith.subf %220, %212 : vector<8x128xf32>
    %222 = arith.mulf %221, %219 : vector<8x128xf32>
    %223 = arith.mulf %212, %192 : vector<8x128xf32>
    %224 = arith.addf %222, %223 : vector<8x128xf32>
    %225 = arith.index_cast %c6_i32 : i32 to index
    %c0_65 = arith.constant 0 : index
    %c0_66 = arith.constant 0 : index
    %226 = vector.load %arg5[%225, %c0_65, %c0_66] : memref<8x8x128xf32, #tpu.memory_space<vmem>>, vector<1x8x128xf32>
    %227 = vector.shape_cast %226 : vector<1x8x128xf32> to vector<8x128xf32>
    %228 = vector.shape_cast %224 : vector<8x128xf32> to vector<1x8x128xf32>
    tpu.vector_store %arg5[%225, %c0_65, %c0_66], %228 {strides = array<i32>} : memref<8x8x128xf32, #tpu.memory_space<vmem>>, vector<1x8x128xf32>,
    %c7_i32 = arith.constant 7 : i32
    %229 = arith.index_cast %c7_i32 : i32 to index
    %c0_67 = arith.constant 0 : index
    %c0_68 = arith.constant 0 : index
    %230 = vector.load %arg1[%229, %c0_67, %c0_68] : memref<8x8x384xf32, #tpu.memory_space<vmem>>, vector<1x8x384xf32>
    %231 = vector.shape_cast %230 : vector<1x8x384xf32> to vector<8x384xf32>
    %232 = arith.truncf %224 : vector<8x128xf32> to vector<8x128xbf16>
    %c0_69 = arith.constant 0 : index
    %c0_70 = arith.constant 0 : index
    %233 = vector.load %arg3[%c0_69, %c0_70] : memref<128x384xbf16, #tpu.memory_space<vmem>>, vector<128x384xbf16>
    %cst_71 = arith.constant dense<0.000000e+00> : vector<8x384xf32>
    %234 = tpu.matmul %232, %233, %cst_71 {dimension_numbers = #tpu.dot_dimension_numbers<[1], [0], [0], [1], [0, 0, 1, 1], [], []>} : vector<8x128xbf16>, vector<128x384xbf16>, vector<8x384xf32> -> vector<8x384xf32>
    %235 = vector.extract_strided_slice %231 {offsets = [0, 0], sizes = [8, 256], strides = [1, 1]} : vector<8x384xf32> to vector<8x256xf32>
    %236 = vector.extract_strided_slice %234 {offsets = [0, 0], sizes = [8, 256], strides = [1, 1]} : vector<8x384xf32> to vector<8x256xf32>
    %237 = arith.addf %235, %236 : vector<8x256xf32>
    %238 = arith.negf %237 : vector<8x256xf32>
    %239 = math.exp %238 : vector<8x256xf32>
    %cst_72 = arith.constant 1.000000e+00 : f32
    %240 = vector.broadcast %cst_72 : f32 to vector<8x256xf32>
    %241 = arith.addf %240, %239 : vector<8x256xf32>
    %242 = arith.divf %240, %241 : vector<8x256xf32>
    %243 = vector.extract_strided_slice %242 {offsets = [0, 0], sizes = [8, 128], strides = [1, 1]} : vector<8x256xf32> to vector<8x128xf32>
    %244 = vector.extract_strided_slice %242 {offsets = [0, 128], sizes = [8, 128], strides = [1, 1]} : vector<8x256xf32> to vector<8x128xf32>
    %245 = vector.extract_strided_slice %231 {offsets = [0, 256], sizes = [8, 128], strides = [1, 1]} : vector<8x384xf32> to vector<8x128xf32>
    %246 = vector.extract_strided_slice %234 {offsets = [0, 256], sizes = [8, 128], strides = [1, 1]} : vector<8x384xf32> to vector<8x128xf32>
    %247 = vector.broadcast %3 : vector<1x128xf32> to vector<8x128xf32>
    %248 = arith.addf %246, %247 : vector<8x128xf32>
    %249 = arith.mulf %243, %248 : vector<8x128xf32>
    %250 = arith.addf %245, %249 : vector<8x128xf32>
    %251 = math.tanh %250 : vector<8x128xf32>
    %cst_73 = arith.constant 1.000000e+00 : f32
    %252 = vector.broadcast %cst_73 : f32 to vector<8x128xf32>
    %253 = arith.subf %252, %244 : vector<8x128xf32>
    %254 = arith.mulf %253, %251 : vector<8x128xf32>
    %255 = arith.mulf %244, %224 : vector<8x128xf32>
    %256 = arith.addf %254, %255 : vector<8x128xf32>
    %257 = arith.index_cast %c7_i32 : i32 to index
    %c0_74 = arith.constant 0 : index
    %c0_75 = arith.constant 0 : index
    %258 = vector.load %arg5[%257, %c0_74, %c0_75] : memref<8x8x128xf32, #tpu.memory_space<vmem>>, vector<1x8x128xf32>
    %259 = vector.shape_cast %258 : vector<1x8x128xf32> to vector<8x128xf32>
    %260 = vector.shape_cast %256 : vector<8x128xf32> to vector<1x8x128xf32>
    tpu.vector_store %arg5[%257, %c0_74, %c0_75], %260 {strides = array<i32>} : memref<8x8x128xf32, #tpu.memory_space<vmem>>, vector<1x8x128xf32>,
    %c8_i32 = arith.constant 8 : i32
    %c0_76 = arith.constant 0 : index
    %c0_77 = arith.constant 0 : index
    %261 = vector.load %arg6[%c0_76, %c0_77] : memref<8x128xf32, #tpu.memory_space<vmem>>, vector<8x128xf32>
    tpu.vector_store %arg6[%c0_76, %c0_77], %256 {strides = array<i32>} : memref<8x128xf32, #tpu.memory_space<vmem>>, vector<8x128xf32>,
    return
  }
  func.func @transform_0(%arg0: i32) -> (i32, i32, i32) {
    %c0_i32 = arith.constant 0 : i32
    %c0_i32_0 = arith.constant 0 : i32
    %c0_i32_1 = arith.constant 0 : i32
    return %arg0, %c0_i32, %c0_i32_0 : i32, i32, i32
  }
  func.func @transform_1(%arg0: i32) -> (i32, i32) {
    %c0_i32 = arith.constant 0 : i32
    %c0_i32_0 = arith.constant 0 : i32
    %c0_i32_1 = arith.constant 0 : i32
    return %c0_i32, %c0_i32_0 : i32, i32
  }
  func.func @transform_2(%arg0: i32) -> (i32, i32) {
    %c0_i32 = arith.constant 0 : i32
    %c0_i32_0 = arith.constant 0 : i32
    %c0_i32_1 = arith.constant 0 : i32
    return %c0_i32, %c0_i32_0 : i32, i32
  }
  func.func @transform_3(%arg0: i32) -> (i32, i32) {
    %c0_i32 = arith.constant 0 : i32
    %c0_i32_0 = arith.constant 0 : i32
    %c0_i32_1 = arith.constant 0 : i32
    return %c0_i32, %c0_i32_0 : i32, i32
  }
  func.func @transform_4(%arg0: i32) -> (i32, i32, i32) {
    %c0_i32 = arith.constant 0 : i32
    %c0_i32_0 = arith.constant 0 : i32
    %c0_i32_1 = arith.constant 0 : i32
    return %arg0, %c0_i32, %c0_i32_0 : i32, i32, i32
  }
  func.func @transform_5(%arg0: i32) -> (i32, i32) {
    %c0_i32 = arith.constant 0 : i32
    %c0_i32_0 = arith.constant 0 : i32
    %c0_i32_1 = arith.constant 0 : i32
    return %c0_i32, %c0_i32_0 : i32, i32
  }
}

module attributes {stable_mosaic.version = 11 : i64} {
  func.func @_matmul_bias_kernel(%arg0: i32, %arg1: i32, %arg2: i32, %arg3: memref<64x128xbf16, #tpu.memory_space<vmem>>, %arg4: memref<128x128xbf16, #tpu.memory_space<vmem>>, %arg5: memref<1x128xf32, #tpu.memory_space<vmem>>, %arg6: memref<64x128xf32, #tpu.memory_space<vmem>>, %arg7: memref<64x128xf32, #tpu.memory_space<vmem>>) attributes {dimension_semantics = [#tpu.dimension_semantics<parallel>, #tpu.dimension_semantics<parallel>, #tpu.dimension_semantics<arbitrary>], iteration_bounds = array<i64: 1, 1, 1>, scalar_prefetch = 0 : i64, scratch_operands = 1 : i64, tpu.core_type = #tpu.core_type<tc>, window_params = [{transform_indices = @transform_0, window_bounds = array<i64: 64, 128>}, {transform_indices = @transform_1, window_bounds = array<i64: 128, 128>}, {transform_indices = @transform_2, window_bounds = array<i64: 1, 128>}, {transform_indices = @transform_3, window_bounds = array<i64: 64, 128>}]} {
    %c0_i32 = arith.constant 0 : i32
    %0 = arith.cmpi eq, %arg2, %c0_i32 : i32
    %1 = arith.extui %0 : i1 to i32
    %c0_i32_0 = arith.constant 0 : i32
    %2 = arith.cmpi ne, %1, %c0_i32_0 : i32
    scf.if %2 {
      %cst_10 = arith.constant 0.000000e+00 : f32
      %12 = vector.broadcast %cst_10 : f32 to vector<64x128xf32>
      %c0_11 = arith.constant 0 : index
      %c0_12 = arith.constant 0 : index
      %13 = vector.load %arg7[%c0_11, %c0_12] : memref<64x128xf32, #tpu.memory_space<vmem>>, vector<64x128xf32>
      tpu.vector_store %arg7[%c0_11, %c0_12], %12 {strides = array<i32>} : memref<64x128xf32, #tpu.memory_space<vmem>>, vector<64x128xf32>,
    } else {
    }
    %c0 = arith.constant 0 : index
    %c0_1 = arith.constant 0 : index
    %3 = vector.load %arg7[%c0, %c0_1] : memref<64x128xf32, #tpu.memory_space<vmem>>, vector<64x128xf32>
    %c0_2 = arith.constant 0 : index
    %c0_3 = arith.constant 0 : index
    %4 = vector.load %arg3[%c0_2, %c0_3] : memref<64x128xbf16, #tpu.memory_space<vmem>>, vector<64x128xbf16>
    %c0_4 = arith.constant 0 : index
    %c0_5 = arith.constant 0 : index
    %5 = vector.load %arg4[%c0_4, %c0_5] : memref<128x128xbf16, #tpu.memory_space<vmem>>, vector<128x128xbf16>
    %cst = arith.constant dense<0.000000e+00> : vector<64x128xf32>
    %6 = tpu.matmul %4, %5, %cst {dimension_numbers = #tpu.dot_dimension_numbers<[1], [0], [0], [1], [0, 0, 1, 1], [], []>} : vector<64x128xbf16>, vector<128x128xbf16>, vector<64x128xf32> -> vector<64x128xf32>
    %7 = arith.addf %3, %6 : vector<64x128xf32>
    %c0_6 = arith.constant 0 : index
    %c0_7 = arith.constant 0 : index
    %8 = vector.load %arg7[%c0_6, %c0_7] : memref<64x128xf32, #tpu.memory_space<vmem>>, vector<64x128xf32>
    tpu.vector_store %arg7[%c0_6, %c0_7], %7 {strides = array<i32>} : memref<64x128xf32, #tpu.memory_space<vmem>>, vector<64x128xf32>,
    %c0_i32_8 = arith.constant 0 : i32
    %9 = arith.cmpi eq, %arg2, %c0_i32_8 : i32
    %10 = arith.extui %9 : i1 to i32
    %c0_i32_9 = arith.constant 0 : i32
    %11 = arith.cmpi ne, %10, %c0_i32_9 : i32
    scf.if %11 {
      %c0_10 = arith.constant 0 : index
      %c0_11 = arith.constant 0 : index
      %12 = vector.load %arg7[%c0_10, %c0_11] : memref<64x128xf32, #tpu.memory_space<vmem>>, vector<64x128xf32>
      %c0_12 = arith.constant 0 : index
      %c0_13 = arith.constant 0 : index
      %13 = vector.load %arg5[%c0_12, %c0_13] : memref<1x128xf32, #tpu.memory_space<vmem>>, vector<1x128xf32>
      %14 = vector.broadcast %13 : vector<1x128xf32> to vector<64x128xf32>
      %15 = arith.addf %12, %14 : vector<64x128xf32>
      %c0_14 = arith.constant 0 : index
      %c0_15 = arith.constant 0 : index
      %16 = vector.load %arg6[%c0_14, %c0_15] : memref<64x128xf32, #tpu.memory_space<vmem>>, vector<64x128xf32>
      tpu.vector_store %arg6[%c0_14, %c0_15], %15 {strides = array<i32>} : memref<64x128xf32, #tpu.memory_space<vmem>>, vector<64x128xf32>,
    } else {
    }
    return
  }
  func.func @transform_0(%arg0: i32, %arg1: i32, %arg2: i32) -> (i32, i32) {
    %c0_i32 = arith.constant 0 : i32
    return %arg0, %arg2 : i32, i32
  }
  func.func @transform_1(%arg0: i32, %arg1: i32, %arg2: i32) -> (i32, i32) {
    %c0_i32 = arith.constant 0 : i32
    return %arg2, %arg1 : i32, i32
  }
  func.func @transform_2(%arg0: i32, %arg1: i32, %arg2: i32) -> (i32, i32) {
    %c0_i32 = arith.constant 0 : i32
    %c0_i32_0 = arith.constant 0 : i32
    return %c0_i32, %arg1 : i32, i32
  }
  func.func @transform_3(%arg0: i32, %arg1: i32, %arg2: i32) -> (i32, i32) {
    %c0_i32 = arith.constant 0 : i32
    return %arg0, %arg1 : i32, i32
  }
}

</mosaic_0001>

<llo_original>
// kernel: decoder_forward.5
$region0: #{decoder_forward.5}
  #allocation0 [shape = 'u32[]', space=smem, size = 0x4, offset = 0x4, fixed_abs, tag = 'smem constant byte address 0x4 - core index']
  #allocation1 [shape = 'u32[72,128]{1,0:T(1,128)}', space=vmem, size = 0x9000, scoped, tag = 'internal scratch']
  #allocation2 [shape = 'f32[64,128]{1,0:T(8,128)}', space=vmem, size = 0x8000, scoped, tag = 'scratch operand']
  %s0 = inlined_call_operand.vmem [shape: bf16[64,128], index: 0, kind: input, shape index: {}]
  %s1 = inlined_call_operand.vmem [shape: bf16[128,128], index: 1, kind: input, shape index: {}]
  %s2 = inlined_call_operand.vmem [shape: f32[1,128], index: 2, kind: input, shape index: {}]
  %s3 = inlined_call_operand.vmem [shape: f32[64,128], index: 3, kind: output, shape index: {}]
  %s4 = sld [smem:[#allocation0]]
  $region30: #{decoder_forward.5} parent=0
    _
  %s6 = ssub.s32 1, %s4
  %s7 = scalar_select 0, %s6, %s4
  // Predicated region
  $region2: #{decoder_forward.5} parent=0 // pred_check
    _
  $region3: #{decoder_forward.5} parent=0 // pred_check_branch
    %9 = sbr.rel (0) target = $region5
  $region4: #{decoder_forward.5} parent=0 // pred_region
    _
  $region5: #{decoder_forward.5} parent=0 // pred_fallthru
    _
  // Predicated region
  $region6: #{decoder_forward.5} parent=0 // pred_check
    _
  $region7: #{decoder_forward.5} parent=0 // pred_check_branch
    %11 = sbr.rel (0) target = $region9
  $region8: #{decoder_forward.5} parent=0 // pred_region
    _
  $region9: #{decoder_forward.5} parent=0 // pred_fallthru
    _
  // Predicated region
  $region10: #{decoder_forward.5} parent=0 // pred_check
    _
  $region11: #{decoder_forward.5} parent=0 // pred_check_branch
    %13 = sbr.rel (0) target = $region13
  $region12: #{decoder_forward.5} parent=0 // pred_region
    _
  $region13: #{decoder_forward.5} parent=0 // pred_fallthru
    _
  %p14 = scmp.eq.s32.totalorder 0, 0
  // Predicated region
  $region14: #{decoder_forward.5} parent=0 // pred_check
    %p15 = pneg %p14
  $region15: #{decoder_forward.5} parent=0 // pred_check_branch
    %17 = sbr.rel (%p15) target = $region17
  $region16: #{decoder_forward.5} parent=0 // pred_region
    %18 = vst [vmem:[#allocation2] sm:$0xff] 0.0
    %19 = vst [vmem:[#allocation2 + $0x8] sm:$0xff] 0.0
    %20 = vst [vmem:[#allocation2 + $0x10] sm:$0xff] 0.0
    %21 = vst [vmem:[#allocation2 + $0x18] sm:$0xff] 0.0
    %22 = vst [vmem:[#allocation2 + $0x20] sm:$0xff] 0.0
    %23 = vst [vmem:[#allocation2 + $0x28] sm:$0xff] 0.0
    %24 = vst [vmem:[#allocation2 + $0x30] sm:$0xff] 0.0
    %25 = vst [vmem:[#allocation2 + $0x38] sm:$0xff] 0.0
  $region17: #{decoder_forward.5} parent=0 // pred_fallthru
    _
  %v26 = vld [vmem:[#allocation2] sm:$0xff]
  %v27 = vld [vmem:[#allocation2 + $0x8] sm:$0xff]
  %v28 = vld [vmem:[#allocation2 + $0x10] sm:$0xff]
  %v29 = vld [vmem:[#allocation2 + $0x18] sm:$0xff]
  %v30 = vld [vmem:[#allocation2 + $0x20] sm:$0xff]
  %v31 = vld [vmem:[#allocation2 + $0x28] sm:$0xff]
  %v32 = vld [vmem:[#allocation2 + $0x30] sm:$0xff]
  %v33 = vld [vmem:[#allocation2 + $0x38] sm:$0xff]
  %v34 = vld [vmem:[%s0] sm:$0xf]
  %v35 = vld [vmem:[%s0 + $0x4] sm:$0xf]
  %v36 = vld [vmem:[%s0 + $0x8] sm:$0xf]
  %v37 = vld [vmem:[%s0 + $0xc] sm:$0xf]
  %v38 = vld [vmem:[%s0 + $0x10] sm:$0xf]
  %v39 = vld [vmem:[%s0 + $0x14] sm:$0xf]
  %v40 = vld [vmem:[%s0 + $0x18] sm:$0xf]
  %v41 = vld [vmem:[%s0 + $0x1c] sm:$0xf]
  %v42 = vld [vmem:[%s1] sm:$0xf]
  %v43 = vld [vmem:[%s1 + $0x4] sm:$0xf]
  %v44 = vld [vmem:[%s1 + $0x8] sm:$0xf]
  %v45 = vld [vmem:[%s1 + $0xc] sm:$0xf]
  %v46 = vld [vmem:[%s1 + $0x10] sm:$0xf]
  %v47 = vld [vmem:[%s1 + $0x14] sm:$0xf]
  %v48 = vld [vmem:[%s1 + $0x18] sm:$0xf]
  %v49 = vld [vmem:[%s1 + $0x1c] sm:$0xf]
  %v50 = vld [vmem:[%s1 + $0x20] sm:$0xf]
  %v51 = vld [vmem:[%s1 + $0x24] sm:$0xf]
  %v52 = vld [vmem:[%s1 + $0x28] sm:$0xf]
  %v53 = vld [vmem:[%s1 + $0x2c] sm:$0xf]
  %v54 = vld [vmem:[%s1 + $0x30] sm:$0xf]
  %v55 = vld [vmem:[%s1 + $0x34] sm:$0xf]
  %v56 = vld [vmem:[%s1 + $0x38] sm:$0xf]
  %v57 = vld [vmem:[%s1 + $0x3c] sm:$0xf]
  %v66 = vunpack.c.l.b16 %v34
  %v67 = vunpack.c.l.b16 %v35
  %v68 = vunpack.c.l.b16 %v36
  %v69 = vunpack.c.l.b16 %v37
  %v70 = vunpack.c.l.b16 %v38
  %v71 = vunpack.c.l.b16 %v39
  %v72 = vunpack.c.l.b16 %v40
  %v73 = vunpack.c.l.b16 %v41
  %v74 = vpack.c.b16 %v67, %v66
  %v75 = vpack.c.b16 %v69, %v68
  %v76 = vpack.c.b16 %v71, %v70
  %v77 = vpack.c.b16 %v73, %v72
  %v98 = vunpack.c.l.b16 %v42
  %v99 = vunpack.c.l.b16 %v43
  %v100 = vunpack.c.l.b16 %v44
  %v101 = vunpack.c.l.b16 %v45
  %v102 = vunpack.c.l.b16 %v46
  %v103 = vunpack.c.l.b16 %v47
  %v104 = vunpack.c.l.b16 %v48
  %v105 = vunpack.c.l.b16 %v49
  %v106 = vunpack.c.l.b16 %v50
  %v107 = vunpack.c.l.b16 %v51
  %v108 = vunpack.c.l.b16 %v52
  %v109 = vunpack.c.l.b16 %v53
  %v110 = vunpack.c.l.b16 %v54
  %v111 = vunpack.c.l.b16 %v55
  %v112 = vunpack.c.l.b16 %v56
  %v113 = vunpack.c.l.b16 %v57
  %v114 = vpack.c.b16 %v99, %v98
  %v115 = vpack.c.b16 %v101, %v100
  %v116 = vpack.c.b16 %v103, %v102
  %v117 = vpack.c.b16 %v105, %v104
  %v118 = vpack.c.b16 %v107, %v106
  %v119 = vpack.c.b16 %v109, %v108
  %v120 = vpack.c.b16 %v111, %v110
  %v121 = vpack.c.b16 %v113, %v112
  %130 = vmatpush.bf16.msra.mxu0 %v121
  %131 = vmatpush.bf16.msra.mxu0 %v120
  %132 = vmatpush.bf16.msra.mxu0 %v119
  %133 = vmatpush.bf16.msra.mxu0 %v118
  %134 = vmatpush.bf16.msra.mxu0 %v117
  %135 = vmatpush.bf16.msra.mxu0 %v116
  %136 = vmatpush.bf16.msra.mxu0 %v115
  %137 = vmatpush.bf16.msra.mxu0 %v114
  %138 = vmatmul.bf16.gmra.mxu0 %v74
  %v139 = vpop.f32.mrf.mxu0
  %v140 = vadd.f32 0.0, %v139
  %v141 = vpop.f32.mrf.mxu0
  %v142 = vadd.f32 0.0, %v141
  %143 = vmatmul.bf16.gmra.mxu0 %v75
  %v144 = vpop.f32.mrf.mxu0
  %v145 = vadd.f32 0.0, %v144
  %v146 = vpop.f32.mrf.mxu0
  %v147 = vadd.f32 0.0, %v146
  %148 = vmatmul.bf16.gmra.mxu0 %v76
  %v149 = vpop.f32.mrf.mxu0
  %v150 = vadd.f32 0.0, %v149
  %v151 = vpop.f32.mrf.mxu0
  %v152 = vadd.f32 0.0, %v151
  %153 = vmatmul.bf16.gmra.mxu0 %v77
  %v154 = vpop.f32.mrf.mxu0
  %v155 = vadd.f32 0.0, %v154
  %v156 = vpop.f32.mrf.mxu0
  %v157 = vadd.f32 0.0, %v156
  %158 = vdwg.mxu0
  %v159 = vadd.f32 %v26, %v140
  %v160 = vadd.f32 %v27, %v142
  %v161 = vadd.f32 %v28, %v145
  %v162 = vadd.f32 %v29, %v147
  %v163 = vadd.f32 %v30, %v150
  %v164 = vadd.f32 %v31, %v152
  %v165 = vadd.f32 %v32, %v155
  %v166 = vadd.f32 %v33, %v157
  %167 = vst [vmem:[#allocation2] sm:$0xff] %v159
  %168 = vst [vmem:[#allocation2 + $0x8] sm:$0xff] %v160
  %169 = vst [vmem:[#allocation2 + $0x10] sm:$0xff] %v161
  %170 = vst [vmem:[#allocation2 + $0x18] sm:$0xff] %v162
  %171 = vst [vmem:[#allocation2 + $0x20] sm:$0xff] %v163
  %172 = vst [vmem:[#allocation2 + $0x28] sm:$0xff] %v164
  %173 = vst [vmem:[#allocation2 + $0x30] sm:$0xff] %v165
  %174 = vst [vmem:[#allocation2 + $0x38] sm:$0xff] %v166
  // Predicated region
  $region18: #{decoder_forward.5} parent=0 // pred_check
    %p175 = pneg %p14
  $region19: #{decoder_forward.5} parent=0 // pred_check_branch
    %177 = sbr.rel (%p175) target = $region21
  $region20: #{decoder_forward.5} parent=0 // pred_region
    %v178 = vld [vmem:[#allocation2] sm:$0xff]
    %v179 = vld [vmem:[#allocation2 + $0x8] sm:$0xff]
    %v180 = vld [vmem:[#allocation2 + $0x10] sm:$0xff]
    %v181 = vld [vmem:[#allocation2 + $0x18] sm:$0xff]
    %v182 = vld [vmem:[#allocation2 + $0x20] sm:$0xff]
    %v183 = vld [vmem:[#allocation2 + $0x28] sm:$0xff]
    %v184 = vld [vmem:[#allocation2 + $0x30] sm:$0xff]
    %v185 = vld [vmem:[#allocation2 + $0x38] sm:$0xff]
    %v186 = vld [vmem:[%s2] sm:$0x1]
    %v188 = vperm.slane %v186, 0
    %v190 = vadd.f32 %v178, %v188
    %v191 = vadd.f32 %v179, %v188
    %v192 = vadd.f32 %v180, %v188
    %v193 = vadd.f32 %v181, %v188
    %v194 = vadd.f32 %v182, %v188
    %v195 = vadd.f32 %v183, %v188
    %v196 = vadd.f32 %v184, %v188
    %v197 = vadd.f32 %v185, %v188
    %198 = vst [vmem:[%s3] sm:$0xff] %v190
    %199 = vst [vmem:[%s3 + $0x8] sm:$0xff] %v191
    %200 = vst [vmem:[%s3 + $0x10] sm:$0xff] %v192
    %201 = vst [vmem:[%s3 + $0x18] sm:$0xff] %v193
    %202 = vst [vmem:[%s3 + $0x20] sm:$0xff] %v194
    %203 = vst [vmem:[%s3 + $0x28] sm:$0xff] %v195
    %204 = vst [vmem:[%s3 + $0x30] sm:$0xff] %v196
    %205 = vst [vmem:[%s3 + $0x38] sm:$0xff] %v197
  $region21: #{decoder_forward.5} parent=0 // pred_fallthru
    _
  // Predicated region
  $region22: #{decoder_forward.5} parent=0 // pred_check
    _
  $region23: #{decoder_forward.5} parent=0 // pred_check_branch
    %207 = sbr.rel (0) target = $region25
  $region24: #{decoder_forward.5} parent=0 // pred_region
    _
  $region25: #{decoder_forward.5} parent=0 // pred_fallthru
    _
  // Predicated region
  $region26: #{decoder_forward.5} parent=0 // pred_check
    _
  $region27: #{decoder_forward.5} parent=0 // pred_check_branch
    %209 = sbr.rel (0) target = $region29
  $region28: #{decoder_forward.5} parent=0 // pred_region
    _
  $region29: #{decoder_forward.5} parent=0 // pred_fallthru
    _

// kernel: decoder_forward.3
$region0: #{decoder_forward.3}
  #allocation0 [shape = 'u32[]', space=smem, size = 0x4, offset = 0x4, fixed_abs, tag = 'smem constant byte address 0x4 - core index']
  #allocation1 [shape = 'u32[72,128]{1,0:T(1,128)}', space=vmem, size = 0x9000, scoped, tag = 'internal scratch']
  #allocation2 [shape = 'f32[64,128]{1,0:T(8,128)}', space=vmem, size = 0x8000, scoped, tag = 'scratch operand']
  %s0 = inlined_call_operand.vmem [shape: bf16[64,128], index: 0, kind: input, shape index: {}]
  %s1 = inlined_call_operand.vmem [shape: bf16[128,384], index: 1, kind: input, shape index: {}]
  %s2 = inlined_call_operand.vmem [shape: f32[1,384], index: 2, kind: input, shape index: {}]
  %s3 = inlined_call_operand.vmem [shape: f32[64,384], index: 3, kind: output, shape index: {}]
  %s4 = sld [smem:[#allocation0]]
  $region128: #{decoder_forward.3} parent=0
    _
  %s6 = ssub.s32 1, %s4
  %s7 = scalar_select 0, %s6, %s4
  $region1: #{decoder_forward.3} parent=0
    #allocation3 [shape = 'u8[65536]{0}', space=vmem, size = 0x10000, scoped, tag = 'input window, operand 1']
    #allocation4 [shape = 'u8[65536]{0}', space=vmem, size = 0x10000, scoped, tag = 'output window, operand 0']
    loop: start=0, step=1, limit=5
    $region2: #{decoder_forward.3} parent=1 // loop_pre_header
      _
    $region3: #{decoder_forward.3} parent=1 // loop_header
      %s9 = sphi 0, %s13
      %p10 = scmp.ge.s32.totalorder %s9, 5
      %s16 = sphi 0, %s35
      %s17 = sphi 0, %s31
      %s18 = sphi 0, %s27
      %s19 = sphi 0, %s16
      %s20 = sphi 0, %s17
      %s21 = sphi 0, %s18
      %s22 = sphi 0, %s19
      %s23 = sphi 0, %s20
      %s24 = sphi 0, %s21
      %s40 = sphi 0, %s42
      %s43 = sphi 0, %s40
      %s44 = sphi 0, %s43
      %s60 = sphi 0, %s44
      %s68 = sphi 0, %s70
      %s71 = sphi 0, %s68
      %s72 = sphi 0, %s71
      %s88 = sphi 0, %s72
      %s94 = sphi 0, %s96
      %s97 = sphi 0, %s94
      %s98 = sphi 0, %s97
      %s114 = sphi 0, %s98
      %s122 = sphi 0, %s124
      %s125 = sphi 0, %s122
      %s126 = sphi 0, %s125
      %s142 = sphi 0, %s126
    $region4: #{decoder_forward.3} parent=1 // loop_header_branch
      %12 = sbr.rel (%p10) target = $region8
    $region5: #{decoder_forward.3} parent=1 // loop_body
      %s14 = ssub.s32 %s9, 1
      %s15 = ssub.s32 %s9, 2
      %s25 = sadd.s32 1, %s18
      %p26 = scmp.ge.s32.totalorder %s25, 1
      %s27 = scalar_select %p26, 0, %s25
      %s28 = sadd.s32 1, %s17
      %s29 = scalar_select %p26, %s28, %s17
      %p30 = scmp.ge.s32.totalorder %s29, 3
      %s31 = scalar_select %p30, 0, %s29
      %s32 = sadd.s32 1, %s16
      %s33 = scalar_select %p30, %s32, %s16
      %p34 = scmp.ge.s32.totalorder %s33, 1
      %s35 = scalar_select %p34, 0, %s33
      %s36 = ssub.s32 %s16, %s35
      %s37 = ssub.s32 %s18, %s27
      %s38 = sor.u32 %s36, %s37
      %p39 = scmp.eq.s32.totalorder %s38, 0
      %s41 = sadd.s32 %s40, 1
      %s42 = scalar_select %p39, %s40, %s41
      %p45 = pneg %p39
      %p46 = scmp.eq.s32.totalorder %s9, 2
      %p47 = por %p45, %p46
      %p48 = scmp.ne.s32.totalorder %s40, %s43
      %p49 = scmp.eq.s32.totalorder %s9, 0
      %p50 = por %p48, %p49
      %p51 = scmp.ne.s32.totalorder %s40, %s43
      %p52 = scmp.eq.s32.totalorder %s14, 2
      %p53 = por %p51, %p52
      %p54 = scmp.ne.s32.totalorder %s43, %s44
      %p55 = scmp.eq.s32.totalorder %s14, 0
      %p56 = por %p54, %p55
      %p57 = scmp.ne.s32.totalorder %s43, %s44
      %p58 = scmp.eq.s32.totalorder %s15, 2
      %p59 = por %p57, %p58
      %p61 = scmp.ne.s32.totalorder %s44, %s60
      %p62 = scmp.eq.s32.totalorder %s15, 0
      %p63 = por %p61, %p62
      %s64 = ssub.s32 %s18, %s27
      %s65 = ssub.s32 %s17, %s31
      %s66 = sor.u32 %s64, %s65
      %p67 = scmp.eq.s32.totalorder %s66, 0
      %s69 = sadd.s32 %s68, 1
      %s70 = scalar_select %p67, %s68, %s69
      %p73 = pneg %p67
      %p74 = scmp.eq.s32.totalorder %s9, 2
      %p75 = por %p73, %p74
      %p76 = scmp.ne.s32.totalorder %s68, %s71
      %p77 = scmp.eq.s32.totalorder %s9, 0
      %p78 = por %p76, %p77
      %p79 = scmp.ne.s32.totalorder %s68, %s71
      %p80 = scmp.eq.s32.totalorder %s14, 2
      %p81 = por %p79, %p80
      %p82 = scmp.ne.s32.totalorder %s71, %s72
      %p83 = scmp.eq.s32.totalorder %s14, 0
      %p84 = por %p82, %p83
      %p85 = scmp.ne.s32.totalorder %s71, %s72
      %p86 = scmp.eq.s32.totalorder %s15, 2
      %p87 = por %p85, %p86
      %p89 = scmp.ne.s32.totalorder %s72, %s88
      %p90 = scmp.eq.s32.totalorder %s15, 0
      %p91 = por %p89, %p90
      %s92 = ssub.s32 %s17, %s31
      %p93 = scmp.eq.s32.totalorder %s92, 0
      %s95 = sadd.s32 %s94, 1
      %s96 = scalar_select %p93, %s94, %s95
      %p99 = pneg %p93
      %p100 = scmp.eq.s32.totalorder %s9, 2
      %p101 = por %p99, %p100
      %p102 = scmp.ne.s32.totalorder %s94, %s97
      %p103 = scmp.eq.s32.totalorder %s9, 0
      %p104 = por %p102, %p103
      %p105 = scmp.ne.s32.totalorder %s94, %s97
      %p106 = scmp.eq.s32.totalorder %s14, 2
      %p107 = por %p105, %p106
      %p108 = scmp.ne.s32.totalorder %s97, %s98
      %p109 = scmp.eq.s32.totalorder %s14, 0
      %p110 = por %p108, %p109
      %p111 = scmp.ne.s32.totalorder %s97, %s98
      %p112 = scmp.eq.s32.totalorder %s15, 2
      %p113 = por %p111, %p112
      %p115 = scmp.ne.s32.totalorder %s98, %s114
      %p116 = scmp.eq.s32.totalorder %s15, 0
      %p117 = por %p115, %p116
      %s118 = ssub.s32 %s16, %s35
      %s119 = ssub.s32 %s17, %s31
      %s120 = sor.u32 %s118, %s119
      %p121 = scmp.eq.s32.totalorder %s120, 0
      %s123 = sadd.s32 %s122, 1
      %s124 = scalar_select %p121, %s122, %s123
      %p127 = pneg %p121
      %p128 = scmp.eq.s32.totalorder %s9, 2
      %p129 = por %p127, %p128
      %p130 = scmp.ne.s32.totalorder %s122, %s125
      %p131 = scmp.eq.s32.totalorder %s9, 0
      %p132 = por %p130, %p131
      %p133 = scmp.ne.s32.totalorder %s122, %s125
      %p134 = scmp.eq.s32.totalorder %s14, 2
      %p135 = por %p133, %p134
      %p136 = scmp.ne.s32.totalorder %s125, %s126
      %p137 = scmp.eq.s32.totalorder %s14, 0
      %p138 = por %p136, %p137
      %p139 = scmp.ne.s32.totalorder %s125, %s126
      %p140 = scmp.eq.s32.totalorder %s15, 2
      %p141 = por %p139, %p140
      %p143 = scmp.ne.s32.totalorder %s126, %s142
      %p144 = scmp.eq.s32.totalorder %s15, 0
      %p145 = por %p143, %p144
      %p146 = scmp.le.s32.totalorder 1, %s9
      %p147 = scmp.lt.s32.totalorder %s9, 4
      %p148 = pnand %p146, %p147
      %p149 = pneg %p148
      // Predicated region
      $region9: #{decoder_forward.3} parent=5 // pred_check
        _
      $region10: #{decoder_forward.3} parent=5 // pred_check_branch
        %151 = sbr.rel (%p148) target = $region12
      $region11: #{decoder_forward.3} parent=5 // pred_region
        %s152 = ssub.s32 %s9, 1
        // Predicated region
        $region13: #{decoder_forward.3} parent=11 // pred_check
          %p153 = pneg %p56
        $region14: #{decoder_forward.3} parent=11 // pred_check_branch
          %155 = sbr.rel (%p153) target = $region16
        $region15: #{decoder_forward.3} parent=11 // pred_region
          %s156 = smul.u32 8, %s19
          %p157 = scmp.lt.s32.totalorder %s156, 7
          %s158 = scalar_select %p157, %s156, 7
          %p159 = scmp.lt.s32.totalorder %s21, 0
          %s160 = scalar_select %p159, %s21, 0
          %s161 = sadd.s32 %s160, %s158
          %s162 = smul.addr %s161, 4
          %s163 = scalar_lea.vmem %s0, %s162
          %s164 = smul.u32 8, %s19
        $region16: #{decoder_forward.3} parent=11 // pred_fallthru
          _
      $region12: #{decoder_forward.3} parent=5 // pred_fallthru
        _
      %p165 = scmp.lt.s32.totalorder %s9, 3
      // Predicated region
      $region17: #{decoder_forward.3} parent=5 // pred_check
        %p166 = pneg %p165
      $region18: #{decoder_forward.3} parent=5 // pred_check_branch
        %168 = sbr.rel (%p166) target = $region20
      $region19: #{decoder_forward.3} parent=5 // pred_region
        // Predicated region
        $region21: #{decoder_forward.3} parent=19 // pred_check
          %p169 = pneg %p78
        $region22: #{decoder_forward.3} parent=19 // pred_check_branch
          %171 = sbr.rel (%p169) target = $region24
        $region23: #{decoder_forward.3} parent=19 // pred_region
          %s172 = sand.u32 %s68, 1
          %s173 = sand.u32 %s68, 1
          %s174 = smul.addr %s173, 64
          %s175 = scalar_lea.vmem [#allocation3], %s174
          %s176 = smul.u32 16, %s18
          %s177 = smul.addr %s176, 3
          %s178 = sadd.s32 %s17, %s177
          %s179 = smul.addr %s178, 4
          %s180 = scalar_lea.vmem %s1, %s179
          // Predicated region
          $region25: #{decoder_forward.3} parent=23 // pred_check
            _
          $region26: #{decoder_forward.3} parent=23 // pred_check_branch
            %182 = sbr.rel (0) target = $region28
          $region27: #{decoder_forward.3} parent=23 // pred_region
            // Predicated region
            $region29: #{decoder_forward.3} parent=27 // pred_check
              _
            $region30: #{decoder_forward.3} parent=27 // pred_check_branch
              %184 = sbr.rel target = $region32
            $region31: #{decoder_forward.3} parent=27 // pred_region
              // Predicated region
              $region44: #{decoder_forward.3} parent=31 // pred_check
                _
              $region45: #{decoder_forward.3} parent=31 // pred_check_branch
                %230 = sbr.rel (0) target = $region47
              $region46: #{decoder_forward.3} parent=31 // pred_region
                loop: start=0, step=1, limit=1
                $region48: #{decoder_forward.3} parent=46 // loop_pre_header
                  _
                $region49: #{decoder_forward.3} parent=46 // loop_header
                  %s232 = sphi 0, %s236
                  %p233 = scmp.ge.s32.totalorder %s232, 1
                  %s237 = sphi %s180, %s180
                  %s238 = sphi %s175, %s175
                $region50: #{decoder_forward.3} parent=46 // loop_header_branch
                  %235 = sbr.rel (%p233) target = $region54
                $region51: #{decoder_forward.3} parent=46 // loop_body
                  _
                $region52: #{decoder_forward.3} parent=46 // loop_footer
                  %s236 = sadd.s32 1, %s232
                $region53: #{decoder_forward.3} parent=46 // loop_footer_branch
                  %231 = sbr.rel target = $region49
                $region54: #{decoder_forward.3} parent=46 // loop_exit
                  _
                %s240 = ssub.s32 16, 1
                loop: start=0, step=1, limit=1
                $region55: #{decoder_forward.3} parent=46 // loop_pre_header
                  _
                $region56: #{decoder_forward.3} parent=46 // loop_header
                  %s242 = sphi 0, %s246
                  %p243 = scmp.ge.s32.totalorder %s242, 1
                  %s247 = sphi %s180, %s180
                  %s248 = sphi %s175, %s175
                $region57: #{decoder_forward.3} parent=46 // loop_header_branch
                  %245 = sbr.rel (%p243) target = $region61
                $region58: #{decoder_forward.3} parent=46 // loop_body
                  %v249 = vld [vmem:[%s247] sm:%s240]
                  %250 = vst [vmem:[%s248] sm:%s240] %v249
                  %v251 = vld [vmem:[%s247 + $0xc] sm:%s240]
                  %252 = vst [vmem:[%s248 + $0x4] sm:%s240] %v251
                  %v253 = vld [vmem:[%s247 + $0x18] sm:%s240]
                  %254 = vst [vmem:[%s248 + $0x8] sm:%s240] %v253
                  %v255 = vld [vmem:[%s247 + $0x24] sm:%s240]
                  %256 = vst [vmem:[%s248 + $0xc] sm:%s240] %v255
                  %v257 = vld [vmem:[%s247 + $0x30] sm:%s240]
                  %258 = vst [vmem:[%s248 + $0x10] sm:%s240] %v257
                  %v259 = vld [vmem:[%s247 + $0x3c] sm:%s240]
                  %260 = vst [vmem:[%s248 + $0x14] sm:%s240] %v259
                  %v261 = vld [vmem:[%s247 + $0x48] sm:%s240]
                  %262 = vst [vmem:[%s248 + $0x18] sm:%s240] %v261
                  %v263 = vld [vmem:[%s247 + $0x54] sm:%s240]
                  %264 = vst [vmem:[%s248 + $0x1c] sm:%s240] %v263
                  %v265 = vld [vmem:[%s247 + $0x60] sm:%s240]
                  %266 = vst [vmem:[%s248 + $0x20] sm:%s240] %v265
                  %v267 = vld [vmem:[%s247 + $0x6c] sm:%s240]
                  %268 = vst [vmem:[%s248 + $0x24] sm:%s240] %v267
                  %v269 = vld [vmem:[%s247 + $0x78] sm:%s240]
                  %270 = vst [vmem:[%s248 + $0x28] sm:%s240] %v269
                  %v271 = vld [vmem:[%s247 + $0x84] sm:%s240]
                  %272 = vst [vmem:[%s248 + $0x2c] sm:%s240] %v271
                  %v273 = vld [vmem:[%s247 + $0x90] sm:%s240]
                  %274 = vst [vmem:[%s248 + $0x30] sm:%s240] %v273
                  %v275 = vld [vmem:[%s247 + $0x9c] sm:%s240]
                  %276 = vst [vmem:[%s248 + $0x34] sm:%s240] %v275
                  %v277 = vld [vmem:[%s247 + $0xa8] sm:%s240]
                  %278 = vst [vmem:[%s248 + $0x38] sm:%s240] %v277
                  %v279 = vld [vmem:[%s247 + $0xb4] sm:%s240]
                  %280 = vst [vmem:[%s248 + $0x3c] sm:%s240] %v279
                $region59: #{decoder_forward.3} parent=46 // loop_footer
                  %s246 = sadd.s32 1, %s242
                $region60: #{decoder_forward.3} parent=46 // loop_footer_branch
                  %241 = sbr.rel target = $region56
                $region61: #{decoder_forward.3} parent=46 // loop_exit
                  _
              $region47: #{decoder_forward.3} parent=31 // pred_fallthru
                _
            $region32: #{decoder_forward.3} parent=27 // pred_fallthru
              _
            // Predicated region
            $region33: #{decoder_forward.3} parent=27 // pred_check
              _
            $region34: #{decoder_forward.3} parent=27 // pred_check_branch
              %186 = sbr.rel (0) target = $region36
            $region35: #{decoder_forward.3} parent=27 // pred_region
              %s188 = ssub.s32 16, 1
              loop: start=0, step=1, limit=1
              $region37: #{decoder_forward.3} parent=35 // loop_pre_header
                _
              $region38: #{decoder_forward.3} parent=35 // loop_header
                %s190 = sphi 0, %s194
                %p191 = scmp.ge.s32.totalorder %s190, 1
                %s195 = sphi %s180, %s180
                %s196 = sphi %s175, %s175
              $region39: #{decoder_forward.3} parent=35 // loop_header_branch
                %193 = sbr.rel (%p191) target = $region43
              $region40: #{decoder_forward.3} parent=35 // loop_body
                %v197 = vld [vmem:[%s195] sm:%s188]
                %198 = vst [vmem:[%s196] sm:%s188] %v197
                %v199 = vld [vmem:[%s195 + $0xc] sm:%s188]
                %200 = vst [vmem:[%s196 + $0x4] sm:%s188] %v199
                %v201 = vld [vmem:[%s195 + $0x18] sm:%s188]
                %202 = vst [vmem:[%s196 + $0x8] sm:%s188] %v201
                %v203 = vld [vmem:[%s195 + $0x24] sm:%s188]
                %204 = vst [vmem:[%s196 + $0xc] sm:%s188] %v203
                %v205 = vld [vmem:[%s195 + $0x30] sm:%s188]
                %206 = vst [vmem:[%s196 + $0x10] sm:%s188] %v205
                %v207 = vld [vmem:[%s195 + $0x3c] sm:%s188]
                %208 = vst [vmem:[%s196 + $0x14] sm:%s188] %v207
                %v209 = vld [vmem:[%s195 + $0x48] sm:%s188]
                %210 = vst [vmem:[%s196 + $0x18] sm:%s188] %v209
                %v211 = vld [vmem:[%s195 + $0x54] sm:%s188]
                %212 = vst [vmem:[%s196 + $0x1c] sm:%s188] %v211
                %v213 = vld [vmem:[%s195 + $0x60] sm:%s188]
                %214 = vst [vmem:[%s196 + $0x20] sm:%s188] %v213
                %v215 = vld [vmem:[%s195 + $0x6c] sm:%s188]
                %216 = vst [vmem:[%s196 + $0x24] sm:%s188] %v215
                %v217 = vld [vmem:[%s195 + $0x78] sm:%s188]
                %218 = vst [vmem:[%s196 + $0x28] sm:%s188] %v217
                %v219 = vld [vmem:[%s195 + $0x84] sm:%s188]
                %220 = vst [vmem:[%s196 + $0x2c] sm:%s188] %v219
                %v221 = vld [vmem:[%s195 + $0x90] sm:%s188]
                %222 = vst [vmem:[%s196 + $0x30] sm:%s188] %v221
                %v223 = vld [vmem:[%s195 + $0x9c] sm:%s188]
                %224 = vst [vmem:[%s196 + $0x34] sm:%s188] %v223
                %v225 = vld [vmem:[%s195 + $0xa8] sm:%s188]
                %226 = vst [vmem:[%s196 + $0x38] sm:%s188] %v225
                %v227 = vld [vmem:[%s195 + $0xb4] sm:%s188]
                %228 = vst [vmem:[%s196 + $0x3c] sm:%s188] %v227
              $region41: #{decoder_forward.3} parent=35 // loop_footer
                %s194 = sadd.s32 1, %s190
              $region42: #{decoder_forward.3} parent=35 // loop_footer_branch
                %189 = sbr.rel target = $region38
              $region43: #{decoder_forward.3} parent=35 // loop_exit
                _
            $region36: #{decoder_forward.3} parent=27 // pred_fallthru
              _
          $region28: #{decoder_forward.3} parent=23 // pred_fallthru
            _
          %281 = vnop
        $region24: #{decoder_forward.3} parent=19 // pred_fallthru
          _
        // Predicated region
        $region62: #{decoder_forward.3} parent=19 // pred_check
          %p282 = pneg %p104
        $region63: #{decoder_forward.3} parent=19 // pred_check_branch
          %284 = sbr.rel (%p282) target = $region65
        $region64: #{decoder_forward.3} parent=19 // pred_region
          %p285 = scmp.lt.s32.totalorder %s17, 2
          %s286 = scalar_select %p285, %s17, 2
          %s287 = scalar_lea.vmem %s2, %s286
        $region65: #{decoder_forward.3} parent=19 // pred_fallthru
          _
      $region20: #{decoder_forward.3} parent=5 // pred_fallthru
        _
      %p288 = scmp.le.s32.totalorder 1, %s9
      %p289 = scmp.lt.s32.totalorder %s9, 4
      %p290 = pnand %p288, %p289
      %p291 = pneg %p290
      // Predicated region
      $region66: #{decoder_forward.3} parent=5 // pred_check
        _
      $region67: #{decoder_forward.3} parent=5 // pred_check_branch
        %293 = sbr.rel (%p290) target = $region69
      $region68: #{decoder_forward.3} parent=5 // pred_region
        %s294 = ssub.s32 %s9, 1
        %s295 = sand.u32 %s71, 1
        %s296 = sand.u32 %s71, 1
        %s297 = smul.addr %s296, 64
        %s298 = scalar_lea.vmem [#allocation3], %s297
        // Predicated region
        $region70: #{decoder_forward.3} parent=68 // pred_check
          %p299 = pneg %p84
        $region71: #{decoder_forward.3} parent=68 // pred_check_branch
          %301 = sbr.rel (%p299) target = $region73
        $region72: #{decoder_forward.3} parent=68 // pred_region
          _
        $region73: #{decoder_forward.3} parent=68 // pred_fallthru
          _
        %s302 = smul.u32 8, %s19
        %p303 = scmp.lt.s32.totalorder %s302, 7
        %s304 = scalar_select %p303, %s302, 7
        %p305 = scmp.lt.s32.totalorder %s21, 0
        %s306 = scalar_select %p305, %s21, 0
        %s307 = sadd.s32 %s306, %s304
        %s308 = smul.addr %s307, 4
        %s309 = scalar_lea.vmem %s0, %s308
        %p310 = pneg %p56
        %p311 = pneg %p53
        %s312 = sand.u32 %s71, 1
        %s313 = sand.u32 %s71, 1
        %s314 = smul.addr %s313, 64
        %s315 = scalar_lea.vmem [#allocation3], %s314
        %p316 = pneg %p84
        %p317 = pneg %p81
        %p318 = scmp.lt.s32.totalorder %s20, 2
        %s319 = scalar_select %p318, %s20, 2
        %s320 = scalar_lea.vmem %s2, %s319
        %p321 = pneg %p110
        %p322 = pneg %p107
        %p323 = pneg %p138
        %p324 = pneg %p135
        %s325 = sand.u32 %s125, 1
        %s326 = sand.u32 %s125, 1
        %s327 = smul.addr %s326, 64
        %s328 = scalar_lea.vmem [#allocation4], %s327
        %s329 = smul.u32 8, %s19
        %p330 = scmp.lt.s32.totalorder %s329, 7
        %s331 = scalar_select %p330, %s329, 7
        %p332 = scmp.lt.s32.totalorder %s21, 0
        %s333 = scalar_select %p332, %s21, 0
        %s334 = sadd.s32 %s333, %s331
        %s335 = smul.addr %s334, 4
        %s336 = scalar_lea.vmem %s0, %s335
        %s337 = smul.u32 8, %s19
        %s338 = smul.u32 16, %s21
        %p339 = scmp.lt.s32.totalorder %s20, 2
        %s340 = scalar_select %p339, %s20, 2
        %s341 = scalar_lea.vmem %s2, %s340
        %s342 = smul.u32 8, %s19
        %p343 = scmp.eq.s32.totalorder %s21, 0
        // Predicated region
        $region74: #{decoder_forward.3} parent=68 // pred_check
          %p344 = pneg %p343
        $region75: #{decoder_forward.3} parent=68 // pred_check_branch
          %346 = sbr.rel (%p344) target = $region77
        $region76: #{decoder_forward.3} parent=68 // pred_region
          %347 = vst [vmem:[#allocation2] sm:$0xff] 0.0
          %348 = vst [vmem:[#allocation2 + $0x8] sm:$0xff] 0.0
          %349 = vst [vmem:[#allocation2 + $0x10] sm:$0xff] 0.0
          %350 = vst [vmem:[#allocation2 + $0x18] sm:$0xff] 0.0
          %351 = vst [vmem:[#allocation2 + $0x20] sm:$0xff] 0.0
          %352 = vst [vmem:[#allocation2 + $0x28] sm:$0xff] 0.0
          %353 = vst [vmem:[#allocation2 + $0x30] sm:$0xff] 0.0
          %354 = vst [vmem:[#allocation2 + $0x38] sm:$0xff] 0.0
        $region77: #{decoder_forward.3} parent=68 // pred_fallthru
          _
        %v355 = vld [vmem:[#allocation2] sm:$0xff]
        %v356 = vld [vmem:[#allocation2 + $0x8] sm:$0xff]
        %v357 = vld [vmem:[#allocation2 + $0x10] sm:$0xff]
        %v358 = vld [vmem:[#allocation2 + $0x18] sm:$0xff]
        %v359 = vld [vmem:[#allocation2 + $0x20] sm:$0xff]
        %v360 = vld [vmem:[#allocation2 + $0x28] sm:$0xff]
        %v361 = vld [vmem:[#allocation2 + $0x30] sm:$0xff]
        %v362 = vld [vmem:[#allocation2 + $0x38] sm:$0xff]
        %v363 = vld [vmem:[%s336] sm:$0xf]
        %v364 = vld [vmem:[%s336 + $0x4] sm:$0xf]
        %v365 = vld [vmem:[%s336 + $0x8] sm:$0xf]
        %v366 = vld [vmem:[%s336 + $0xc] sm:$0xf]
        %v367 = vld [vmem:[%s336 + $0x10] sm:$0xf]
        %v368 = vld [vmem:[%s336 + $0x14] sm:$0xf]
        %v369 = vld [vmem:[%s336 + $0x18] sm:$0xf]
        %v370 = vld [vmem:[%s336 + $0x1c] sm:$0xf]
        %v371 = vld [vmem:[%s298] sm:$0xf]
        %v372 = vld [vmem:[%s298 + $0x4] sm:$0xf]
        %v373 = vld [vmem:[%s298 + $0x8] sm:$0xf]
        %v374 = vld [vmem:[%s298 + $0xc] sm:$0xf]
        %v375 = vld [vmem:[%s298 + $0x10] sm:$0xf]
        %v376 = vld [vmem:[%s298 + $0x14] sm:$0xf]
        %v377 = vld [vmem:[%s298 + $0x18] sm:$0xf]
        %v378 = vld [vmem:[%s298 + $0x1c] sm:$0xf]
        %v379 = vld [vmem:[%s298 + $0x20] sm:$0xf]
        %v380 = vld [vmem:[%s298 + $0x24] sm:$0xf]
        %v381 = vld [vmem:[%s298 + $0x28] sm:$0xf]
        %v382 = vld [vmem:[%s298 + $0x2c] sm:$0xf]
        %v383 = vld [vmem:[%s298 + $0x30] sm:$0xf]
        %v384 = vld [vmem:[%s298 + $0x34] sm:$0xf]
        %v385 = vld [vmem:[%s298 + $0x38] sm:$0xf]
        %v386 = vld [vmem:[%s298 + $0x3c] sm:$0xf]
        %v395 = vunpack.c.l.b16 %v363
        %v396 = vunpack.c.l.b16 %v364
        %v397 = vunpack.c.l.b16 %v365
        %v398 = vunpack.c.l.b16 %v366
        %v399 = vunpack.c.l.b16 %v367
        %v400 = vunpack.c.l.b16 %v368
        %v401 = vunpack.c.l.b16 %v369
        %v402 = vunpack.c.l.b16 %v370
        %v403 = vpack.c.b16 %v396, %v395
        %v404 = vpack.c.b16 %v398, %v397
        %v405 = vpack.c.b16 %v400, %v399
        %v406 = vpack.c.b16 %v402, %v401
        %v427 = vunpack.c.l.b16 %v371
        %v428 = vunpack.c.l.b16 %v372
        %v429 = vunpack.c.l.b16 %v373
        %v430 = vunpack.c.l.b16 %v374
        %v431 = vunpack.c.l.b16 %v375
        %v432 = vunpack.c.l.b16 %v376
        %v433 = vunpack.c.l.b16 %v377
        %v434 = vunpack.c.l.b16 %v378
        %v435 = vunpack.c.l.b16 %v379
        %v436 = vunpack.c.l.b16 %v380
        %v437 = vunpack.c.l.b16 %v381
        %v438 = vunpack.c.l.b16 %v382
        %v439 = vunpack.c.l.b16 %v383
        %v440 = vunpack.c.l.b16 %v384
        %v441 = vunpack.c.l.b16 %v385
        %v442 = vunpack.c.l.b16 %v386
        %v443 = vpack.c.b16 %v428, %v427
        %v444 = vpack.c.b16 %v430, %v429
        %v445 = vpack.c.b16 %v432, %v431
        %v446 = vpack.c.b16 %v434, %v433
        %v447 = vpack.c.b16 %v436, %v435
        %v448 = vpack.c.b16 %v438, %v437
        %v449 = vpack.c.b16 %v440, %v439
        %v450 = vpack.c.b16 %v442, %v441
        %459 = vmatpush.bf16.msra.mxu0 %v450
        %460 = vmatpush.bf16.msra.mxu0 %v449
        %461 = vmatpush.bf16.msra.mxu0 %v448
        %462 = vmatpush.bf16.msra.mxu0 %v447
        %463 = vmatpush.bf16.msra.mxu0 %v446
        %464 = vmatpush.bf16.msra.mxu0 %v445
        %465 = vmatpush.bf16.msra.mxu0 %v444
        %466 = vmatpush.bf16.msra.mxu0 %v443
        %467 = vmatmul.bf16.gmra.mxu0 %v403
        %v468 = vpop.f32.mrf.mxu0
        %v469 = vadd.f32 0.0, %v468
        %v470 = vpop.f32.mrf.mxu0
        %v471 = vadd.f32 0.0, %v470
        %472 = vmatmul.bf16.gmra.mxu0 %v404
        %v473 = vpop.f32.mrf.mxu0
        %v474 = vadd.f32 0.0, %v473
        %v475 = vpop.f32.mrf.mxu0
        %v476 = vadd.f32 0.0, %v475
        %477 = vmatmul.bf16.gmra.mxu0 %v405
        %v478 = vpop.f32.mrf.mxu0
        %v479 = vadd.f32 0.0, %v478
        %v480 = vpop.f32.mrf.mxu0
        %v481 = vadd.f32 0.0, %v480
        %482 = vmatmul.bf16.gmra.mxu0 %v406
        %v483 = vpop.f32.mrf.mxu0
        %v484 = vadd.f32 0.0, %v483
        %v485 = vpop.f32.mrf.mxu0
        %v486 = vadd.f32 0.0, %v485
        %487 = vdwg.mxu0
        %v488 = vadd.f32 %v355, %v469
        %v489 = vadd.f32 %v356, %v471
        %v490 = vadd.f32 %v357, %v474
        %v491 = vadd.f32 %v358, %v476
        %v492 = vadd.f32 %v359, %v479
        %v493 = vadd.f32 %v360, %v481
        %v494 = vadd.f32 %v361, %v484
        %v495 = vadd.f32 %v362, %v486
        %496 = vst [vmem:[#allocation2] sm:$0xff] %v488
        %497 = vst [vmem:[#allocation2 + $0x8] sm:$0xff] %v489
        %498 = vst [vmem:[#allocation2 + $0x10] sm:$0xff] %v490
        %499 = vst [vmem:[#allocation2 + $0x18] sm:$0xff] %v491
        %500 = vst [vmem:[#allocation2 + $0x20] sm:$0xff] %v492
        %501 = vst [vmem:[#allocation2 + $0x28] sm:$0xff] %v493
        %502 = vst [vmem:[#allocation2 + $0x30] sm:$0xff] %v494
        %503 = vst [vmem:[#allocation2 + $0x38] sm:$0xff] %v495
        // Predicated region
        $region78: #{decoder_forward.3} parent=68 // pred_check
          %p504 = pneg %p343
        $region79: #{decoder_forward.3} parent=68 // pred_check_branch
          %506 = sbr.rel (%p504) target = $region81
        $region80: #{decoder_forward.3} parent=68 // pred_region
          %v507 = vld [vmem:[#allocation2] sm:$0xff]
          %v508 = vld [vmem:[#allocation2 + $0x8] sm:$0xff]
          %v509 = vld [vmem:[#allocation2 + $0x10] sm:$0xff]
          %v510 = vld [vmem:[#allocation2 + $0x18] sm:$0xff]
          %v511 = vld [vmem:[#allocation2 + $0x20] sm:$0xff]
          %v512 = vld [vmem:[#allocation2 + $0x28] sm:$0xff]
          %v513 = vld [vmem:[#allocation2 + $0x30] sm:$0xff]
          %v514 = vld [vmem:[#allocation2 + $0x38] sm:$0xff]
          %v515 = vld [vmem:[%s341] sm:$0x1]
          %v517 = vperm.slane %v515, 0
          %v519 = vadd.f32 %v507, %v517
          %v520 = vadd.f32 %v508, %v517
          %v521 = vadd.f32 %v509, %v517
          %v522 = vadd.f32 %v510, %v517
          %v523 = vadd.f32 %v511, %v517
          %v524 = vadd.f32 %v512, %v517
          %v525 = vadd.f32 %v513, %v517
          %v526 = vadd.f32 %v514, %v517
          %527 = vst [vmem:[%s328] sm:$0xff] %v519
          %528 = vst [vmem:[%s328 + $0x8] sm:$0xff] %v520
          %529 = vst [vmem:[%s328 + $0x10] sm:$0xff] %v521
          %530 = vst [vmem:[%s328 + $0x18] sm:$0xff] %v522
          %531 = vst [vmem:[%s328 + $0x20] sm:$0xff] %v523
          %532 = vst [vmem:[%s328 + $0x28] sm:$0xff] %v524
          %533 = vst [vmem:[%s328 + $0x30] sm:$0xff] %v525
          %534 = vst [vmem:[%s328 + $0x38] sm:$0xff] %v526
        $region81: #{decoder_forward.3} parent=68 // pred_fallthru
          _
        %s535 = sand.u32 %s125, 1
        %s536 = sand.u32 %s125, 1
        %s537 = smul.addr %s536, 64
        %s538 = scalar_lea.vmem [#allocation4], %s537
        // Predicated region
        $region82: #{decoder_forward.3} parent=68 // pred_check
          %p539 = pneg %p135
        $region83: #{decoder_forward.3} parent=68 // pred_check_branch
          %541 = sbr.rel (%p539) target = $region85
        $region84: #{decoder_forward.3} parent=68 // pred_region
          %s542 = smul.u32 8, %s19
          %s543 = smul.addr %s542, 3
          %s544 = sadd.s32 %s20, %s543
          %s545 = smul.addr %s544, 8
          %s546 = scalar_lea.vmem %s3, %s545
          // Predicated region
          $region86: #{decoder_forward.3} parent=84 // pred_check
            _
          $region87: #{decoder_forward.3} parent=84 // pred_check_branch
            %548 = sbr.rel (0) target = $region89
          $region88: #{decoder_forward.3} parent=84 // pred_region
            // Predicated region
            $region90: #{decoder_forward.3} parent=88 // pred_check
              _
            $region91: #{decoder_forward.3} parent=88 // pred_check_branch
              %550 = sbr.rel (0) target = $region93
            $region92: #{decoder_forward.3} parent=88 // pred_region
              // Predicated region
              $region105: #{decoder_forward.3} parent=92 // pred_check
                _
              $region106: #{decoder_forward.3} parent=92 // pred_check_branch
                %580 = sbr.rel (0) target = $region108
              $region107: #{decoder_forward.3} parent=92 // pred_region
                loop: start=0, step=1, limit=1
                $region109: #{decoder_forward.3} parent=107 // loop_pre_header
                  _
                $region110: #{decoder_forward.3} parent=107 // loop_header
                  %s582 = sphi 0, %s586
                  %p583 = scmp.ge.s32.totalorder %s582, 1
                  %s587 = sphi %s538, %s538
                  %s588 = sphi %s546, %s546
                $region111: #{decoder_forward.3} parent=107 // loop_header_branch
                  %585 = sbr.rel (%p583) target = $region115
                $region112: #{decoder_forward.3} parent=107 // loop_body
                  %v589 = vld [vmem:[%s587] sm:$0xff]
                  %590 = vst [vmem:[%s588] sm:$0xff] %v589
                  %v591 = vld [vmem:[%s587 + $0x8] sm:$0xff]
                  %592 = vst [vmem:[%s588 + $0x18] sm:$0xff] %v591
                  %v593 = vld [vmem:[%s587 + $0x10] sm:$0xff]
                  %594 = vst [vmem:[%s588 + $0x30] sm:$0xff] %v593
                  %v595 = vld [vmem:[%s587 + $0x18] sm:$0xff]
                  %596 = vst [vmem:[%s588 + $0x48] sm:$0xff] %v595
                  %v597 = vld [vmem:[%s587 + $0x20] sm:$0xff]
                  %598 = vst [vmem:[%s588 + $0x60] sm:$0xff] %v597
                  %v599 = vld [vmem:[%s587 + $0x28] sm:$0xff]
                  %600 = vst [vmem:[%s588 + $0x78] sm:$0xff] %v599
                  %v601 = vld [vmem:[%s587 + $0x30] sm:$0xff]
                  %602 = vst [vmem:[%s588 + $0x90] sm:$0xff] %v601
                  %v603 = vld [vmem:[%s587 + $0x38] sm:$0xff]
                  %604 = vst [vmem:[%s588 + $0xa8] sm:$0xff] %v603
                $region113: #{decoder_forward.3} parent=107 // loop_footer
                  %s586 = sadd.s32 1, %s582
                $region114: #{decoder_forward.3} parent=107 // loop_footer_branch
                  %581 = sbr.rel target = $region110
                $region115: #{decoder_forward.3} parent=107 // loop_exit
                  _
              $region108: #{decoder_forward.3} parent=92 // pred_fallthru
                _
              // Predicated region
              $region116: #{decoder_forward.3} parent=92 // pred_check
                _
              $region117: #{decoder_forward.3} parent=92 // pred_check_branch
                %606 = sbr.rel target = $region119
              $region118: #{decoder_forward.3} parent=92 // pred_region
                _
              $region119: #{decoder_forward.3} parent=92 // pred_fallthru
                _
            $region93: #{decoder_forward.3} parent=88 // pred_fallthru
              _
            // Predicated region
            $region94: #{decoder_forward.3} parent=88 // pred_check
              _
            $region95: #{decoder_forward.3} parent=88 // pred_check_branch
              %552 = sbr.rel target = $region97
            $region96: #{decoder_forward.3} parent=88 // pred_region
              %s554 = ssub.s32 256, 1
              loop: start=0, step=1, limit=1
              $region98: #{decoder_forward.3} parent=96 // loop_pre_header
                _
              $region99: #{decoder_forward.3} parent=96 // loop_header
                %s556 = sphi 0, %s560
                %p557 = scmp.ge.s32.totalorder %s556, 1
                %s561 = sphi %s538, %s538
                %s562 = sphi %s546, %s546
              $region100: #{decoder_forward.3} parent=96 // loop_header_branch
                %559 = sbr.rel (%p557) target = $region104
              $region101: #{decoder_forward.3} parent=96 // loop_body
                %v563 = vld [vmem:[%s561] sm:%s554]
                %564 = vst [vmem:[%s562] sm:%s554] %v563
                %v565 = vld [vmem:[%s561 + $0x8] sm:%s554]
                %566 = vst [vmem:[%s562 + $0x18] sm:%s554] %v565
                %v567 = vld [vmem:[%s561 + $0x10] sm:%s554]
                %568 = vst [vmem:[%s562 + $0x30] sm:%s554] %v567
                %v569 = vld [vmem:[%s561 + $0x18] sm:%s554]
                %570 = vst [vmem:[%s562 + $0x48] sm:%s554] %v569
                %v571 = vld [vmem:[%s561 + $0x20] sm:%s554]
                %572 = vst [vmem:[%s562 + $0x60] sm:%s554] %v571
                %v573 = vld [vmem:[%s561 + $0x28] sm:%s554]
                %574 = vst [vmem:[%s562 + $0x78] sm:%s554] %v573
                %v575 = vld [vmem:[%s561 + $0x30] sm:%s554]
                %576 = vst [vmem:[%s562 + $0x90] sm:%s554] %v575
                %v577 = vld [vmem:[%s561 + $0x38] sm:%s554]
                %578 = vst [vmem:[%s562 + $0xa8] sm:%s554] %v577
              $region102: #{decoder_forward.3} parent=96 // loop_footer
                %s560 = sadd.s32 1, %s556
              $region103: #{decoder_forward.3} parent=96 // loop_footer_branch
                %555 = sbr.rel target = $region99
              $region104: #{decoder_forward.3} parent=96 // loop_exit
                _
            $region97: #{decoder_forward.3} parent=88 // pred_fallthru
              _
          $region89: #{decoder_forward.3} parent=84 // pred_fallthru
            _
          %607 = vnop
        $region85: #{decoder_forward.3} parent=68 // pred_fallthru
          _
      $region69: #{decoder_forward.3} parent=5 // pred_fallthru
        _
      %p608 = scmp.le.s32.totalorder 2, %s9
      // Predicated region
      $region120: #{decoder_forward.3} parent=5 // pred_check
        %p609 = pneg %p608
      $region121: #{decoder_forward.3} parent=5 // pred_check_branch
        %611 = sbr.rel (%p609) target = $region123
      $region122: #{decoder_forward.3} parent=5 // pred_region
        %s612 = ssub.s32 %s9, 2
        // Predicated region
        $region124: #{decoder_forward.3} parent=122 // pred_check
          %p613 = pneg %p141
        $region125: #{decoder_forward.3} parent=122 // pred_check_branch
          %615 = sbr.rel (%p613) target = $region127
        $region126: #{decoder_forward.3} parent=122 // pred_region
          %s616 = sand.u32 %s126, 1
          %s617 = sand.u32 %s126, 1
          %s618 = smul.addr %s617, 64
          %s619 = scalar_lea.vmem [#allocation4], %s618
        $region127: #{decoder_forward.3} parent=122 // pred_fallthru
          _
      $region123: #{decoder_forward.3} parent=5 // pred_fallthru
        _
    $region6: #{decoder_forward.3} parent=1 // loop_footer
      %s13 = sadd.s32 1, %s9
    $region7: #{decoder_forward.3} parent=1 // loop_footer_branch
      %8 = sbr.rel target = $region3
    $region8: #{decoder_forward.3} parent=1 // loop_exit
      _

// kernel: decoder_forward.4
$region0: #{decoder_forward.4}
  #allocation0 [shape = 'u32[]', space=smem, size = 0x4, offset = 0x4, fixed_abs, tag = 'smem constant byte address 0x4 - core index']
  #allocation1 [shape = 'u32[72,128]{1,0:T(1,128)}', space=vmem, size = 0x9000, scoped, tag = 'internal scratch']
  %s0 = inlined_call_operand.vmem [shape: f32[8,8,384], index: 0, kind: input, shape index: {}]
  %s1 = inlined_call_operand.vmem [shape: f32[8,128], index: 1, kind: input, shape index: {}]
  %s2 = inlined_call_operand.vmem [shape: bf16[128,384], index: 2, kind: input, shape index: {}]
  %s3 = inlined_call_operand.vmem [shape: f32[1,128], index: 3, kind: input, shape index: {}]
  %s4 = inlined_call_operand.vmem [shape: f32[8,8,128], index: 4, kind: output, shape index: {0}]
  %s5 = inlined_call_operand.vmem [shape: f32[8,128], index: 5, kind: output, shape index: {1}]
  %6 = xla_tuple %s4, %s5
  %s7 = sld [smem:[#allocation0]]
  $region38: #{decoder_forward.4} parent=0
    _
  %s9 = ssub.s32 1, %s7
  %s10 = scalar_select 0, %s9, %s7
  // Predicated region
  $region2: #{decoder_forward.4} parent=0 // pred_check
    _
  $region3: #{decoder_forward.4} parent=0 // pred_check_branch
    %12 = sbr.rel (0) target = $region5
  $region4: #{decoder_forward.4} parent=0 // pred_region
    _
  $region5: #{decoder_forward.4} parent=0 // pred_fallthru
    _
  // Predicated region
  $region6: #{decoder_forward.4} parent=0 // pred_check
    _
  $region7: #{decoder_forward.4} parent=0 // pred_check_branch
    %14 = sbr.rel (0) target = $region9
  $region8: #{decoder_forward.4} parent=0 // pred_region
    _
  $region9: #{decoder_forward.4} parent=0 // pred_fallthru
    _
  // Predicated region
  $region10: #{decoder_forward.4} parent=0 // pred_check
    _
  $region11: #{decoder_forward.4} parent=0 // pred_check_branch
    %16 = sbr.rel (0) target = $region13
  $region12: #{decoder_forward.4} parent=0 // pred_region
    _
  $region13: #{decoder_forward.4} parent=0 // pred_fallthru
    _
  // Predicated region
  $region14: #{decoder_forward.4} parent=0 // pred_check
    _
  $region15: #{decoder_forward.4} parent=0 // pred_check_branch
    %18 = sbr.rel (0) target = $region17
  $region16: #{decoder_forward.4} parent=0 // pred_region
    _
  $region17: #{decoder_forward.4} parent=0 // pred_fallthru
    _
  %p19 = scmp.eq.s32.totalorder 0, 0
  // Predicated region
  $region18: #{decoder_forward.4} parent=0 // pred_check
    %p20 = pneg %p19
  $region19: #{decoder_forward.4} parent=0 // pred_check_branch
    %22 = sbr.rel (%p20) target = $region21
  $region20: #{decoder_forward.4} parent=0 // pred_region
    %v23 = vld [vmem:[%s1] sm:$0xff]
    %24 = vst [vmem:[%s5] sm:$0xff] %v23
  $region21: #{decoder_forward.4} parent=0 // pred_fallthru
    _
  %v25 = vld [vmem:[%s3] sm:$0x1]
  %v26 = vld [vmem:[%s5] sm:$0xff]
  %v27 = vld [vmem:[%s0] sm:$0xff]
  %v28 = vld [vmem:[%s0 + $0x8] sm:$0xff]
  %v29 = vld [vmem:[%s0 + $0x10] sm:$0xff]
  %v30 = vpack.c.bf16 %v26, %v26
  %v31 = vld [vmem:[%s2] sm:$0xff]
  %v32 = vld [vmem:[%s2 + $0x8] sm:$0xf]
  %v33 = vld [vmem:[%s2 + $0xc] sm:$0xff]
  %v34 = vld [vmem:[%s2 + $0x14] sm:$0xf]
  %v35 = vld [vmem:[%s2 + $0x18] sm:$0xff]
  %v36 = vld [vmem:[%s2 + $0x20] sm:$0xf]
  %v37 = vld [vmem:[%s2 + $0x24] sm:$0xff]
  %v38 = vld [vmem:[%s2 + $0x2c] sm:$0xf]
  %v39 = vld [vmem:[%s2 + $0x30] sm:$0xff]
  %v40 = vld [vmem:[%s2 + $0x38] sm:$0xf]
  %v41 = vld [vmem:[%s2 + $0x3c] sm:$0xff]
  %v42 = vld [vmem:[%s2 + $0x44] sm:$0xf]
  %v43 = vld [vmem:[%s2 + $0x48] sm:$0xff]
  %v44 = vld [vmem:[%s2 + $0x50] sm:$0xf]
  %v45 = vld [vmem:[%s2 + $0x54] sm:$0xff]
  %v46 = vld [vmem:[%s2 + $0x5c] sm:$0xf]
  %v47 = vld [vmem:[%s2 + $0x60] sm:$0xff]
  %v48 = vld [vmem:[%s2 + $0x68] sm:$0xf]
  %v49 = vld [vmem:[%s2 + $0x6c] sm:$0xff]
  %v50 = vld [vmem:[%s2 + $0x74] sm:$0xf]
  %v51 = vld [vmem:[%s2 + $0x78] sm:$0xff]
  %v52 = vld [vmem:[%s2 + $0x80] sm:$0xf]
  %v53 = vld [vmem:[%s2 + $0x84] sm:$0xff]
  %v54 = vld [vmem:[%s2 + $0x8c] sm:$0xf]
  %v55 = vld [vmem:[%s2 + $0x90] sm:$0xff]
  %v56 = vld [vmem:[%s2 + $0x98] sm:$0xf]
  %v57 = vld [vmem:[%s2 + $0x9c] sm:$0xff]
  %v58 = vld [vmem:[%s2 + $0xa4] sm:$0xf]
  %v59 = vld [vmem:[%s2 + $0xa8] sm:$0xff]
  %v60 = vld [vmem:[%s2 + $0xb0] sm:$0xf]
  %v61 = vld [vmem:[%s2 + $0xb4] sm:$0xff]
  %v62 = vld [vmem:[%s2 + $0xbc] sm:$0xf]
  %v95 = vunpack.c.l.b16 %v31
  %v96 = vunpack.c.h.b16 %v31
  %v97 = vunpack.c.l.b16 %v32
  %v98 = vunpack.c.l.b16 %v33
  %v99 = vunpack.c.h.b16 %v33
  %v100 = vunpack.c.l.b16 %v34
  %v101 = vunpack.c.l.b16 %v35
  %v102 = vunpack.c.h.b16 %v35
  %v103 = vunpack.c.l.b16 %v36
  %v104 = vunpack.c.l.b16 %v37
  %v105 = vunpack.c.h.b16 %v37
  %v106 = vunpack.c.l.b16 %v38
  %v107 = vunpack.c.l.b16 %v39
  %v108 = vunpack.c.h.b16 %v39
  %v109 = vunpack.c.l.b16 %v40
  %v110 = vunpack.c.l.b16 %v41
  %v111 = vunpack.c.h.b16 %v41
  %v112 = vunpack.c.l.b16 %v42
  %v113 = vunpack.c.l.b16 %v43
  %v114 = vunpack.c.h.b16 %v43
  %v115 = vunpack.c.l.b16 %v44
  %v116 = vunpack.c.l.b16 %v45
  %v117 = vunpack.c.h.b16 %v45
  %v118 = vunpack.c.l.b16 %v46
  %v119 = vunpack.c.l.b16 %v47
  %v120 = vunpack.c.h.b16 %v47
  %v121 = vunpack.c.l.b16 %v48
  %v122 = vunpack.c.l.b16 %v49
  %v123 = vunpack.c.h.b16 %v49
  %v124 = vunpack.c.l.b16 %v50
  %v125 = vunpack.c.l.b16 %v51
  %v126 = vunpack.c.h.b16 %v51
  %v127 = vunpack.c.l.b16 %v52
  %v128 = vunpack.c.l.b16 %v53
  %v129 = vunpack.c.h.b16 %v53
  %v130 = vunpack.c.l.b16 %v54
  %v131 = vunpack.c.l.b16 %v55
  %v132 = vunpack.c.h.b16 %v55
  %v133 = vunpack.c.l.b16 %v56
  %v134 = vunpack.c.l.b16 %v57
  %v135 = vunpack.c.h.b16 %v57
  %v136 = vunpack.c.l.b16 %v58
  %v137 = vunpack.c.l.b16 %v59
  %v138 = vunpack.c.h.b16 %v59
  %v139 = vunpack.c.l.b16 %v60
  %v140 = vunpack.c.l.b16 %v61
  %v141 = vunpack.c.h.b16 %v61
  %v142 = vunpack.c.l.b16 %v62
  %v143 = vpack.c.b16 %v98, %v95
  %v144 = vpack.c.b16 %v99, %v96
  %v145 = vpack.c.b16 %v100, %v97
  %v146 = vpack.c.b16 %v104, %v101
  %v147 = vpack.c.b16 %v105, %v102
  %v148 = vpack.c.b16 %v106, %v103
  %v149 = vpack.c.b16 %v110, %v107
  %v150 = vpack.c.b16 %v111, %v108
  %v151 = vpack.c.b16 %v112, %v109
  %v152 = vpack.c.b16 %v116, %v113
  %v153 = vpack.c.b16 %v117, %v114
  %v154 = vpack.c.b16 %v118, %v115
  %v155 = vpack.c.b16 %v122, %v119
  %v156 = vpack.c.b16 %v123, %v120
  %v157 = vpack.c.b16 %v124, %v121
  %v158 = vpack.c.b16 %v128, %v125
  %v159 = vpack.c.b16 %v129, %v126
  %v160 = vpack.c.b16 %v130, %v127
  %v161 = vpack.c.b16 %v134, %v131
  %v162 = vpack.c.b16 %v135, %v132
  %v163 = vpack.c.b16 %v136, %v133
  %v164 = vpack.c.b16 %v140, %v137
  %v165 = vpack.c.b16 %v141, %v138
  %v166 = vpack.c.b16 %v142, %v139
  %191 = vmatpush.bf16.msra.mxu0 %v164
  %192 = vmatpush.bf16.msra.mxu0 %v161
  %193 = vmatpush.bf16.msra.mxu0 %v158
  %194 = vmatpush.bf16.msra.mxu0 %v155
  %195 = vmatpush.bf16.msra.mxu0 %v152
  %196 = vmatpush.bf16.msra.mxu0 %v149
  %197 = vmatpush.bf16.msra.mxu0 %v146
  %198 = vmatpush.bf16.msra.mxu0 %v143
  %199 = vmatmul.bf16.gmra.mxu0 %v30
  %v200 = vpop.f32.mrf.mxu0
  %v201 = vadd.f32 0.0, %v200
  %v202 = vpop.f32.mrf.mxu0
  %203 = vdwg.mxu0
  %204 = vmatpush.bf16.msra.mxu0 %v165
  %205 = vmatpush.bf16.msra.mxu0 %v162
  %206 = vmatpush.bf16.msra.mxu0 %v159
  %207 = vmatpush.bf16.msra.mxu0 %v156
  %208 = vmatpush.bf16.msra.mxu0 %v153
  %209 = vmatpush.bf16.msra.mxu0 %v150
  %210 = vmatpush.bf16.msra.mxu0 %v147
  %211 = vmatpush.bf16.msra.mxu0 %v144
  %212 = vmatmul.bf16.gmra.mxu0 %v30
  %v213 = vpop.f32.mrf.mxu0
  %v214 = vadd.f32 0.0, %v213
  %v215 = vpop.f32.mrf.mxu0
  %216 = vdwg.mxu0
  %217 = vmatpush.bf16.msra.mxu0 %v166
  %218 = vmatpush.bf16.msra.mxu0 %v163
  %219 = vmatpush.bf16.msra.mxu0 %v160
  %220 = vmatpush.bf16.msra.mxu0 %v157
  %221 = vmatpush.bf16.msra.mxu0 %v154
  %222 = vmatpush.bf16.msra.mxu0 %v151
  %223 = vmatpush.bf16.msra.mxu0 %v148
  %224 = vmatpush.bf16.msra.mxu0 %v145
  %225 = vmatmul.bf16.gmra.mxu0 %v30
  %v226 = vpop.f32.mrf.mxu0
  %v227 = vadd.f32 0.0, %v226
  %v228 = vpop.f32.mrf.mxu0
  %229 = vdwg.mxu0
  %v230 = vadd.f32 %v27, %v201
  %v231 = vadd.f32 %v28, %v214
  %v232 = vxor.u32 %v230, 2147483648
  %v233 = vxor.u32 %v231, 2147483648
  %v234 = vmul.f32 %v232, 1.442695
  %v235 = vpow.pop %v234
  %v236 = vmul.f32 %v233, 1.442695
  %v237 = vpow.pop %v236
  %v238 = vadd.f32 %v235, 1.0
  %v239 = vadd.f32 %v237, 1.0
  %v240 = vrcp.pop %v238
  %v241 = vmul.f32 %v238, %v240
  %v242 = vsub.f32 1.0, %v241
  %v243 = vmul.f32 %v240, %v242
  %v244 = vadd.f32 %v240, %v243
  %vm245 = vweird.f32 %v238
  %vm246 = vweird.f32 %v240
  %vm247 = vmor %vm245, %vm246
  %v248 = vsel %vm247, %v240, %v244
  %v249 = vand.u32 2147483647, %v238
  %vm250 = vcmp.eq.f32.partialorder %v249, 8.507059e+37
  %v251 = vand.u32 %v238, 2147483648
  %v252 = vor.u32 1.1754944e-38, %v251
  %v253 = vsel %vm250, %v252, %v248
  %v254 = vmul.f32 1.0, %v253
  %v255 = vrcp.pop %v239
  %v256 = vmul.f32 %v239, %v255
  %v257 = vsub.f32 1.0, %v256
  %v258 = vmul.f32 %v255, %v257
  %v259 = vadd.f32 %v255, %v258
  %vm260 = vweird.f32 %v239
  %vm261 = vweird.f32 %v255
  %vm262 = vmor %vm260, %vm261
  %v263 = vsel %vm262, %v255, %v259
  %v264 = vand.u32 2147483647, %v239
  %vm265 = vcmp.eq.f32.partialorder %v264, 8.507059e+37
  %v266 = vand.u32 %v239, 2147483648
  %v267 = vor.u32 1.1754944e-38, %v266
  %v268 = vsel %vm265, %v267, %v263
  %v269 = vmul.f32 1.0, %v268
  %v271 = vperm.slane %v25, 0
  %v273 = vadd.f32 %v227, %v271
  %v274 = vmul.f32 %v254, %v273
  %v275 = vadd.f32 %v29, %v274
  %v276 = vtanh.pop %v275
  %v277 = vsub.f32 1.0, %v269
  %v278 = vmul.f32 %v277, %v276
  %v279 = vmul.f32 %v269, %v26
  %v280 = vadd.f32 %v278, %v279
  %281 = vst [vmem:[%s4] sm:$0xff] %v280
  %s282 = scalar_lea.vmem %s0, 24
  %v283 = vld [vmem:[%s282] sm:$0xff]
  %v284 = vld [vmem:[%s282 + $0x8] sm:$0xff]
  %v285 = vld [vmem:[%s282 + $0x10] sm:$0xff]
  %v286 = vpack.c.bf16 %v280, %v280
  %v287 = vld [vmem:[%s2] sm:$0xff]
  %v288 = vld [vmem:[%s2 + $0x8] sm:$0xf]
  %v289 = vld [vmem:[%s2 + $0xc] sm:$0xff]
  %v290 = vld [vmem:[%s2 + $0x14] sm:$0xf]
  %v291 = vld [vmem:[%s2 + $0x18] sm:$0xff]
  %v292 = vld [vmem:[%s2 + $0x20] sm:$0xf]
  %v293 = vld [vmem:[%s2 + $0x24] sm:$0xff]
  %v294 = vld [vmem:[%s2 + $0x2c] sm:$0xf]
  %v295 = vld [vmem:[%s2 + $0x30] sm:$0xff]
  %v296 = vld [vmem:[%s2 + $0x38] sm:$0xf]
  %v297 = vld [vmem:[%s2 + $0x3c] sm:$0xff]
  %v298 = vld [vmem:[%s2 + $0x44] sm:$0xf]
  %v299 = vld [vmem:[%s2 + $0x48] sm:$0xff]
  %v300 = vld [vmem:[%s2 + $0x50] sm:$0xf]
  %v301 = vld [vmem:[%s2 + $0x54] sm:$0xff]
  %v302 = vld [vmem:[%s2 + $0x5c] sm:$0xf]
  %v303 = vld [vmem:[%s2 + $0x60] sm:$0xff]
  %v304 = vld [vmem:[%s2 + $0x68] sm:$0xf]
  %v305 = vld [vmem:[%s2 + $0x6c] sm:$0xff]
  %v306 = vld [vmem:[%s2 + $0x74] sm:$0xf]
  %v307 = vld [vmem:[%s2 + $0x78] sm:$0xff]
  %v308 = vld [vmem:[%s2 + $0x80] sm:$0xf]
  %v309 = vld [vmem:[%s2 + $0x84] sm:$0xff]
  %v310 = vld [vmem:[%s2 + $0x8c] sm:$0xf]
  %v311 = vld [vmem:[%s2 + $0x90] sm:$0xff]
  %v312 = vld [vmem:[%s2 + $0x98] sm:$0xf]
  %v313 = vld [vmem:[%s2 + $0x9c] sm:$0xff]
  %v314 = vld [vmem:[%s2 + $0xa4] sm:$0xf]
  %v315 = vld [vmem:[%s2 + $0xa8] sm:$0xff]
  %v316 = vld [vmem:[%s2 + $0xb0] sm:$0xf]
  %v317 = vld [vmem:[%s2 + $0xb4] sm:$0xff]
  %v318 = vld [vmem:[%s2 + $0xbc] sm:$0xf]
  %v351 = vunpack.c.l.b16 %v287
  %v352 = vunpack.c.h.b16 %v287
  %v353 = vunpack.c.l.b16 %v288
  %v354 = vunpack.c.l.b16 %v289
  %v355 = vunpack.c.h.b16 %v289
  %v356 = vunpack.c.l.b16 %v290
  %v357 = vunpack.c.l.b16 %v291
  %v358 = vunpack.c.h.b16 %v291
  %v359 = vunpack.c.l.b16 %v292
  %v360 = vunpack.c.l.b16 %v293
  %v361 = vunpack.c.h.b16 %v293
  %v362 = vunpack.c.l.b16 %v294
  %v363 = vunpack.c.l.b16 %v295
  %v364 = vunpack.c.h.b16 %v295
  %v365 = vunpack.c.l.b16 %v296
  %v366 = vunpack.c.l.b16 %v297
  %v367 = vunpack.c.h.b16 %v297
  %v368 = vunpack.c.l.b16 %v298
  %v369 = vunpack.c.l.b16 %v299
  %v370 = vunpack.c.h.b16 %v299
  %v371 = vunpack.c.l.b16 %v300
  %v372 = vunpack.c.l.b16 %v301
  %v373 = vunpack.c.h.b16 %v301
  %v374 = vunpack.c.l.b16 %v302
  %v375 = vunpack.c.l.b16 %v303
  %v376 = vunpack.c.h.b16 %v303
  %v377 = vunpack.c.l.b16 %v304
  %v378 = vunpack.c.l.b16 %v305
  %v379 = vunpack.c.h.b16 %v305
  %v380 = vunpack.c.l.b16 %v306
  %v381 = vunpack.c.l.b16 %v307
  %v382 = vunpack.c.h.b16 %v307
  %v383 = vunpack.c.l.b16 %v308
  %v384 = vunpack.c.l.b16 %v309
  %v385 = vunpack.c.h.b16 %v309
  %v386 = vunpack.c.l.b16 %v310
  %v387 = vunpack.c.l.b16 %v311
  %v388 = vunpack.c.h.b16 %v311
  %v389 = vunpack.c.l.b16 %v312
  %v390 = vunpack.c.l.b16 %v313
  %v391 = vunpack.c.h.b16 %v313
  %v392 = vunpack.c.l.b16 %v314
  %v393 = vunpack.c.l.b16 %v315
  %v394 = vunpack.c.h.b16 %v315
  %v395 = vunpack.c.l.b16 %v316
  %v396 = vunpack.c.l.b16 %v317
  %v397 = vunpack.c.h.b16 %v317
  %v398 = vunpack.c.l.b16 %v318
  %v399 = vpack.c.b16 %v354, %v351
  %v400 = vpack.c.b16 %v355, %v352
  %v401 = vpack.c.b16 %v356, %v353
  %v402 = vpack.c.b16 %v360, %v357
  %v403 = vpack.c.b16 %v361, %v358
  %v404 = vpack.c.b16 %v362, %v359
  %v405 = vpack.c.b16 %v366, %v363
  %v406 = vpack.c.b16 %v367, %v364
  %v407 = vpack.c.b16 %v368, %v365
  %v408 = vpack.c.b16 %v372, %v369
  %v409 = vpack.c.b16 %v373, %v370
  %v410 = vpack.c.b16 %v374, %v371
  %v411 = vpack.c.b16 %v378, %v375
  %v412 = vpack.c.b16 %v379, %v376
  %v413 = vpack.c.b16 %v380, %v377
  %v414 = vpack.c.b16 %v384, %v381
  %v415 = vpack.c.b16 %v385, %v382
  %v416 = vpack.c.b16 %v386, %v383
  %v417 = vpack.c.b16 %v390, %v387
  %v418 = vpack.c.b16 %v391, %v388
  %v419 = vpack.c.b16 %v392, %v389
  %v420 = vpack.c.b16 %v396, %v393
  %v421 = vpack.c.b16 %v397, %v394
  %v422 = vpack.c.b16 %v398, %v395
  %447 = vmatpush.bf16.msra.mxu0 %v420
  %448 = vmatpush.bf16.msra.mxu0 %v417
  %449 = vmatpush.bf16.msra.mxu0 %v414
  %450 = vmatpush.bf16.msra.mxu0 %v411
  %451 = vmatpush.bf16.msra.mxu0 %v408
  %452 = vmatpush.bf16.msra.mxu0 %v405
  %453 = vmatpush.bf16.msra.mxu0 %v402
  %454 = vmatpush.bf16.msra.mxu0 %v399
  %455 = vmatmul.bf16.gmra.mxu0 %v286
  %v456 = vpop.f32.mrf.mxu0
  %v457 = vadd.f32 0.0, %v456
  %v458 = vpop.f32.mrf.mxu0
  %459 = vdwg.mxu0
  %460 = vmatpush.bf16.msra.mxu0 %v421
  %461 = vmatpush.bf16.msra.mxu0 %v418
  %462 = vmatpush.bf16.msra.mxu0 %v415
  %463 = vmatpush.bf16.msra.mxu0 %v412
  %464 = vmatpush.bf16.msra.mxu0 %v409
  %465 = vmatpush.bf16.msra.mxu0 %v406
  %466 = vmatpush.bf16.msra.mxu0 %v403
  %467 = vmatpush.bf16.msra.mxu0 %v400
  %468 = vmatmul.bf16.gmra.mxu0 %v286
  %v469 = vpop.f32.mrf.mxu0
  %v470 = vadd.f32 0.0, %v469
  %v471 = vpop.f32.mrf.mxu0
  %472 = vdwg.mxu0
  %473 = vmatpush.bf16.msra.mxu0 %v422
  %474 = vmatpush.bf16.msra.mxu0 %v419
  %475 = vmatpush.bf16.msra.mxu0 %v416
  %476 = vmatpush.bf16.msra.mxu0 %v413
  %477 = vmatpush.bf16.msra.mxu0 %v410
  %478 = vmatpush.bf16.msra.mxu0 %v407
  %479 = vmatpush.bf16.msra.mxu0 %v404
  %480 = vmatpush.bf16.msra.mxu0 %v401
  %481 = vmatmul.bf16.gmra.mxu0 %v286
  %v482 = vpop.f32.mrf.mxu0
  %v483 = vadd.f32 0.0, %v482
  %v484 = vpop.f32.mrf.mxu0
  %485 = vdwg.mxu0
  %v486 = vadd.f32 %v283, %v457
  %v487 = vadd.f32 %v284, %v470
  %v488 = vxor.u32 %v486, 2147483648
  %v489 = vxor.u32 %v487, 2147483648
  %v490 = vmul.f32 %v488, 1.442695
  %v491 = vpow.pop %v490
  %v492 = vmul.f32 %v489, 1.442695
  %v493 = vpow.pop %v492
  %v494 = vadd.f32 %v491, 1.0
  %v495 = vadd.f32 %v493, 1.0
  %v496 = vrcp.pop %v494
  %v497 = vmul.f32 %v494, %v496
  %v498 = vsub.f32 1.0, %v497
  %v499 = vmul.f32 %v496, %v498
  %v500 = vadd.f32 %v496, %v499
  %vm501 = vweird.f32 %v494
  %vm502 = vweird.f32 %v496
  %vm503 = vmor %vm501, %vm502
  %v504 = vsel %vm503, %v496, %v500
  %v505 = vand.u32 2147483647, %v494
  %vm506 = vcmp.eq.f32.partialorder %v505, 8.507059e+37
  %v507 = vand.u32 %v494, 2147483648
  %v508 = vor.u32 1.1754944e-38, %v507
  %v509 = vsel %vm506, %v508, %v504
  %v510 = vmul.f32 1.0, %v509
  %v511 = vrcp.pop %v495
  %v512 = vmul.f32 %v495, %v511
  %v513 = vsub.f32 1.0, %v512
  %v514 = vmul.f32 %v511, %v513
  %v515 = vadd.f32 %v511, %v514
  %vm516 = vweird.f32 %v495
  %vm517 = vweird.f32 %v511
  %vm518 = vmor %vm516, %vm517
  %v519 = vsel %vm518, %v511, %v515
  %v520 = vand.u32 2147483647, %v495
  %vm521 = vcmp.eq.f32.partialorder %v520, 8.507059e+37
  %v522 = vand.u32 %v495, 2147483648
  %v523 = vor.u32 1.1754944e-38, %v522
  %v524 = vsel %vm521, %v523, %v519
  %v525 = vmul.f32 1.0, %v524
  %v526 = vadd.f32 %v483, %v271
  %v527 = vmul.f32 %v510, %v526
  %v528 = vadd.f32 %v285, %v527
  %v529 = vtanh.pop %v528
  %v530 = vsub.f32 1.0, %v525
  %v531 = vmul.f32 %v530, %v529
  %v532 = vmul.f32 %v525, %v280
  %v533 = vadd.f32 %v531, %v532
  %s534 = scalar_lea.vmem %s4, 8
  %535 = vst [vmem:[%s534] sm:$0xff] %v533
  %s536 = scalar_lea.vmem %s0, 48
  %v537 = vld [vmem:[%s536] sm:$0xff]
  %v538 = vld [vmem:[%s536 + $0x8] sm:$0xff]
  %v539 = vld [vmem:[%s536 + $0x10] sm:$0xff]
  %v540 = vpack.c.bf16 %v533, %v533
  %v541 = vld [vmem:[%s2] sm:$0xff]
  %v542 = vld [vmem:[%s2 + $0x8] sm:$0xf]
  %v543 = vld [vmem:[%s2 + $0xc] sm:$0xff]
  %v544 = vld [vmem:[%s2 + $0x14] sm:$0xf]
  %v545 = vld [vmem:[%s2 + $0x18] sm:$0xff]
  %v546 = vld [vmem:[%s2 + $0x20] sm:$0xf]
  %v547 = vld [vmem:[%s2 + $0x24] sm:$0xff]
  %v548 = vld [vmem:[%s2 + $0x2c] sm:$0xf]
  %v549 = vld [vmem:[%s2 + $0x30] sm:$0xff]
  %v550 = vld [vmem:[%s2 + $0x38] sm:$0xf]
  %v551 = vld [vmem:[%s2 + $0x3c] sm:$0xff]
  %v552 = vld [vmem:[%s2 + $0x44] sm:$0xf]
  %v553 = vld [vmem:[%s2 + $0x48] sm:$0xff]
  %v554 = vld [vmem:[%s2 + $0x50] sm:$0xf]
  %v555 = vld [vmem:[%s2 + $0x54] sm:$0xff]
  %v556 = vld [vmem:[%s2 + $0x5c] sm:$0xf]
  %v557 = vld [vmem:[%s2 + $0x60] sm:$0xff]
  %v558 = vld [vmem:[%s2 + $0x68] sm:$0xf]
  %v559 = vld [vmem:[%s2 + $0x6c] sm:$0xff]
  %v560 = vld [vmem:[%s2 + $0x74] sm:$0xf]
  %v561 = vld [vmem:[%s2 + $0x78] sm:$0xff]
  %v562 = vld [vmem:[%s2 + $0x80] sm:$0xf]
  %v563 = vld [vmem:[%s2 + $0x84] sm:$0xff]
  %v564 = vld [vmem:[%s2 + $0x8c] sm:$0xf]
  %v565 = vld [vmem:[%s2 + $0x90] sm:$0xff]
  %v566 = vld [vmem:[%s2 + $0x98] sm:$0xf]
  %v567 = vld [vmem:[%s2 + $0x9c] sm:$0xff]
  %v568 = vld [vmem:[%s2 + $0xa4] sm:$0xf]
  %v569 = vld [vmem:[%s2 + $0xa8] sm:$0xff]
  %v570 = vld [vmem:[%s2 + $0xb0] sm:$0xf]
  %v571 = vld [vmem:[%s2 + $0xb4] sm:$0xff]
  %v572 = vld [vmem:[%s2 + $0xbc] sm:$0xf]
  %v605 = vunpack.c.l.b16 %v541
  %v606 = vunpack.c.h.b16 %v541
  %v607 = vunpack.c.l.b16 %v542
  %v608 = vunpack.c.l.b16 %v543
  %v609 = vunpack.c.h.b16 %v543
  %v610 = vunpack.c.l.b16 %v544
  %v611 = vunpack.c.l.b16 %v545
  %v612 = vunpack.c.h.b16 %v545
  %v613 = vunpack.c.l.b16 %v546
  %v614 = vunpack.c.l.b16 %v547
  %v615 = vunpack.c.h.b16 %v547
  %v616 = vunpack.c.l.b16 %v548
  %v617 = vunpack.c.l.b16 %v549
  %v618 = vunpack.c.h.b16 %v549
  %v619 = vunpack.c.l.b16 %v550
  %v620 = vunpack.c.l.b16 %v551
  %v621 = vunpack.c.h.b16 %v551
  %v622 = vunpack.c.l.b16 %v552
  %v623 = vunpack.c.l.b16 %v553
  %v624 = vunpack.c.h.b16 %v553
  %v625 = vunpack.c.l.b16 %v554
  %v626 = vunpack.c.l.b16 %v555
  %v627 = vunpack.c.h.b16 %v555
  %v628 = vunpack.c.l.b16 %v556
  %v629 = vunpack.c.l.b16 %v557
  %v630 = vunpack.c.h.b16 %v557
  %v631 = vunpack.c.l.b16 %v558
  %v632 = vunpack.c.l.b16 %v559
  %v633 = vunpack.c.h.b16 %v559
  %v634 = vunpack.c.l.b16 %v560
  %v635 = vunpack.c.l.b16 %v561
  %v636 = vunpack.c.h.b16 %v561
  %v637 = vunpack.c.l.b16 %v562
  %v638 = vunpack.c.l.b16 %v563
  %v639 = vunpack.c.h.b16 %v563
  %v640 = vunpack.c.l.b16 %v564
  %v641 = vunpack.c.l.b16 %v565
  %v642 = vunpack.c.h.b16 %v565
  %v643 = vunpack.c.l.b16 %v566
  %v644 = vunpack.c.l.b16 %v567
  %v645 = vunpack.c.h.b16 %v567
  %v646 = vunpack.c.l.b16 %v568
  %v647 = vunpack.c.l.b16 %v569
  %v648 = vunpack.c.h.b16 %v569
  %v649 = vunpack.c.l.b16 %v570
  %v650 = vunpack.c.l.b16 %v571
  %v651 = vunpack.c.h.b16 %v571
  %v652 = vunpack.c.l.b16 %v572
  %v653 = vpack.c.b16 %v608, %v605
  %v654 = vpack.c.b16 %v609, %v606
  %v655 = vpack.c.b16 %v610, %v607
  %v656 = vpack.c.b16 %v614, %v611
  %v657 = vpack.c.b16 %v615, %v612
  %v658 = vpack.c.b16 %v616, %v613
  %v659 = vpack.c.b16 %v620, %v617
  %v660 = vpack.c.b16 %v621, %v618
  %v661 = vpack.c.b16 %v622, %v619
  %v662 = vpack.c.b16 %v626, %v623
  %v663 = vpack.c.b16 %v627, %v624
  %v664 = vpack.c.b16 %v628, %v625
  %v665 = vpack.c.b16 %v632, %v629
  %v666 = vpack.c.b16 %v633, %v630
  %v667 = vpack.c.b16 %v634, %v631
  %v668 = vpack.c.b16 %v638, %v635
  %v669 = vpack.c.b16 %v639, %v636
  %v670 = vpack.c.b16 %v640, %v637
  %v671 = vpack.c.b16 %v644, %v641
  %v672 = vpack.c.b16 %v645, %v642
  %v673 = vpack.c.b16 %v646, %v643
  %v674 = vpack.c.b16 %v650, %v647
  %v675 = vpack.c.b16 %v651, %v648
  %v676 = vpack.c.b16 %v652, %v649
  %701 = vmatpush.bf16.msra.mxu0 %v674
  %702 = vmatpush.bf16.msra.mxu0 %v671
  %703 = vmatpush.bf16.msra.mxu0 %v668
  %704 = vmatpush.bf16.msra.mxu0 %v665
  %705 = vmatpush.bf16.msra.mxu0 %v662
  %706 = vmatpush.bf16.msra.mxu0 %v659
  %707 = vmatpush.bf16.msra.mxu0 %v656
  %708 = vmatpush.bf16.msra.mxu0 %v653
  %709 = vmatmul.bf16.gmra.mxu0 %v540
  %v710 = vpop.f32.mrf.mxu0
  %v711 = vadd.f32 0.0, %v710
  %v712 = vpop.f32.mrf.mxu0
  %713 = vdwg.mxu0
  %714 = vmatpush.bf16.msra.mxu0 %v675
  %715 = vmatpush.bf16.msra.mxu0 %v672
  %716 = vmatpush.bf16.msra.mxu0 %v669
  %717 = vmatpush.bf16.msra.mxu0 %v666
  %718 = vmatpush.bf16.msra.mxu0 %v663
  %719 = vmatpush.bf16.msra.mxu0 %v660
  %720 = vmatpush.bf16.msra.mxu0 %v657
  %721 = vmatpush.bf16.msra.mxu0 %v654
  %722 = vmatmul.bf16.gmra.mxu0 %v540
  %v723 = vpop.f32.mrf.mxu0
  %v724 = vadd.f32 0.0, %v723
  %v725 = vpop.f32.mrf.mxu0
  %726 = vdwg.mxu0
  %727 = vmatpush.bf16.msra.mxu0 %v676
  %728 = vmatpush.bf16.msra.mxu0 %v673
  %729 = vmatpush.bf16.msra.mxu0 %v670
  %730 = vmatpush.bf16.msra.mxu0 %v667
  %731 = vmatpush.bf16.msra.mxu0 %v664
  %732 = vmatpush.bf16.msra.mxu0 %v661
  %733 = vmatpush.bf16.msra.mxu0 %v658
  %734 = vmatpush.bf16.msra.mxu0 %v655
  %735 = vmatmul.bf16.gmra.mxu0 %v540
  %v736 = vpop.f32.mrf.mxu0
  %v737 = vadd.f32 0.0, %v736
  %v738 = vpop.f32.mrf.mxu0
  %739 = vdwg.mxu0
  %v740 = vadd.f32 %v537, %v711
  %v741 = vadd.f32 %v538, %v724
  %v742 = vxor.u32 %v740, 2147483648
  %v743 = vxor.u32 %v741, 2147483648
  %v744 = vmul.f32 %v742, 1.442695
  %v745 = vpow.pop %v744
  %v746 = vmul.f32 %v743, 1.442695
  %v747 = vpow.pop %v746
  %v748 = vadd.f32 %v745, 1.0
  %v749 = vadd.f32 %v747, 1.0
  %v750 = vrcp.pop %v748
  %v751 = vmul.f32 %v748, %v750
  %v752 = vsub.f32 1.0, %v751
  %v753 = vmul.f32 %v750, %v752
  %v754 = vadd.f32 %v750, %v753
  %vm755 = vweird.f32 %v748
  %vm756 = vweird.f32 %v750
  %vm757 = vmor %vm755, %vm756
  %v758 = vsel %vm757, %v750, %v754
  %v759 = vand.u32 2147483647, %v748
  %vm760 = vcmp.eq.f32.partialorder %v759, 8.507059e+37
  %v761 = vand.u32 %v748, 2147483648
  %v762 = vor.u32 1.1754944e-38, %v761
  %v763 = vsel %vm760, %v762, %v758
  %v764 = vmul.f32 1.0, %v763
  %v765 = vrcp.pop %v749
  %v766 = vmul.f32 %v749, %v765
  %v767 = vsub.f32 1.0, %v766
  %v768 = vmul.f32 %v765, %v767
  %v769 = vadd.f32 %v765, %v768
  %vm770 = vweird.f32 %v749
  %vm771 = vweird.f32 %v765
  %vm772 = vmor %vm770, %vm771
  %v773 = vsel %vm772, %v765, %v769
  %v774 = vand.u32 2147483647, %v749
  %vm775 = vcmp.eq.f32.partialorder %v774, 8.507059e+37
  %v776 = vand.u32 %v749, 2147483648
  %v777 = vor.u32 1.1754944e-38, %v776
  %v778 = vsel %vm775, %v777, %v773
  %v779 = vmul.f32 1.0, %v778
  %v780 = vadd.f32 %v737, %v271
  %v781 = vmul.f32 %v764, %v780
  %v782 = vadd.f32 %v539, %v781
  %v783 = vtanh.pop %v782
  %v784 = vsub.f32 1.0, %v779
  %v785 = vmul.f32 %v784, %v783
  %v786 = vmul.f32 %v779, %v533
  %v787 = vadd.f32 %v785, %v786
  %s788 = scalar_lea.vmem %s4, 16
  %789 = vst [vmem:[%s788] sm:$0xff] %v787
  %s790 = scalar_lea.vmem %s0, 72
  %v791 = vld [vmem:[%s790] sm:$0xff]
  %v792 = vld [vmem:[%s790 + $0x8] sm:$0xff]
  %v793 = vld [vmem:[%s790 + $0x10] sm:$0xff]
  %v794 = vpack.c.bf16 %v787, %v787
  %v795 = vld [vmem:[%s2] sm:$0xff]
  %v796 = vld [vmem:[%s2 + $0x8] sm:$0xf]
  %v797 = vld [vmem:[%s2 + $0xc] sm:$0xff]
  %v798 = vld [vmem:[%s2 + $0x14] sm:$0xf]
  %v799 = vld [vmem:[%s2 + $0x18] sm:$0xff]
  %v800 = vld [vmem:[%s2 + $0x20] sm:$0xf]
  %v801 = vld [vmem:[%s2 + $0x24] sm:$0xff]
  %v802 = vld [vmem:[%s2 + $0x2c] sm:$0xf]
  %v803 = vld [vmem:[%s2 + $0x30] sm:$0xff]
  %v804 = vld [vmem:[%s2 + $0x38] sm:$0xf]
  %v805 = vld [vmem:[%s2 + $0x3c] sm:$0xff]
  %v806 = vld [vmem:[%s2 + $0x44] sm:$0xf]
  %v807 = vld [vmem:[%s2 + $0x48] sm:$0xff]
  %v808 = vld [vmem:[%s2 + $0x50] sm:$0xf]
  %v809 = vld [vmem:[%s2 + $0x54] sm:$0xff]
  %v810 = vld [vmem:[%s2 + $0x5c] sm:$0xf]
  %v811 = vld [vmem:[%s2 + $0x60] sm:$0xff]
  %v812 = vld [vmem:[%s2 + $0x68] sm:$0xf]
  %v813 = vld [vmem:[%s2 + $0x6c] sm:$0xff]
  %v814 = vld [vmem:[%s2 + $0x74] sm:$0xf]
  %v815 = vld [vmem:[%s2 + $0x78] sm:$0xff]
  %v816 = vld [vmem:[%s2 + $0x80] sm:$0xf]
  %v817 = vld [vmem:[%s2 + $0x84] sm:$0xff]
  %v818 = vld [vmem:[%s2 + $0x8c] sm:$0xf]
  %v819 = vld [vmem:[%s2 + $0x90] sm:$0xff]
  %v820 = vld [vmem:[%s2 + $0x98] sm:$0xf]
  %v821 = vld [vmem:[%s2 + $0x9c] sm:$0xff]
  %v822 = vld [vmem:[%s2 + $0xa4] sm:$0xf]
  %v823 = vld [vmem:[%s2 + $0xa8] sm:$0xff]
  %v824 = vld [vmem:[%s2 + $0xb0] sm:$0xf]
  %v825 = vld [vmem:[%s2 + $0xb4] sm:$0xff]
  %v826 = vld [vmem:[%s2 + $0xbc] sm:$0xf]
  %v859 = vunpack.c.l.b16 %v795
  %v860 = vunpack.c.h.b16 %v795
  %v861 = vunpack.c.l.b16 %v796
  %v862 = vunpack.c.l.b16 %v797
  %v863 = vunpack.c.h.b16 %v797
  %v864 = vunpack.c.l.b16 %v798
  %v865 = vunpack.c.l.b16 %v799
  %v866 = vunpack.c.h.b16 %v799
  %v867 = vunpack.c.l.b16 %v800
  %v868 = vunpack.c.l.b16 %v801
  %v869 = vunpack.c.h.b16 %v801
  %v870 = vunpack.c.l.b16 %v802
  %v871 = vunpack.c.l.b16 %v803
  %v872 = vunpack.c.h.b16 %v803
  %v873 = vunpack.c.l.b16 %v804
  %v874 = vunpack.c.l.b16 %v805
  %v875 = vunpack.c.h.b16 %v805
  %v876 = vunpack.c.l.b16 %v806
  %v877 = vunpack.c.l.b16 %v807
  %v878 = vunpack.c.h.b16 %v807
  %v879 = vunpack.c.l.b16 %v808
  %v880 = vunpack.c.l.b16 %v809
  %v881 = vunpack.c.h.b16 %v809
  %v882 = vunpack.c.l.b16 %v810
  %v883 = vunpack.c.l.b16 %v811
  %v884 = vunpack.c.h.b16 %v811
  %v885 = vunpack.c.l.b16 %v812
  %v886 = vunpack.c.l.b16 %v813
  %v887 = vunpack.c.h.b16 %v813
  %v888 = vunpack.c.l.b16 %v814
  %v889 = vunpack.c.l.b16 %v815
  %v890 = vunpack.c.h.b16 %v815
  %v891 = vunpack.c.l.b16 %v816
  %v892 = vunpack.c.l.b16 %v817
  %v893 = vunpack.c.h.b16 %v817
  %v894 = vunpack.c.l.b16 %v818
  %v895 = vunpack.c.l.b16 %v819
  %v896 = vunpack.c.h.b16 %v819
  %v897 = vunpack.c.l.b16 %v820
  %v898 = vunpack.c.l.b16 %v821
  %v899 = vunpack.c.h.b16 %v821
  %v900 = vunpack.c.l.b16 %v822
  %v901 = vunpack.c.l.b16 %v823
  %v902 = vunpack.c.h.b16 %v823
  %v903 = vunpack.c.l.b16 %v824
  %v904 = vunpack.c.l.b16 %v825
  %v905 = vunpack.c.h.b16 %v825
  %v906 = vunpack.c.l.b16 %v826
  %v907 = vpack.c.b16 %v862, %v859
  %v908 = vpack.c.b16 %v863, %v860
  %v909 = vpack.c.b16 %v864, %v861
  %v910 = vpack.c.b16 %v868, %v865
  %v911 = vpack.c.b16 %v869, %v866
  %v912 = vpack.c.b16 %v870, %v867
  %v913 = vpack.c.b16 %v874, %v871
  %v914 = vpack.c.b16 %v875, %v872
  %v915 = vpack.c.b16 %v876, %v873
  %v916 = vpack.c.b16 %v880, %v877
  %v917 = vpack.c.b16 %v881, %v878
  %v918 = vpack.c.b16 %v882, %v879
  %v919 = vpack.c.b16 %v886, %v883
  %v920 = vpack.c.b16 %v887, %v884
  %v921 = vpack.c.b16 %v888, %v885
  %v922 = vpack.c.b16 %v892, %v889
  %v923 = vpack.c.b16 %v893, %v890
  %v924 = vpack.c.b16 %v894, %v891
  %v925 = vpack.c.b16 %v898, %v895
  %v926 = vpack.c.b16 %v899, %v896
  %v927 = vpack.c.b16 %v900, %v897
  %v928 = vpack.c.b16 %v904, %v901
  %v929 = vpack.c.b16 %v905, %v902
  %v930 = vpack.c.b16 %v906, %v903
  %955 = vmatpush.bf16.msra.mxu0 %v928
  %956 = vmatpush.bf16.msra.mxu0 %v925
  %957 = vmatpush.bf16.msra.mxu0 %v922
  %958 = vmatpush.bf16.msra.mxu0 %v919
  %959 = vmatpush.bf16.msra.mxu0 %v916
  %960 = vmatpush.bf16.msra.mxu0 %v913
  %961 = vmatpush.bf16.msra.mxu0 %v910
  %962 = vmatpush.bf16.msra.mxu0 %v907
  %963 = vmatmul.bf16.gmra.mxu0 %v794
  %v964 = vpop.f32.mrf.mxu0
  %v965 = vadd.f32 0.0, %v964
  %v966 = vpop.f32.mrf.mxu0
  %967 = vdwg.mxu0
  %968 = vmatpush.bf16.msra.mxu0 %v929
  %969 = vmatpush.bf16.msra.mxu0 %v926
  %970 = vmatpush.bf16.msra.mxu0 %v923
  %971 = vmatpush.bf16.msra.mxu0 %v920
  %972 = vmatpush.bf16.msra.mxu0 %v917
  %973 = vmatpush.bf16.msra.mxu0 %v914
  %974 = vmatpush.bf16.msra.mxu0 %v911
  %975 = vmatpush.bf16.msra.mxu0 %v908
  %976 = vmatmul.bf16.gmra.mxu0 %v794
  %v977 = vpop.f32.mrf.mxu0
  %v978 = vadd.f32 0.0, %v977
  %v979 = vpop.f32.mrf.mxu0
  %980 = vdwg.mxu0
  %981 = vmatpush.bf16.msra.mxu0 %v930
  %982 = vmatpush.bf16.msra.mxu0 %v927
  %983 = vmatpush.bf16.msra.mxu0 %v924
  %984 = vmatpush.bf16.msra.mxu0 %v921
  %985 = vmatpush.bf16.msra.mxu0 %v918
  %986 = vmatpush.bf16.msra.mxu0 %v915
  %987 = vmatpush.bf16.msra.mxu0 %v912
  %988 = vmatpush.bf16.msra.mxu0 %v909
  %989 = vmatmul.bf16.gmra.mxu0 %v794
  %v990 = vpop.f32.mrf.mxu0
  %v991 = vadd.f32 0.0, %v990
  %v992 = vpop.f32.mrf.mxu0
  %993 = vdwg.mxu0
  %v994 = vadd.f32 %v791, %v965
  %v995 = vadd.f32 %v792, %v978
  %v996 = vxor.u32 %v994, 2147483648
  %v997 = vxor.u32 %v995, 2147483648
  %v998 = vmul.f32 %v996, 1.442695
  %v999 = vpow.pop %v998
  %v1000 = vmul.f32 %v997, 1.442695
  %v1001 = vpow.pop %v1000
  %v1002 = vadd.f32 %v999, 1.0
  %v1003 = vadd.f32 %v1001, 1.0
  %v1004 = vrcp.pop %v1002
  %v1005 = vmul.f32 %v1002, %v1004
  %v1006 = vsub.f32 1.0, %v1005
  %v1007 = vmul.f32 %v1004, %v1006
  %v1008 = vadd.f32 %v1004, %v1007
  %vm1009 = vweird.f32 %v1002
  %vm1010 = vweird.f32 %v1004
  %vm1011 = vmor %vm1009, %vm1010
  %v1012 = vsel %vm1011, %v1004, %v1008
  %v1013 = vand.u32 2147483647, %v1002
  %vm1014 = vcmp.eq.f32.partialorder %v1013, 8.507059e+37
  %v1015 = vand.u32 %v1002, 2147483648
  %v1016 = vor.u32 1.1754944e-38, %v1015
  %v1017 = vsel %vm1014, %v1016, %v1012
  %v1018 = vmul.f32 1.0, %v1017
  %v1019 = vrcp.pop %v1003
  %v1020 = vmul.f32 %v1003, %v1019
  %v1021 = vsub.f32 1.0, %v1020
  %v1022 = vmul.f32 %v1019, %v1021
  %v1023 = vadd.f32 %v1019, %v1022
  %vm1024 = vweird.f32 %v1003
  %vm1025 = vweird.f32 %v1019
  %vm1026 = vmor %vm1024, %vm1025
  %v1027 = vsel %vm1026, %v1019, %v1023
  %v1028 = vand.u32 2147483647, %v1003
  %vm1029 = vcmp.eq.f32.partialorder %v1028, 8.507059e+37
  %v1030 = vand.u32 %v1003, 2147483648
  %v1031 = vor.u32 1.1754944e-38, %v1030
  %v1032 = vsel %vm1029, %v1031, %v1027
  %v1033 = vmul.f32 1.0, %v1032
  %v1034 = vadd.f32 %v991, %v271
  %v1035 = vmul.f32 %v1018, %v1034
  %v1036 = vadd.f32 %v793, %v1035
  %v1037 = vtanh.pop %v1036
  %v1038 = vsub.f32 1.0, %v1033
  %v1039 = vmul.f32 %v1038, %v1037
  %v1040 = vmul.f32 %v1033, %v787
  %v1041 = vadd.f32 %v1039, %v1040
  %s1042 = scalar_lea.vmem %s4, 24
  %1043 = vst [vmem:[%s1042] sm:$0xff] %v1041
  %s1044 = scalar_lea.vmem %s0, 96
  %v1045 = vld [vmem:[%s1044] sm:$0xff]
  %v1046 = vld [vmem:[%s1044 + $0x8] sm:$0xff]
  %v1047 = vld [vmem:[%s1044 + $0x10] sm:$0xff]
  %v1048 = vpack.c.bf16 %v1041, %v1041
  %v1049 = vld [vmem:[%s2] sm:$0xff]
  %v1050 = vld [vmem:[%s2 + $0x8] sm:$0xf]
  %v1051 = vld [vmem:[%s2 + $0xc] sm:$0xff]
  %v1052 = vld [vmem:[%s2 + $0x14] sm:$0xf]
  %v1053 = vld [vmem:[%s2 + $0x18] sm:$0xff]
  %v1054 = vld [vmem:[%s2 + $0x20] sm:$0xf]
  %v1055 = vld [vmem:[%s2 + $0x24] sm:$0xff]
  %v1056 = vld [vmem:[%s2 + $0x2c] sm:$0xf]
  %v1057 = vld [vmem:[%s2 + $0x30] sm:$0xff]
  %v1058 = vld [vmem:[%s2 + $0x38] sm:$0xf]
  %v1059 = vld [vmem:[%s2 + $0x3c] sm:$0xff]
  %v1060 = vld [vmem:[%s2 + $0x44] sm:$0xf]
  %v1061 = vld [vmem:[%s2 + $0x48] sm:$0xff]
  %v1062 = vld [vmem:[%s2 + $0x50] sm:$0xf]
  %v1063 = vld [vmem:[%s2 + $0x54] sm:$0xff]
  %v1064 = vld [vmem:[%s2 + $0x5c] sm:$0xf]
  %v1065 = vld [vmem:[%s2 + $0x60] sm:$0xff]
  %v1066 = vld [vmem:[%s2 + $0x68] sm:$0xf]
  %v1067 = vld [vmem:[%s2 + $0x6c] sm:$0xff]
  %v1068 = vld [vmem:[%s2 + $0x74] sm:$0xf]
  %v1069 = vld [vmem:[%s2 + $0x78] sm:$0xff]
  %v1070 = vld [vmem:[%s2 + $0x80] sm:$0xf]
  %v1071 = vld [vmem:[%s2 + $0x84] sm:$0xff]
  %v1072 = vld [vmem:[%s2 + $0x8c] sm:$0xf]
  %v1073 = vld [vmem:[%s2 + $0x90] sm:$0xff]
  %v1074 = vld [vmem:[%s2 + $0x98] sm:$0xf]
  %v1075 = vld [vmem:[%s2 + $0x9c] sm:$0xff]
  %v1076 = vld [vmem:[%s2 + $0xa4] sm:$0xf]
  %v1077 = vld [vmem:[%s2 + $0xa8] sm:$0xff]
  %v1078 = vld [vmem:[%s2 + $0xb0] sm:$0xf]
  %v1079 = vld [vmem:[%s2 + $0xb4] sm:$0xff]
  %v1080 = vld [vmem:[%s2 + $0xbc] sm:$0xf]
  %v1113 = vunpack.c.l.b16 %v1049
  %v1114 = vunpack.c.h.b16 %v1049
  %v1115 = vunpack.c.l.b16 %v1050
  %v1116 = vunpack.c.l.b16 %v1051
  %v1117 = vunpack.c.h.b16 %v1051
  %v1118 = vunpack.c.l.b16 %v1052
  %v1119 = vunpack.c.l.b16 %v1053
  %v1120 = vunpack.c.h.b16 %v1053
  %v1121 = vunpack.c.l.b16 %v1054
  %v1122 = vunpack.c.l.b16 %v1055
  %v1123 = vunpack.c.h.b16 %v1055
  %v1124 = vunpack.c.l.b16 %v1056
  %v1125 = vunpack.c.l.b16 %v1057
  %v1126 = vunpack.c.h.b16 %v1057
  %v1127 = vunpack.c.l.b16 %v1058
  %v1128 = vunpack.c.l.b16 %v1059
  %v1129 = vunpack.c.h.b16 %v1059
  %v1130 = vunpack.c.l.b16 %v1060
  %v1131 = vunpack.c.l.b16 %v1061
  %v1132 = vunpack.c.h.b16 %v1061
  %v1133 = vunpack.c.l.b16 %v1062
  %v1134 = vunpack.c.l.b16 %v1063
  %v1135 = vunpack.c.h.b16 %v1063
  %v1136 = vunpack.c.l.b16 %v1064
  %v1137 = vunpack.c.l.b16 %v1065
  %v1138 = vunpack.c.h.b16 %v1065
  %v1139 = vunpack.c.l.b16 %v1066
  %v1140 = vunpack.c.l.b16 %v1067
  %v1141 = vunpack.c.h.b16 %v1067
  %v1142 = vunpack.c.l.b16 %v1068
  %v1143 = vunpack.c.l.b16 %v1069
  %v1144 = vunpack.c.h.b16 %v1069
  %v1145 = vunpack.c.l.b16 %v1070
  %v1146 = vunpack.c.l.b16 %v1071
  %v1147 = vunpack.c.h.b16 %v1071
  %v1148 = vunpack.c.l.b16 %v1072
  %v1149 = vunpack.c.l.b16 %v1073
  %v1150 = vunpack.c.h.b16 %v1073
  %v1151 = vunpack.c.l.b16 %v1074
  %v1152 = vunpack.c.l.b16 %v1075
  %v1153 = vunpack.c.h.b16 %v1075
  %v1154 = vunpack.c.l.b16 %v1076
  %v1155 = vunpack.c.l.b16 %v1077
  %v1156 = vunpack.c.h.b16 %v1077
  %v1157 = vunpack.c.l.b16 %v1078
  %v1158 = vunpack.c.l.b16 %v1079
  %v1159 = vunpack.c.h.b16 %v1079
  %v1160 = vunpack.c.l.b16 %v1080
  %v1161 = vpack.c.b16 %v1116, %v1113
  %v1162 = vpack.c.b16 %v1117, %v1114
  %v1163 = vpack.c.b16 %v1118, %v1115
  %v1164 = vpack.c.b16 %v1122, %v1119
  %v1165 = vpack.c.b16 %v1123, %v1120
  %v1166 = vpack.c.b16 %v1124, %v1121
  %v1167 = vpack.c.b16 %v1128, %v1125
  %v1168 = vpack.c.b16 %v1129, %v1126
  %v1169 = vpack.c.b16 %v1130, %v1127
  %v1170 = vpack.c.b16 %v1134, %v1131
  %v1171 = vpack.c.b16 %v1135, %v1132
  %v1172 = vpack.c.b16 %v1136, %v1133
  %v1173 = vpack.c.b16 %v1140, %v1137
  %v1174 = vpack.c.b16 %v1141, %v1138
  %v1175 = vpack.c.b16 %v1142, %v1139
  %v1176 = vpack.c.b16 %v1146, %v1143
  %v1177 = vpack.c.b16 %v1147, %v1144
  %v1178 = vpack.c.b16 %v1148, %v1145
  %v1179 = vpack.c.b16 %v1152, %v1149
  %v1180 = vpack.c.b16 %v1153, %v1150
  %v1181 = vpack.c.b16 %v1154, %v1151
  %v1182 = vpack.c.b16 %v1158, %v1155
  %v1183 = vpack.c.b16 %v1159, %v1156
  %v1184 = vpack.c.b16 %v1160, %v1157
  %1209 = vmatpush.bf16.msra.mxu0 %v1182
  %1210 = vmatpush.bf16.msra.mxu0 %v1179
  %1211 = vmatpush.bf16.msra.mxu0 %v1176
  %1212 = vmatpush.bf16.msra.mxu0 %v1173
  %1213 = vmatpush.bf16.msra.mxu0 %v1170
  %1214 = vmatpush.bf16.msra.mxu0 %v1167
  %1215 = vmatpush.bf16.msra.mxu0 %v1164
  %1216 = vmatpush.bf16.msra.mxu0 %v1161
  %1217 = vmatmul.bf16.gmra.mxu0 %v1048
  %v1218 = vpop.f32.mrf.mxu0
  %v1219 = vadd.f32 0.0, %v1218
  %v1220 = vpop.f32.mrf.mxu0
  %1221 = vdwg.mxu0
  %1222 = vmatpush.bf16.msra.mxu0 %v1183
  %1223 = vmatpush.bf16.msra.mxu0 %v1180
  %1224 = vmatpush.bf16.msra.mxu0 %v1177
  %1225 = vmatpush.bf16.msra.mxu0 %v1174
  %1226 = vmatpush.bf16.msra.mxu0 %v1171
  %1227 = vmatpush.bf16.msra.mxu0 %v1168
  %1228 = vmatpush.bf16.msra.mxu0 %v1165
  %1229 = vmatpush.bf16.msra.mxu0 %v1162
  %1230 = vmatmul.bf16.gmra.mxu0 %v1048
  %v1231 = vpop.f32.mrf.mxu0
  %v1232 = vadd.f32 0.0, %v1231
  %v1233 = vpop.f32.mrf.mxu0
  %1234 = vdwg.mxu0
  %1235 = vmatpush.bf16.msra.mxu0 %v1184
  %1236 = vmatpush.bf16.msra.mxu0 %v1181
  %1237 = vmatpush.bf16.msra.mxu0 %v1178
  %1238 = vmatpush.bf16.msra.mxu0 %v1175
  %1239 = vmatpush.bf16.msra.mxu0 %v1172
  %1240 = vmatpush.bf16.msra.mxu0 %v1169
  %1241 = vmatpush.bf16.msra.mxu0 %v1166
  %1242 = vmatpush.bf16.msra.mxu0 %v1163
  %1243 = vmatmul.bf16.gmra.mxu0 %v1048
  %v1244 = vpop.f32.mrf.mxu0
  %v1245 = vadd.f32 0.0, %v1244
  %v1246 = vpop.f32.mrf.mxu0
  %1247 = vdwg.mxu0
  %v1248 = vadd.f32 %v1045, %v1219
  %v1249 = vadd.f32 %v1046, %v1232
  %v1250 = vxor.u32 %v1248, 2147483648
  %v1251 = vxor.u32 %v1249, 2147483648
  %v1252 = vmul.f32 %v1250, 1.442695
  %v1253 = vpow.pop %v1252
  %v1254 = vmul.f32 %v1251, 1.442695
  %v1255 = vpow.pop %v1254
  %v1256 = vadd.f32 %v1253, 1.0
  %v1257 = vadd.f32 %v1255, 1.0
  %v1258 = vrcp.pop %v1256
  %v1259 = vmul.f32 %v1256, %v1258
  %v1260 = vsub.f32 1.0, %v1259
  %v1261 = vmul.f32 %v1258, %v1260
  %v1262 = vadd.f32 %v1258, %v1261
  %vm1263 = vweird.f32 %v1256
  %vm1264 = vweird.f32 %v1258
  %vm1265 = vmor %vm1263, %vm1264
  %v1266 = vsel %vm1265, %v1258, %v1262
  %v1267 = vand.u32 2147483647, %v1256
  %vm1268 = vcmp.eq.f32.partialorder %v1267, 8.507059e+37
  %v1269 = vand.u32 %v1256, 2147483648
  %v1270 = vor.u32 1.1754944e-38, %v1269
  %v1271 = vsel %vm1268, %v1270, %v1266
  %v1272 = vmul.f32 1.0, %v1271
  %v1273 = vrcp.pop %v1257
  %v1274 = vmul.f32 %v1257, %v1273
  %v1275 = vsub.f32 1.0, %v1274
  %v1276 = vmul.f32 %v1273, %v1275
  %v1277 = vadd.f32 %v1273, %v1276
  %vm1278 = vweird.f32 %v1257
  %vm1279 = vweird.f32 %v1273
  %vm1280 = vmor %vm1278, %vm1279
  %v1281 = vsel %vm1280, %v1273, %v1277
  %v1282 = vand.u32 2147483647, %v1257
  %vm1283 = vcmp.eq.f32.partialorder %v1282, 8.507059e+37
  %v1284 = vand.u32 %v1257, 2147483648
  %v1285 = vor.u32 1.1754944e-38, %v1284
  %v1286 = vsel %vm1283, %v1285, %v1281
  %v1287 = vmul.f32 1.0, %v1286
  %v1288 = vadd.f32 %v1245, %v271
  %v1289 = vmul.f32 %v1272, %v1288
  %v1290 = vadd.f32 %v1047, %v1289
  %v1291 = vtanh.pop %v1290
  %v1292 = vsub.f32 1.0, %v1287
  %v1293 = vmul.f32 %v1292, %v1291
  %v1294 = vmul.f32 %v1287, %v1041
  %v1295 = vadd.f32 %v1293, %v1294
  %s1296 = scalar_lea.vmem %s4, 32
  %1297 = vst [vmem:[%s1296] sm:$0xff] %v1295
  %s1298 = scalar_lea.vmem %s0, 120
  %v1299 = vld [vmem:[%s1298] sm:$0xff]
  %v1300 = vld [vmem:[%s1298 + $0x8] sm:$0xff]
  %v1301 = vld [vmem:[%s1298 + $0x10] sm:$0xff]
  %v1302 = vpack.c.bf16 %v1295, %v1295
  %v1303 = vld [vmem:[%s2] sm:$0xff]
  %v1304 = vld [vmem:[%s2 + $0x8] sm:$0xf]
  %v1305 = vld [vmem:[%s2 + $0xc] sm:$0xff]
  %v1306 = vld [vmem:[%s2 + $0x14] sm:$0xf]
  %v1307 = vld [vmem:[%s2 + $0x18] sm:$0xff]
  %v1308 = vld [vmem:[%s2 + $0x20] sm:$0xf]
  %v1309 = vld [vmem:[%s2 + $0x24] sm:$0xff]
  %v1310 = vld [vmem:[%s2 + $0x2c] sm:$0xf]
  %v1311 = vld [vmem:[%s2 + $0x30] sm:$0xff]
  %v1312 = vld [vmem:[%s2 + $0x38] sm:$0xf]
  %v1313 = vld [vmem:[%s2 + $0x3c] sm:$0xff]
  %v1314 = vld [vmem:[%s2 + $0x44] sm:$0xf]
  %v1315 = vld [vmem:[%s2 + $0x48] sm:$0xff]
  %v1316 = vld [vmem:[%s2 + $0x50] sm:$0xf]
  %v1317 = vld [vmem:[%s2 + $0x54] sm:$0xff]
  %v1318 = vld [vmem:[%s2 + $0x5c] sm:$0xf]
  %v1319 = vld [vmem:[%s2 + $0x60] sm:$0xff]
  %v1320 = vld [vmem:[%s2 + $0x68] sm:$0xf]
  %v1321 = vld [vmem:[%s2 + $0x6c] sm:$0xff]
  %v1322 = vld [vmem:[%s2 + $0x74] sm:$0xf]
  %v1323 = vld [vmem:[%s2 + $0x78] sm:$0xff]
  %v1324 = vld [vmem:[%s2 + $0x80] sm:$0xf]
  %v1325 = vld [vmem:[%s2 + $0x84] sm:$0xff]
  %v1326 = vld [vmem:[%s2 + $0x8c] sm:$0xf]
  %v1327 = vld [vmem:[%s2 + $0x90] sm:$0xff]
  %v1328 = vld [vmem:[%s2 + $0x98] sm:$0xf]
  %v1329 = vld [vmem:[%s2 + $0x9c] sm:$0xff]
  %v1330 = vld [vmem:[%s2 + $0xa4] sm:$0xf]
  %v1331 = vld [vmem:[%s2 + $0xa8] sm:$0xff]
  %v1332 = vld [vmem:[%s2 + $0xb0] sm:$0xf]
  %v1333 = vld [vmem:[%s2 + $0xb4] sm:$0xff]
  %v1334 = vld [vmem:[%s2 + $0xbc] sm:$0xf]
  %v1367 = vunpack.c.l.b16 %v1303
  %v1368 = vunpack.c.h.b16 %v1303
  %v1369 = vunpack.c.l.b16 %v1304
  %v1370 = vunpack.c.l.b16 %v1305
  %v1371 = vunpack.c.h.b16 %v1305
  %v1372 = vunpack.c.l.b16 %v1306
  %v1373 = vunpack.c.l.b16 %v1307
  %v1374 = vunpack.c.h.b16 %v1307
  %v1375 = vunpack.c.l.b16 %v1308
  %v1376 = vunpack.c.l.b16 %v1309
  %v1377 = vunpack.c.h.b16 %v1309
  %v1378 = vunpack.c.l.b16 %v1310
  %v1379 = vunpack.c.l.b16 %v1311
  %v1380 = vunpack.c.h.b16 %v1311
  %v1381 = vunpack.c.l.b16 %v1312
  %v1382 = vunpack.c.l.b16 %v1313
  %v1383 = vunpack.c.h.b16 %v1313
  %v1384 = vunpack.c.l.b16 %v1314
  %v1385 = vunpack.c.l.b16 %v1315
  %v1386 = vunpack.c.h.b16 %v1315
  %v1387 = vunpack.c.l.b16 %v1316
  %v1388 = vunpack.c.l.b16 %v1317
  %v1389 = vunpack.c.h.b16 %v1317
  %v1390 = vunpack.c.l.b16 %v1318
  %v1391 = vunpack.c.l.b16 %v1319
  %v1392 = vunpack.c.h.b16 %v1319
  %v1393 = vunpack.c.l.b16 %v1320
  %v1394 = vunpack.c.l.b16 %v1321
  %v1395 = vunpack.c.h.b16 %v1321
  %v1396 = vunpack.c.l.b16 %v1322
  %v1397 = vunpack.c.l.b16 %v1323
  %v1398 = vunpack.c.h.b16 %v1323
  %v1399 = vunpack.c.l.b16 %v1324
  %v1400 = vunpack.c.l.b16 %v1325
  %v1401 = vunpack.c.h.b16 %v1325
  %v1402 = vunpack.c.l.b16 %v1326
  %v1403 = vunpack.c.l.b16 %v1327
  %v1404 = vunpack.c.h.b16 %v1327
  %v1405 = vunpack.c.l.b16 %v1328
  %v1406 = vunpack.c.l.b16 %v1329
  %v1407 = vunpack.c.h.b16 %v1329
  %v1408 = vunpack.c.l.b16 %v1330
  %v1409 = vunpack.c.l.b16 %v1331
  %v1410 = vunpack.c.h.b16 %v1331
  %v1411 = vunpack.c.l.b16 %v1332
  %v1412 = vunpack.c.l.b16 %v1333
  %v1413 = vunpack.c.h.b16 %v1333
  %v1414 = vunpack.c.l.b16 %v1334
  %v1415 = vpack.c.b16 %v1370, %v1367
  %v1416 = vpack.c.b16 %v1371, %v1368
  %v1417 = vpack.c.b16 %v1372, %v1369
  %v1418 = vpack.c.b16 %v1376, %v1373
  %v1419 = vpack.c.b16 %v1377, %v1374
  %v1420 = vpack.c.b16 %v1378, %v1375
  %v1421 = vpack.c.b16 %v1382, %v1379
  %v1422 = vpack.c.b16 %v1383, %v1380
  %v1423 = vpack.c.b16 %v1384, %v1381
  %v1424 = vpack.c.b16 %v1388, %v1385
  %v1425 = vpack.c.b16 %v1389, %v1386
  %v1426 = vpack.c.b16 %v1390, %v1387
  %v1427 = vpack.c.b16 %v1394, %v1391
  %v1428 = vpack.c.b16 %v1395, %v1392
  %v1429 = vpack.c.b16 %v1396, %v1393
  %v1430 = vpack.c.b16 %v1400, %v1397
  %v1431 = vpack.c.b16 %v1401, %v1398
  %v1432 = vpack.c.b16 %v1402, %v1399
  %v1433 = vpack.c.b16 %v1406, %v1403
  %v1434 = vpack.c.b16 %v1407, %v1404
  %v1435 = vpack.c.b16 %v1408, %v1405
  %v1436 = vpack.c.b16 %v1412, %v1409
  %v1437 = vpack.c.b16 %v1413, %v1410
  %v1438 = vpack.c.b16 %v1414, %v1411
  %1463 = vmatpush.bf16.msra.mxu0 %v1436
  %1464 = vmatpush.bf16.msra.mxu0 %v1433
  %1465 = vmatpush.bf16.msra.mxu0 %v1430
  %1466 = vmatpush.bf16.msra.mxu0 %v1427
  %1467 = vmatpush.bf16.msra.mxu0 %v1424
  %1468 = vmatpush.bf16.msra.mxu0 %v1421
  %1469 = vmatpush.bf16.msra.mxu0 %v1418
  %1470 = vmatpush.bf16.msra.mxu0 %v1415
  %1471 = vmatmul.bf16.gmra.mxu0 %v1302
  %v1472 = vpop.f32.mrf.mxu0
  %v1473 = vadd.f32 0.0, %v1472
  %v1474 = vpop.f32.mrf.mxu0
  %1475 = vdwg.mxu0
  %1476 = vmatpush.bf16.msra.mxu0 %v1437
  %1477 = vmatpush.bf16.msra.mxu0 %v1434
  %1478 = vmatpush.bf16.msra.mxu0 %v1431
  %1479 = vmatpush.bf16.msra.mxu0 %v1428
  %1480 = vmatpush.bf16.msra.mxu0 %v1425
  %1481 = vmatpush.bf16.msra.mxu0 %v1422
  %1482 = vmatpush.bf16.msra.mxu0 %v1419
  %1483 = vmatpush.bf16.msra.mxu0 %v1416
  %1484 = vmatmul.bf16.gmra.mxu0 %v1302
  %v1485 = vpop.f32.mrf.mxu0
  %v1486 = vadd.f32 0.0, %v1485
  %v1487 = vpop.f32.mrf.mxu0
  %1488 = vdwg.mxu0
  %1489 = vmatpush.bf16.msra.mxu0 %v1438
  %1490 = vmatpush.bf16.msra.mxu0 %v1435
  %1491 = vmatpush.bf16.msra.mxu0 %v1432
  %1492 = vmatpush.bf16.msra.mxu0 %v1429
  %1493 = vmatpush.bf16.msra.mxu0 %v1426
  %1494 = vmatpush.bf16.msra.mxu0 %v1423
  %1495 = vmatpush.bf16.msra.mxu0 %v1420
  %1496 = vmatpush.bf16.msra.mxu0 %v1417
  %1497 = vmatmul.bf16.gmra.mxu0 %v1302
  %v1498 = vpop.f32.mrf.mxu0
  %v1499 = vadd.f32 0.0, %v1498
  %v1500 = vpop.f32.mrf.mxu0
  %1501 = vdwg.mxu0
  %v1502 = vadd.f32 %v1299, %v1473
  %v1503 = vadd.f32 %v1300, %v1486
  %v1504 = vxor.u32 %v1502, 2147483648
  %v1505 = vxor.u32 %v1503, 2147483648
  %v1506 = vmul.f32 %v1504, 1.442695
  %v1507 = vpow.pop %v1506
  %v1508 = vmul.f32 %v1505, 1.442695
  %v1509 = vpow.pop %v1508
  %v1510 = vadd.f32 %v1507, 1.0
  %v1511 = vadd.f32 %v1509, 1.0
  %v1512 = vrcp.pop %v1510
  %v1513 = vmul.f32 %v1510, %v1512
  %v1514 = vsub.f32 1.0, %v1513
  %v1515 = vmul.f32 %v1512, %v1514
  %v1516 = vadd.f32 %v1512, %v1515
  %vm1517 = vweird.f32 %v1510
  %vm1518 = vweird.f32 %v1512
  %vm1519 = vmor %vm1517, %vm1518
  %v1520 = vsel %vm1519, %v1512, %v1516
  %v1521 = vand.u32 2147483647, %v1510
  %vm1522 = vcmp.eq.f32.partialorder %v1521, 8.507059e+37
  %v1523 = vand.u32 %v1510, 2147483648
  %v1524 = vor.u32 1.1754944e-38, %v1523
  %v1525 = vsel %vm1522, %v1524, %v1520
  %v1526 = vmul.f32 1.0, %v1525
  %v1527 = vrcp.pop %v1511
  %v1528 = vmul.f32 %v1511, %v1527
  %v1529 = vsub.f32 1.0, %v1528
  %v1530 = vmul.f32 %v1527, %v1529
  %v1531 = vadd.f32 %v1527, %v1530
  %vm1532 = vweird.f32 %v1511
  %vm1533 = vweird.f32 %v1527
  %vm1534 = vmor %vm1532, %vm1533
  %v1535 = vsel %vm1534, %v1527, %v1531
  %v1536 = vand.u32 2147483647, %v1511
  %vm1537 = vcmp.eq.f32.partialorder %v1536, 8.507059e+37
  %v1538 = vand.u32 %v1511, 2147483648
  %v1539 = vor.u32 1.1754944e-38, %v1538
  %v1540 = vsel %vm1537, %v1539, %v1535
  %v1541 = vmul.f32 1.0, %v1540
  %v1542 = vadd.f32 %v1499, %v271
  %v1543 = vmul.f32 %v1526, %v1542
  %v1544 = vadd.f32 %v1301, %v1543
  %v1545 = vtanh.pop %v1544
  %v1546 = vsub.f32 1.0, %v1541
  %v1547 = vmul.f32 %v1546, %v1545
  %v1548 = vmul.f32 %v1541, %v1295
  %v1549 = vadd.f32 %v1547, %v1548
  %s1550 = scalar_lea.vmem %s4, 40
  %1551 = vst [vmem:[%s1550] sm:$0xff] %v1549
  %s1552 = scalar_lea.vmem %s0, 144
  %v1553 = vld [vmem:[%s1552] sm:$0xff]
  %v1554 = vld [vmem:[%s1552 + $0x8] sm:$0xff]
  %v1555 = vld [vmem:[%s1552 + $0x10] sm:$0xff]
  %v1556 = vpack.c.bf16 %v1549, %v1549
  %v1557 = vld [vmem:[%s2] sm:$0xff]
  %v1558 = vld [vmem:[%s2 + $0x8] sm:$0xf]
  %v1559 = vld [vmem:[%s2 + $0xc] sm:$0xff]
  %v1560 = vld [vmem:[%s2 + $0x14] sm:$0xf]
  %v1561 = vld [vmem:[%s2 + $0x18] sm:$0xff]
  %v1562 = vld [vmem:[%s2 + $0x20] sm:$0xf]
  %v1563 = vld [vmem:[%s2 + $0x24] sm:$0xff]
  %v1564 = vld [vmem:[%s2 + $0x2c] sm:$0xf]
  %v1565 = vld [vmem:[%s2 + $0x30] sm:$0xff]
  %v1566 = vld [vmem:[%s2 + $0x38] sm:$0xf]
  %v1567 = vld [vmem:[%s2 + $0x3c] sm:$0xff]
  %v1568 = vld [vmem:[%s2 + $0x44] sm:$0xf]
  %v1569 = vld [vmem:[%s2 + $0x48] sm:$0xff]
  %v1570 = vld [vmem:[%s2 + $0x50] sm:$0xf]
  %v1571 = vld [vmem:[%s2 + $0x54] sm:$0xff]
  %v1572 = vld [vmem:[%s2 + $0x5c] sm:$0xf]
  %v1573 = vld [vmem:[%s2 + $0x60] sm:$0xff]
  %v1574 = vld [vmem:[%s2 + $0x68] sm:$0xf]
  %v1575 = vld [vmem:[%s2 + $0x6c] sm:$0xff]
  %v1576 = vld [vmem:[%s2 + $0x74] sm:$0xf]
  %v1577 = vld [vmem:[%s2 + $0x78] sm:$0xff]
  %v1578 = vld [vmem:[%s2 + $0x80] sm:$0xf]
  %v1579 = vld [vmem:[%s2 + $0x84] sm:$0xff]
  %v1580 = vld [vmem:[%s2 + $0x8c] sm:$0xf]
  %v1581 = vld [vmem:[%s2 + $0x90] sm:$0xff]
  %v1582 = vld [vmem:[%s2 + $0x98] sm:$0xf]
  %v1583 = vld [vmem:[%s2 + $0x9c] sm:$0xff]
  %v1584 = vld [vmem:[%s2 + $0xa4] sm:$0xf]
  %v1585 = vld [vmem:[%s2 + $0xa8] sm:$0xff]
  %v1586 = vld [vmem:[%s2 + $0xb0] sm:$0xf]
  %v1587 = vld [vmem:[%s2 + $0xb4] sm:$0xff]
  %v1588 = vld [vmem:[%s2 + $0xbc] sm:$0xf]
  %v1621 = vunpack.c.l.b16 %v1557
  %v1622 = vunpack.c.h.b16 %v1557
  %v1623 = vunpack.c.l.b16 %v1558
  %v1624 = vunpack.c.l.b16 %v1559
  %v1625 = vunpack.c.h.b16 %v1559
  %v1626 = vunpack.c.l.b16 %v1560
  %v1627 = vunpack.c.l.b16 %v1561
  %v1628 = vunpack.c.h.b16 %v1561
  %v1629 = vunpack.c.l.b16 %v1562
  %v1630 = vunpack.c.l.b16 %v1563
  %v1631 = vunpack.c.h.b16 %v1563
  %v1632 = vunpack.c.l.b16 %v1564
  %v1633 = vunpack.c.l.b16 %v1565
  %v1634 = vunpack.c.h.b16 %v1565
  %v1635 = vunpack.c.l.b16 %v1566
  %v1636 = vunpack.c.l.b16 %v1567
  %v1637 = vunpack.c.h.b16 %v1567
  %v1638 = vunpack.c.l.b16 %v1568
  %v1639 = vunpack.c.l.b16 %v1569
  %v1640 = vunpack.c.h.b16 %v1569
  %v1641 = vunpack.c.l.b16 %v1570
  %v1642 = vunpack.c.l.b16 %v1571
  %v1643 = vunpack.c.h.b16 %v1571
  %v1644 = vunpack.c.l.b16 %v1572
  %v1645 = vunpack.c.l.b16 %v1573
  %v1646 = vunpack.c.h.b16 %v1573
  %v1647 = vunpack.c.l.b16 %v1574
  %v1648 = vunpack.c.l.b16 %v1575
  %v1649 = vunpack.c.h.b16 %v1575
  %v1650 = vunpack.c.l.b16 %v1576
  %v1651 = vunpack.c.l.b16 %v1577
  %v1652 = vunpack.c.h.b16 %v1577
  %v1653 = vunpack.c.l.b16 %v1578
  %v1654 = vunpack.c.l.b16 %v1579
  %v1655 = vunpack.c.h.b16 %v1579
  %v1656 = vunpack.c.l.b16 %v1580
  %v1657 = vunpack.c.l.b16 %v1581
  %v1658 = vunpack.c.h.b16 %v1581
  %v1659 = vunpack.c.l.b16 %v1582
  %v1660 = vunpack.c.l.b16 %v1583
  %v1661 = vunpack.c.h.b16 %v1583
  %v1662 = vunpack.c.l.b16 %v1584
  %v1663 = vunpack.c.l.b16 %v1585
  %v1664 = vunpack.c.h.b16 %v1585
  %v1665 = vunpack.c.l.b16 %v1586
  %v1666 = vunpack.c.l.b16 %v1587
  %v1667 = vunpack.c.h.b16 %v1587
  %v1668 = vunpack.c.l.b16 %v1588
  %v1669 = vpack.c.b16 %v1624, %v1621
  %v1670 = vpack.c.b16 %v1625, %v1622
  %v1671 = vpack.c.b16 %v1626, %v1623
  %v1672 = vpack.c.b16 %v1630, %v1627
  %v1673 = vpack.c.b16 %v1631, %v1628
  %v1674 = vpack.c.b16 %v1632, %v1629
  %v1675 = vpack.c.b16 %v1636, %v1633
  %v1676 = vpack.c.b16 %v1637, %v1634
  %v1677 = vpack.c.b16 %v1638, %v1635
  %v1678 = vpack.c.b16 %v1642, %v1639
  %v1679 = vpack.c.b16 %v1643, %v1640
  %v1680 = vpack.c.b16 %v1644, %v1641
  %v1681 = vpack.c.b16 %v1648, %v1645
  %v1682 = vpack.c.b16 %v1649, %v1646
  %v1683 = vpack.c.b16 %v1650, %v1647
  %v1684 = vpack.c.b16 %v1654, %v1651
  %v1685 = vpack.c.b16 %v1655, %v1652
  %v1686 = vpack.c.b16 %v1656, %v1653
  %v1687 = vpack.c.b16 %v1660, %v1657
  %v1688 = vpack.c.b16 %v1661, %v1658
  %v1689 = vpack.c.b16 %v1662, %v1659
  %v1690 = vpack.c.b16 %v1666, %v1663
  %v1691 = vpack.c.b16 %v1667, %v1664
  %v1692 = vpack.c.b16 %v1668, %v1665
  %1717 = vmatpush.bf16.msra.mxu0 %v1690
  %1718 = vmatpush.bf16.msra.mxu0 %v1687
  %1719 = vmatpush.bf16.msra.mxu0 %v1684
  %1720 = vmatpush.bf16.msra.mxu0 %v1681
  %1721 = vmatpush.bf16.msra.mxu0 %v1678
  %1722 = vmatpush.bf16.msra.mxu0 %v1675
  %1723 = vmatpush.bf16.msra.mxu0 %v1672
  %1724 = vmatpush.bf16.msra.mxu0 %v1669
  %1725 = vmatmul.bf16.gmra.mxu0 %v1556
  %v1726 = vpop.f32.mrf.mxu0
  %v1727 = vadd.f32 0.0, %v1726
  %v1728 = vpop.f32.mrf.mxu0
  %1729 = vdwg.mxu0
  %1730 = vmatpush.bf16.msra.mxu0 %v1691
  %1731 = vmatpush.bf16.msra.mxu0 %v1688
  %1732 = vmatpush.bf16.msra.mxu0 %v1685
  %1733 = vmatpush.bf16.msra.mxu0 %v1682
  %1734 = vmatpush.bf16.msra.mxu0 %v1679
  %1735 = vmatpush.bf16.msra.mxu0 %v1676
  %1736 = vmatpush.bf16.msra.mxu0 %v1673
  %1737 = vmatpush.bf16.msra.mxu0 %v1670
  %1738 = vmatmul.bf16.gmra.mxu0 %v1556
  %v1739 = vpop.f32.mrf.mxu0
  %v1740 = vadd.f32 0.0, %v1739
  %v1741 = vpop.f32.mrf.mxu0
  %1742 = vdwg.mxu0
  %1743 = vmatpush.bf16.msra.mxu0 %v1692
  %1744 = vmatpush.bf16.msra.mxu0 %v1689
  %1745 = vmatpush.bf16.msra.mxu0 %v1686
  %1746 = vmatpush.bf16.msra.mxu0 %v1683
  %1747 = vmatpush.bf16.msra.mxu0 %v1680
  %1748 = vmatpush.bf16.msra.mxu0 %v1677
  %1749 = vmatpush.bf16.msra.mxu0 %v1674
  %1750 = vmatpush.bf16.msra.mxu0 %v1671
  %1751 = vmatmul.bf16.gmra.mxu0 %v1556
  %v1752 = vpop.f32.mrf.mxu0
  %v1753 = vadd.f32 0.0, %v1752
  %v1754 = vpop.f32.mrf.mxu0
  %1755 = vdwg.mxu0
  %v1756 = vadd.f32 %v1553, %v1727
  %v1757 = vadd.f32 %v1554, %v1740
  %v1758 = vxor.u32 %v1756, 2147483648
  %v1759 = vxor.u32 %v1757, 2147483648
  %v1760 = vmul.f32 %v1758, 1.442695
  %v1761 = vpow.pop %v1760
  %v1762 = vmul.f32 %v1759, 1.442695
  %v1763 = vpow.pop %v1762
  %v1764 = vadd.f32 %v1761, 1.0
  %v1765 = vadd.f32 %v1763, 1.0
  %v1766 = vrcp.pop %v1764
  %v1767 = vmul.f32 %v1764, %v1766
  %v1768 = vsub.f32 1.0, %v1767
  %v1769 = vmul.f32 %v1766, %v1768
  %v1770 = vadd.f32 %v1766, %v1769
  %vm1771 = vweird.f32 %v1764
  %vm1772 = vweird.f32 %v1766
  %vm1773 = vmor %vm1771, %vm1772
  %v1774 = vsel %vm1773, %v1766, %v1770
  %v1775 = vand.u32 2147483647, %v1764
  %vm1776 = vcmp.eq.f32.partialorder %v1775, 8.507059e+37
  %v1777 = vand.u32 %v1764, 2147483648
  %v1778 = vor.u32 1.1754944e-38, %v1777
  %v1779 = vsel %vm1776, %v1778, %v1774
  %v1780 = vmul.f32 1.0, %v1779
  %v1781 = vrcp.pop %v1765
  %v1782 = vmul.f32 %v1765, %v1781
  %v1783 = vsub.f32 1.0, %v1782
  %v1784 = vmul.f32 %v1781, %v1783
  %v1785 = vadd.f32 %v1781, %v1784
  %vm1786 = vweird.f32 %v1765
  %vm1787 = vweird.f32 %v1781
  %vm1788 = vmor %vm1786, %vm1787
  %v1789 = vsel %vm1788, %v1781, %v1785
  %v1790 = vand.u32 2147483647, %v1765
  %vm1791 = vcmp.eq.f32.partialorder %v1790, 8.507059e+37
  %v1792 = vand.u32 %v1765, 2147483648
  %v1793 = vor.u32 1.1754944e-38, %v1792
  %v1794 = vsel %vm1791, %v1793, %v1789
  %v1795 = vmul.f32 1.0, %v1794
  %v1796 = vadd.f32 %v1753, %v271
  %v1797 = vmul.f32 %v1780, %v1796
  %v1798 = vadd.f32 %v1555, %v1797
  %v1799 = vtanh.pop %v1798
  %v1800 = vsub.f32 1.0, %v1795
  %v1801 = vmul.f32 %v1800, %v1799
  %v1802 = vmul.f32 %v1795, %v1549
  %v1803 = vadd.f32 %v1801, %v1802
  %s1804 = scalar_lea.vmem %s4, 48
  %1805 = vst [vmem:[%s1804] sm:$0xff] %v1803
  %s1806 = scalar_lea.vmem %s0, 168
  %v1807 = vld [vmem:[%s1806] sm:$0xff]
  %v1808 = vld [vmem:[%s1806 + $0x8] sm:$0xff]
  %v1809 = vld [vmem:[%s1806 + $0x10] sm:$0xff]
  %v1810 = vpack.c.bf16 %v1803, %v1803
  %v1811 = vld [vmem:[%s2] sm:$0xff]
  %v1812 = vld [vmem:[%s2 + $0x8] sm:$0xf]
  %v1813 = vld [vmem:[%s2 + $0xc] sm:$0xff]
  %v1814 = vld [vmem:[%s2 + $0x14] sm:$0xf]
  %v1815 = vld [vmem:[%s2 + $0x18] sm:$0xff]
  %v1816 = vld [vmem:[%s2 + $0x20] sm:$0xf]
  %v1817 = vld [vmem:[%s2 + $0x24] sm:$0xff]
  %v1818 = vld [vmem:[%s2 + $0x2c] sm:$0xf]
  %v1819 = vld [vmem:[%s2 + $0x30] sm:$0xff]
  %v1820 = vld [vmem:[%s2 + $0x38] sm:$0xf]
  %v1821 = vld [vmem:[%s2 + $0x3c] sm:$0xff]
  %v1822 = vld [vmem:[%s2 + $0x44] sm:$0xf]
  %v1823 = vld [vmem:[%s2 + $0x48] sm:$0xff]
  %v1824 = vld [vmem:[%s2 + $0x50] sm:$0xf]
  %v1825 = vld [vmem:[%s2 + $0x54] sm:$0xff]
  %v1826 = vld [vmem:[%s2 + $0x5c] sm:$0xf]
  %v1827 = vld [vmem:[%s2 + $0x60] sm:$0xff]
  %v1828 = vld [vmem:[%s2 + $0x68] sm:$0xf]
  %v1829 = vld [vmem:[%s2 + $0x6c] sm:$0xff]
  %v1830 = vld [vmem:[%s2 + $0x74] sm:$0xf]
  %v1831 = vld [vmem:[%s2 + $0x78] sm:$0xff]
  %v1832 = vld [vmem:[%s2 + $0x80] sm:$0xf]
  %v1833 = vld [vmem:[%s2 + $0x84] sm:$0xff]
  %v1834 = vld [vmem:[%s2 + $0x8c] sm:$0xf]
  %v1835 = vld [vmem:[%s2 + $0x90] sm:$0xff]
  %v1836 = vld [vmem:[%s2 + $0x98] sm:$0xf]
  %v1837 = vld [vmem:[%s2 + $0x9c] sm:$0xff]
  %v1838 = vld [vmem:[%s2 + $0xa4] sm:$0xf]
  %v1839 = vld [vmem:[%s2 + $0xa8] sm:$0xff]
  %v1840 = vld [vmem:[%s2 + $0xb0] sm:$0xf]
  %v1841 = vld [vmem:[%s2 + $0xb4] sm:$0xff]
  %v1842 = vld [vmem:[%s2 + $0xbc] sm:$0xf]
  %v1875 = vunpack.c.l.b16 %v1811
  %v1876 = vunpack.c.h.b16 %v1811
  %v1877 = vunpack.c.l.b16 %v1812
  %v1878 = vunpack.c.l.b16 %v1813
  %v1879 = vunpack.c.h.b16 %v1813
  %v1880 = vunpack.c.l.b16 %v1814
  %v1881 = vunpack.c.l.b16 %v1815
  %v1882 = vunpack.c.h.b16 %v1815
  %v1883 = vunpack.c.l.b16 %v1816
  %v1884 = vunpack.c.l.b16 %v1817
  %v1885 = vunpack.c.h.b16 %v1817
  %v1886 = vunpack.c.l.b16 %v1818
  %v1887 = vunpack.c.l.b16 %v1819
  %v1888 = vunpack.c.h.b16 %v1819
  %v1889 = vunpack.c.l.b16 %v1820
  %v1890 = vunpack.c.l.b16 %v1821
  %v1891 = vunpack.c.h.b16 %v1821
  %v1892 = vunpack.c.l.b16 %v1822
  %v1893 = vunpack.c.l.b16 %v1823
  %v1894 = vunpack.c.h.b16 %v1823
  %v1895 = vunpack.c.l.b16 %v1824
  %v1896 = vunpack.c.l.b16 %v1825
  %v1897 = vunpack.c.h.b16 %v1825
  %v1898 = vunpack.c.l.b16 %v1826
  %v1899 = vunpack.c.l.b16 %v1827
  %v1900 = vunpack.c.h.b16 %v1827
  %v1901 = vunpack.c.l.b16 %v1828
  %v1902 = vunpack.c.l.b16 %v1829
  %v1903 = vunpack.c.h.b16 %v1829
  %v1904 = vunpack.c.l.b16 %v1830
  %v1905 = vunpack.c.l.b16 %v1831
  %v1906 = vunpack.c.h.b16 %v1831
  %v1907 = vunpack.c.l.b16 %v1832
  %v1908 = vunpack.c.l.b16 %v1833
  %v1909 = vunpack.c.h.b16 %v1833
  %v1910 = vunpack.c.l.b16 %v1834
  %v1911 = vunpack.c.l.b16 %v1835
  %v1912 = vunpack.c.h.b16 %v1835
  %v1913 = vunpack.c.l.b16 %v1836
  %v1914 = vunpack.c.l.b16 %v1837
  %v1915 = vunpack.c.h.b16 %v1837
  %v1916 = vunpack.c.l.b16 %v1838
  %v1917 = vunpack.c.l.b16 %v1839
  %v1918 = vunpack.c.h.b16 %v1839
  %v1919 = vunpack.c.l.b16 %v1840
  %v1920 = vunpack.c.l.b16 %v1841
  %v1921 = vunpack.c.h.b16 %v1841
  %v1922 = vunpack.c.l.b16 %v1842
  %v1923 = vpack.c.b16 %v1878, %v1875
  %v1924 = vpack.c.b16 %v1879, %v1876
  %v1925 = vpack.c.b16 %v1880, %v1877
  %v1926 = vpack.c.b16 %v1884, %v1881
  %v1927 = vpack.c.b16 %v1885, %v1882
  %v1928 = vpack.c.b16 %v1886, %v1883
  %v1929 = vpack.c.b16 %v1890, %v1887
  %v1930 = vpack.c.b16 %v1891, %v1888
  %v1931 = vpack.c.b16 %v1892, %v1889
  %v1932 = vpack.c.b16 %v1896, %v1893
  %v1933 = vpack.c.b16 %v1897, %v1894
  %v1934 = vpack.c.b16 %v1898, %v1895
  %v1935 = vpack.c.b16 %v1902, %v1899
  %v1936 = vpack.c.b16 %v1903, %v1900
  %v1937 = vpack.c.b16 %v1904, %v1901
  %v1938 = vpack.c.b16 %v1908, %v1905
  %v1939 = vpack.c.b16 %v1909, %v1906
  %v1940 = vpack.c.b16 %v1910, %v1907
  %v1941 = vpack.c.b16 %v1914, %v1911
  %v1942 = vpack.c.b16 %v1915, %v1912
  %v1943 = vpack.c.b16 %v1916, %v1913
  %v1944 = vpack.c.b16 %v1920, %v1917
  %v1945 = vpack.c.b16 %v1921, %v1918
  %v1946 = vpack.c.b16 %v1922, %v1919
  %1971 = vmatpush.bf16.msra.mxu0 %v1944
  %1972 = vmatpush.bf16.msra.mxu0 %v1941
  %1973 = vmatpush.bf16.msra.mxu0 %v1938
  %1974 = vmatpush.bf16.msra.mxu0 %v1935
  %1975 = vmatpush.bf16.msra.mxu0 %v1932
  %1976 = vmatpush.bf16.msra.mxu0 %v1929
  %1977 = vmatpush.bf16.msra.mxu0 %v1926
  %1978 = vmatpush.bf16.msra.mxu0 %v1923
  %1979 = vmatmul.bf16.gmra.mxu0 %v1810
  %v1980 = vpop.f32.mrf.mxu0
  %v1981 = vadd.f32 0.0, %v1980
  %v1982 = vpop.f32.mrf.mxu0
  %1983 = vdwg.mxu0
  %1984 = vmatpush.bf16.msra.mxu0 %v1945
  %1985 = vmatpush.bf16.msra.mxu0 %v1942
  %1986 = vmatpush.bf16.msra.mxu0 %v1939
  %1987 = vmatpush.bf16.msra.mxu0 %v1936
  %1988 = vmatpush.bf16.msra.mxu0 %v1933
  %1989 = vmatpush.bf16.msra.mxu0 %v1930
  %1990 = vmatpush.bf16.msra.mxu0 %v1927
  %1991 = vmatpush.bf16.msra.mxu0 %v1924
  %1992 = vmatmul.bf16.gmra.mxu0 %v1810
  %v1993 = vpop.f32.mrf.mxu0
  %v1994 = vadd.f32 0.0, %v1993
  %v1995 = vpop.f32.mrf.mxu0
  %1996 = vdwg.mxu0
  %1997 = vmatpush.bf16.msra.mxu0 %v1946
  %1998 = vmatpush.bf16.msra.mxu0 %v1943
  %1999 = vmatpush.bf16.msra.mxu0 %v1940
  %2000 = vmatpush.bf16.msra.mxu0 %v1937
  %2001 = vmatpush.bf16.msra.mxu0 %v1934
  %2002 = vmatpush.bf16.msra.mxu0 %v1931
  %2003 = vmatpush.bf16.msra.mxu0 %v1928
  %2004 = vmatpush.bf16.msra.mxu0 %v1925
  %2005 = vmatmul.bf16.gmra.mxu0 %v1810
  %v2006 = vpop.f32.mrf.mxu0
  %v2007 = vadd.f32 0.0, %v2006
  %v2008 = vpop.f32.mrf.mxu0
  %2009 = vdwg.mxu0
  %v2010 = vadd.f32 %v1807, %v1981
  %v2011 = vadd.f32 %v1808, %v1994
  %v2012 = vxor.u32 %v2010, 2147483648
  %v2013 = vxor.u32 %v2011, 2147483648
  %v2014 = vmul.f32 %v2012, 1.442695
  %v2015 = vpow.pop %v2014
  %v2016 = vmul.f32 %v2013, 1.442695
  %v2017 = vpow.pop %v2016
  %v2018 = vadd.f32 %v2015, 1.0
  %v2019 = vadd.f32 %v2017, 1.0
  %v2020 = vrcp.pop %v2018
  %v2021 = vmul.f32 %v2018, %v2020
  %v2022 = vsub.f32 1.0, %v2021
  %v2023 = vmul.f32 %v2020, %v2022
  %v2024 = vadd.f32 %v2020, %v2023
  %vm2025 = vweird.f32 %v2018
  %vm2026 = vweird.f32 %v2020
  %vm2027 = vmor %vm2025, %vm2026
  %v2028 = vsel %vm2027, %v2020, %v2024
  %v2029 = vand.u32 2147483647, %v2018
  %vm2030 = vcmp.eq.f32.partialorder %v2029, 8.507059e+37
  %v2031 = vand.u32 %v2018, 2147483648
  %v2032 = vor.u32 1.1754944e-38, %v2031
  %v2033 = vsel %vm2030, %v2032, %v2028
  %v2034 = vmul.f32 1.0, %v2033
  %v2035 = vrcp.pop %v2019
  %v2036 = vmul.f32 %v2019, %v2035
  %v2037 = vsub.f32 1.0, %v2036
  %v2038 = vmul.f32 %v2035, %v2037
  %v2039 = vadd.f32 %v2035, %v2038
  %vm2040 = vweird.f32 %v2019
  %vm2041 = vweird.f32 %v2035
  %vm2042 = vmor %vm2040, %vm2041
  %v2043 = vsel %vm2042, %v2035, %v2039
  %v2044 = vand.u32 2147483647, %v2019
  %vm2045 = vcmp.eq.f32.partialorder %v2044, 8.507059e+37
  %v2046 = vand.u32 %v2019, 2147483648
  %v2047 = vor.u32 1.1754944e-38, %v2046
  %v2048 = vsel %vm2045, %v2047, %v2043
  %v2049 = vmul.f32 1.0, %v2048
  %v2050 = vadd.f32 %v2007, %v271
  %v2051 = vmul.f32 %v2034, %v2050
  %v2052 = vadd.f32 %v1809, %v2051
  %v2053 = vtanh.pop %v2052
  %v2054 = vsub.f32 1.0, %v2049
  %v2055 = vmul.f32 %v2054, %v2053
  %v2056 = vmul.f32 %v2049, %v1803
  %v2057 = vadd.f32 %v2055, %v2056
  %s2058 = scalar_lea.vmem %s4, 56
  %2059 = vst [vmem:[%s2058] sm:$0xff] %v2057
  %2060 = vst [vmem:[%s5] sm:$0xff] %v2057
  // Predicated region
  $region22: #{decoder_forward.4} parent=0 // pred_check
    _
  $region23: #{decoder_forward.4} parent=0 // pred_check_branch
    %2062 = sbr.rel (0) target = $region25
  $region24: #{decoder_forward.4} parent=0 // pred_region
    _
  $region25: #{decoder_forward.4} parent=0 // pred_fallthru
    _
  // Predicated region
  $region26: #{decoder_forward.4} parent=0 // pred_check
    _
  $region27: #{decoder_forward.4} parent=0 // pred_check_branch
    %2064 = sbr.rel (0) target = $region29
  $region28: #{decoder_forward.4} parent=0 // pred_region
    _
  $region29: #{decoder_forward.4} parent=0 // pred_fallthru
    _
  // Predicated region
  $region30: #{decoder_forward.4} parent=0 // pred_check
    _
  $region31: #{decoder_forward.4} parent=0 // pred_check_branch
    %2066 = sbr.rel (0) target = $region33
  $region32: #{decoder_forward.4} parent=0 // pred_region
    _
  $region33: #{decoder_forward.4} parent=0 // pred_fallthru
    _
  // Predicated region
  $region34: #{decoder_forward.4} parent=0 // pred_check
    _
  $region35: #{decoder_forward.4} parent=0 // pred_check_branch
    %2068 = sbr.rel (0) target = $region37
  $region36: #{decoder_forward.4} parent=0 // pred_region
    _
  $region37: #{decoder_forward.4} parent=0 // pred_fallthru
    _

</llo_original>
